<compile_context>
chip_gen: v5e
topology: v5e:2x2
jax: 0.10.0
libtpu: 0.0.40
codegen_flags: <defaults>
</compile_context>

<pallas_src>
from math import sqrt

import jax
import jax.numpy as jnp
from jax.experimental import pallas as pl
from jax.experimental.pallas import tpu as pltpu

IN_DIM = 256
OUT_DIM = 256
DROP_P = 0.5                                    # F.dropout default
SCALE = 1.0 / (1.0 - DROP_P)                    # inverted-dropout scale
KEEP_THRESHOLD = int(round((1.0 - DROP_P) * 2**32))  # uniform u32 < thr -> keep


def prenet_kernel(seed_ref, x_ref, w_ref, o_ref):
    # ---- LinearNorm (no bias): MXU matmul ----
    y = jnp.dot(x_ref[...], w_ref[...], preferred_element_type=jnp.float32)
    # ---- ReLU ----
    y = jnp.maximum(y, 0.0)

    # ---- Dropout (p=0.5, training=True) ----
    # Counter-based hash PRNG on the global element index: reproducible across
    # tilings and TensorCores, pure VPU integer ops (no stateful PRNG needed).
    tb, n = y.shape
    row0 = pl.program_id(0) * tb
    rows = (jax.lax.broadcasted_iota(jnp.int32, (tb, n), 0) + row0).astype(jnp.uint32)
    cols = jax.lax.broadcasted_iota(jnp.int32, (tb, n), 1).astype(jnp.uint32)
    seed = seed_ref[0].astype(jnp.uint32)

    h = rows * jnp.uint32(0x9E3779B1) + cols * jnp.uint32(0x85EBCA77) + seed
    # murmur3 fmix32 finalizer (good avalanche).
    h = h ^ (h >> 16)
    h = h * jnp.uint32(0x85EBCA6B)
    h = h ^ (h >> 13)
    h = h * jnp.uint32(0xC2B2AE35)
    h = h ^ (h >> 16)

    keep = h < jnp.uint32(KEEP_THRESHOLD)       # P(keep) = 1 - DROP_P
    o_ref[...] = jnp.where(keep, y * SCALE, 0.0).astype(o_ref.dtype)


def _pick_tile(batch):
    # Largest MXU-friendly tile that divides the batch; 512 keeps the systolic
    # array full on all generations while staying far under v7x's 32 MiB
    # scoped-VMEM default (x + out tiles, double-buffered, + resident W).
    for t in (512, 256, 128, 64, 32, 16, 8):
        if batch % t == 0:
            return t
    return batch  # full-extent block (allowed when it equals the array dim)


def prenet_forward(x, w, seed, *, tb=None):
    B, D = x.shape
    assert D == IN_DIM and w.shape == (IN_DIM, OUT_DIM)
    if tb is None:
        tb = _pick_tile(B)
    assert B % tb == 0

    seed_arr = jnp.asarray([seed], dtype=jnp.int32)
    itemsize = jnp.dtype(x.dtype).itemsize
    bytes_accessed = (B * IN_DIM + IN_DIM * OUT_DIM + B * OUT_DIM) * itemsize

    return pl.pallas_call(
        prenet_kernel,
        out_shape=jax.ShapeDtypeStruct((B, OUT_DIM), x.dtype),
        grid_spec=pltpu.PrefetchScalarGridSpec(
            num_scalar_prefetch=1,
            grid=(B // tb,),
            in_specs=[
                pl.BlockSpec((tb, IN_DIM), lambda i, seed: (i, 0)),
                # Constant block index -> weight stays resident in VMEM.
                pl.BlockSpec((IN_DIM, OUT_DIM), lambda i, seed: (0, 0)),
            ],
            out_specs=pl.BlockSpec((tb, OUT_DIM), lambda i, seed: (i, 0)),
        ),
        compiler_params=pltpu.CompilerParams(
            # Blocks are independent (mask keyed on global indices), so let the
            # runtime shard the batch grid across TensorCores on v7x.
            dimension_semantics=("parallel",),
        ),
        cost_estimate=pl.CostEstimate(
            flops=2 * B * IN_DIM * OUT_DIM,
            transcendentals=0,
            bytes_accessed=bytes_accessed,
        ),
    )(seed_arr, x, w)


if __name__ == "__main__":
    key = jax.random.PRNGKey(0)
    kx, kw = jax.random.split(key)

    B = 1024  # 2 grid steps at the default 512-row tile; ~1 MiB of activations
    x = jax.random.normal(kx, (B, IN_DIM), dtype=jnp.float32)

    # Deterministic Xavier-uniform init (LinearNorm default, gain='linear' -> 1.0)
    limit = sqrt(6.0 / (IN_DIM + OUT_DIM))
    w = jax.random.uniform(kw, (IN_DIM, OUT_DIM), dtype=jnp.float32,
                           minval=-limit, maxval=limit)

    out = jax.block_until_ready(prenet_forward(x, w, seed=1234))

    # Sanity checks: shape, ReLU/dropout invariant, and surviving values match
    # 2 * relu(x @ w) at the kept positions.
    assert out.shape == (B, OUT_DIM)
    assert bool(jnp.all(out >= 0.0))
    ref = jnp.maximum(x @ w, 0.0) * SCALE
    nz = out != 0.0
    assert bool(jnp.allclose(jnp.where(nz, out, 0.0), jnp.where(nz, ref, 0.0),
                             rtol=1e-3, atol=1e-3))
    pos = ref > 0.0
    keep_rate = float(jnp.sum(nz & pos) / jnp.maximum(jnp.sum(pos), 1))
    assert 0.4 < keep_rate < 0.6  # ~half of positive activations kept
    print("KERNEL_OK")
</pallas_src>

<mosaic_0001>
module attributes {stable_mosaic.version = 11 : i64} {
  func.func @prenet_kernel(%arg0: i32, %arg1: memref<1xi32, #tpu.memory_space<smem>>, %arg2: memref<512x256xf32, #tpu.memory_space<vmem>>, %arg3: memref<256x256xf32, #tpu.memory_space<vmem>>, %arg4: memref<512x256xf32, #tpu.memory_space<vmem>>) attributes {dimension_semantics = [#tpu.dimension_semantics<parallel>], iteration_bounds = array<i64: 2>, scalar_prefetch = 1 : i64, scratch_operands = 0 : i64, tpu.core_type = #tpu.core_type<tc>, window_params = [{transform_indices = @transform_0, window_bounds = array<i64: 512, 256>}, {pipeline_mode = #tpu.pipeline_mode<synchronous>, transform_indices = @transform_1, window_bounds = array<i64: 256, 256>}, {transform_indices = @transform_2, window_bounds = array<i64: 512, 256>}]} {
    %c0 = arith.constant 0 : index
    %c0_0 = arith.constant 0 : index
    %0 = vector.load %arg2[%c0, %c0_0] : memref<512x256xf32, #tpu.memory_space<vmem>>, vector<512x256xf32>
    %c0_1 = arith.constant 0 : index
    %c0_2 = arith.constant 0 : index
    %1 = vector.load %arg3[%c0_1, %c0_2] : memref<256x256xf32, #tpu.memory_space<vmem>>, vector<256x256xf32>
    %cst = arith.constant dense<0.000000e+00> : vector<512x256xf32>
    %2 = tpu.matmul %0, %1, %cst {dimension_numbers = #tpu.dot_dimension_numbers<[1], [0], [0], [1], [0, 0, 1, 1], [], []>} : vector<512x256xf32>, vector<256x256xf32>, vector<512x256xf32> -> vector<512x256xf32>
    %cst_3 = arith.constant 0.000000e+00 : f32
    %3 = vector.broadcast %cst_3 : f32 to vector<512x256xf32>
    %4 = arith.maximumf %2, %3 : vector<512x256xf32>
    %c512_i32 = arith.constant 512 : i32
    %5 = arith.muli %arg0, %c512_i32 : i32
    %6 = tpu.iota {dimensions = array<i32: 0>} : vector<512x256xi32>
    %7 = vector.broadcast %5 : i32 to vector<512x256xi32>
    %8 = arith.addi %6, %7 : vector<512x256xi32>
    %9 = tpu.iota {dimensions = array<i32: 1>} : vector<512x256xi32>
    %c0_4 = arith.constant 0 : index
    %10 = memref.load %arg1[%c0_4] : memref<1xi32, #tpu.memory_space<smem>>
    %c-1640531535_i32 = arith.constant -1640531535 : i32
    %11 = vector.broadcast %c-1640531535_i32 : i32 to vector<512x256xi32>
    %12 = arith.muli %8, %11 : vector<512x256xi32>
    %c-2048144777_i32 = arith.constant -2048144777 : i32
    %13 = vector.broadcast %c-2048144777_i32 : i32 to vector<512x256xi32>
    %14 = arith.muli %9, %13 : vector<512x256xi32>
    %15 = arith.addi %12, %14 : vector<512x256xi32>
    %16 = vector.broadcast %10 : i32 to vector<512x256xi32>
    %17 = arith.addi %15, %16 : vector<512x256xi32>
    %c16_i32 = arith.constant 16 : i32
    %18 = vector.broadcast %c16_i32 : i32 to vector<512x256xi32>
    %19 = arith.shrui %17, %18 : vector<512x256xi32>
    %20 = arith.xori %17, %19 : vector<512x256xi32>
    %c-2048144789_i32 = arith.constant -2048144789 : i32
    %21 = vector.broadcast %c-2048144789_i32 : i32 to vector<512x256xi32>
    %22 = arith.muli %20, %21 : vector<512x256xi32>
    %c13_i32 = arith.constant 13 : i32
    %23 = vector.broadcast %c13_i32 : i32 to vector<512x256xi32>
    %24 = arith.shrui %22, %23 : vector<512x256xi32>
    %25 = arith.xori %22, %24 : vector<512x256xi32>
    %c-1028477387_i32 = arith.constant -1028477387 : i32
    %26 = vector.broadcast %c-1028477387_i32 : i32 to vector<512x256xi32>
    %27 = arith.muli %25, %26 : vector<512x256xi32>
    %c16_i32_5 = arith.constant 16 : i32
    %28 = vector.broadcast %c16_i32_5 : i32 to vector<512x256xi32>
    %29 = arith.shrui %27, %28 : vector<512x256xi32>
    %30 = arith.xori %27, %29 : vector<512x256xi32>
    %c-2147483648_i32 = arith.constant -2147483648 : i32
    %31 = vector.broadcast %c-2147483648_i32 : i32 to vector<512x256xi32>
    %32 = arith.cmpi ult, %30, %31 : vector<512x256xi32>
    %cst_6 = arith.constant 2.000000e+00 : f32
    %33 = vector.broadcast %cst_6 : f32 to vector<512x256xf32>
    %34 = arith.mulf %4, %33 : vector<512x256xf32>
    %cst_7 = arith.constant 0.000000e+00 : f32
    %35 = vector.broadcast %cst_7 : f32 to vector<512x256xf32>
    %36 = arith.select %32, %34, %35 : vector<512x256xi1>, vector<512x256xf32>
    %c0_8 = arith.constant 0 : index
    %c0_9 = arith.constant 0 : index
    %37 = vector.load %arg4[%c0_8, %c0_9] : memref<512x256xf32, #tpu.memory_space<vmem>>, vector<512x256xf32>
    tpu.vector_store %arg4[%c0_8, %c0_9], %36 {strides = array<i32>} : memref<512x256xf32, #tpu.memory_space<vmem>>, vector<512x256xf32>,
    return
  }
  func.func @transform_0(%arg0: i32, %arg1: memref<1xi32, #tpu.memory_space<smem>>) -> (i32, i32) {
    %c0_i32 = arith.constant 0 : i32
    %c0_i32_0 = arith.constant 0 : i32
    return %arg0, %c0_i32 : i32, i32
  }
  func.func @transform_1(%arg0: i32, %arg1: memref<1xi32, #tpu.memory_space<smem>>) -> (i32, i32) {
    %c0_i32 = arith.constant 0 : i32
    %c0_i32_0 = arith.constant 0 : i32
    %c0_i32_1 = arith.constant 0 : i32
    return %c0_i32, %c0_i32_0 : i32, i32
  }
  func.func @transform_2(%arg0: i32, %arg1: memref<1xi32, #tpu.memory_space<smem>>) -> (i32, i32) {
    %c0_i32 = arith.constant 0 : i32
    %c0_i32_0 = arith.constant 0 : i32
    return %arg0, %c0_i32 : i32, i32
  }
}

</mosaic_0001>

<llo_original>
// kernel: tpu_custom_call.1
$region0: #{tpu_custom_call.1}
  #allocation0 [shape = 'u32[]', space=smem, size = 0x4, offset = 0x4, fixed_abs, tag = 'smem constant byte address 0x4 - core index']
  #allocation1 [shape = 'u32[72,128]{1,0:T(1,128)}', space=vmem, size = 0x9000, scoped, tag = 'internal scratch']
  #allocation2 [shape = 's32[1]{0}', space=sflag, size = 0x4, scoped, tag = 'scoped memory for tpu_custom_call.1']
  #allocation3 [shape = 's32[1]{0:T(128)S(6)}', space=smem, size = 0x200, scoped, tag = 'prefetched SMEM operand 0']
  %s0 = inlined_call_operand.<no memory space> [shape: s32[1], index: 0, kind: input, shape index: {}]
  %s1 = inlined_call_operand.hbm [shape: f32[1024,256], index: 1, kind: input, shape index: {}]
  %s2 = inlined_call_operand.hbm [shape: f32[256,256], index: 2, kind: input, shape index: {}]
  %s3 = inlined_call_operand.hbm [shape: f32[1024,256], index: 3, kind: output, shape index: {}]
  %s4 = sld [smem:[#allocation0]]
  $region49: #{tpu_custom_call.1} parent=0
    _
  %s6 = ssub.s32 1, %s4
  %s7 = scalar_select 0, %s6, %s4
  %8 = sst [smem:[#allocation3]] %s0
  $region1: #{tpu_custom_call.1} parent=0
    #allocation4 [shape = 'u8[1048576]{0}', space=vmem, size = 0x100000, scoped, tag = 'input window, operand 1']
    #allocation5 [shape = 's32[2]{0}', space=sflag, size = 0x8, scoped, tag = 'scoped memory for tpu_custom_call.1']
    #allocation6 [shape = 's32[2]{0}', space=sflag, size = 0x8, scoped, tag = 'scoped memory for tpu_custom_call.1']
    #allocation7 [shape = 'u8[262144]{0}', space=vmem, size = 0x40000, scoped, tag = 'input window, operand 2, single buffered']
    #allocation8 [shape = 's32[1]{0}', space=sflag, size = 0x4, scoped, tag = 'scoped memory for tpu_custom_call.1']
    #allocation9 [shape = 'u8[1048576]{0}', space=vmem, size = 0x100000, scoped, tag = 'output window, operand 0']
    %9 = vsyncpa [#allocation5], 0
    %s10 = scalar_lea.sflag [#allocation5], 1
    %11 = vsyncpa %s10, 0
    %12 = vsyncpa [#allocation8], 0
    %13 = vsyncpa [#allocation6], 0
    %s14 = scalar_lea.sflag [#allocation6], 1
    %15 = vsyncpa %s14, 0
    loop: start=0, step=1, limit=4
    $region2: #{tpu_custom_call.1} parent=1 // loop_pre_header
      _
    $region3: #{tpu_custom_call.1} parent=1 // loop_header
      %s17 = sphi 0, %s21
      %p18 = scmp.ge.s32.totalorder %s17, 4
      %s27 = sphi 0, %s29
      %s30 = sphi 0, %s27
      %s31 = sphi 0, %s30
      %s47 = sphi 0, %s31
      %s51 = sphi 0, %s51
      %s53 = sphi 0, %s51
      %s54 = sphi 0, %s53
      %s68 = sphi 0, %s54
      %s74 = sphi 0, %s76
      %s77 = sphi 0, %s74
      %s78 = sphi 0, %s77
      %s94 = sphi 0, %s78
    $region4: #{tpu_custom_call.1} parent=1 // loop_header_branch
      %20 = sbr.rel (%p18) target = $region8
    $region5: #{tpu_custom_call.1} parent=1 // loop_body
      %s22 = ssub.s32 %s17, 1
      %s23 = ssub.s32 %s17, 2
      %s24 = sadd.s32 %s17, 1
      %s25 = ssub.s32 %s17, %s24
      %p26 = scmp.eq.s32.totalorder %s25, 0
      %s28 = sadd.s32 %s27, 1
      %s29 = scalar_select %p26, %s27, %s28
      %p32 = pneg %p26
      %p33 = scmp.eq.s32.totalorder %s17, 1
      %p34 = por %p32, %p33
      %p35 = scmp.ne.s32.totalorder %s27, %s30
      %p36 = scmp.eq.s32.totalorder %s17, 0
      %p37 = por %p35, %p36
      %p38 = scmp.ne.s32.totalorder %s27, %s30
      %p39 = scmp.eq.s32.totalorder %s22, 1
      %p40 = por %p38, %p39
      %p41 = scmp.ne.s32.totalorder %s30, %s31
      %p42 = scmp.eq.s32.totalorder %s22, 0
      %p43 = por %p41, %p42
      %p44 = scmp.ne.s32.totalorder %s30, %s31
      %p45 = scmp.eq.s32.totalorder %s23, 1
      %p46 = por %p44, %p45
      %p48 = scmp.ne.s32.totalorder %s31, %s47
      %p49 = scmp.eq.s32.totalorder %s23, 0
      %p50 = por %p48, %p49
      %s52 = sadd.s32 %s51, 1
      %p55 = scmp.eq.s32.totalorder %s17, 1
      %p56 = scmp.ne.s32.totalorder %s51, %s53
      %p57 = scmp.eq.s32.totalorder %s17, 0
      %p58 = por %p56, %p57
      %p59 = scmp.ne.s32.totalorder %s51, %s53
      %p60 = scmp.eq.s32.totalorder %s22, 1
      %p61 = por %p59, %p60
      %p62 = scmp.ne.s32.totalorder %s53, %s54
      %p63 = scmp.eq.s32.totalorder %s22, 0
      %p64 = por %p62, %p63
      %p65 = scmp.ne.s32.totalorder %s53, %s54
      %p66 = scmp.eq.s32.totalorder %s23, 1
      %p67 = por %p65, %p66
      %p69 = scmp.ne.s32.totalorder %s54, %s68
      %p70 = scmp.eq.s32.totalorder %s23, 0
      %p71 = por %p69, %p70
      %s72 = ssub.s32 %s17, %s24
      %p73 = scmp.eq.s32.totalorder %s72, 0
      %s75 = sadd.s32 %s74, 1
      %s76 = scalar_select %p73, %s74, %s75
      %p79 = pneg %p73
      %p80 = scmp.eq.s32.totalorder %s17, 1
      %p81 = por %p79, %p80
      %p82 = scmp.ne.s32.totalorder %s74, %s77
      %p83 = scmp.eq.s32.totalorder %s17, 0
      %p84 = por %p82, %p83
      %p85 = scmp.ne.s32.totalorder %s74, %s77
      %p86 = scmp.eq.s32.totalorder %s22, 1
      %p87 = por %p85, %p86
      %p88 = scmp.ne.s32.totalorder %s77, %s78
      %p89 = scmp.eq.s32.totalorder %s22, 0
      %p90 = por %p88, %p89
      %p91 = scmp.ne.s32.totalorder %s77, %s78
      %p92 = scmp.eq.s32.totalorder %s23, 1
      %p93 = por %p91, %p92
      %p95 = scmp.ne.s32.totalorder %s78, %s94
      %p96 = scmp.eq.s32.totalorder %s23, 0
      %p97 = por %p95, %p96
      %p98 = scmp.le.s32.totalorder 1, %s17
      %p99 = scmp.lt.s32.totalorder %s17, 3
      %p100 = pnand %p98, %p99
      %p101 = pneg %p100
      // Predicated region
      $region9: #{tpu_custom_call.1} parent=5 // pred_check
        _
      $region10: #{tpu_custom_call.1} parent=5 // pred_check_branch
        %103 = sbr.rel (%p100) target = $region12
      $region11: #{tpu_custom_call.1} parent=5 // pred_region
        %s104 = ssub.s32 %s17, 1
        // Predicated region
        $region13: #{tpu_custom_call.1} parent=11 // pred_check
          %p105 = pneg %p64
        $region14: #{tpu_custom_call.1} parent=11 // pred_check_branch
          %107 = sbr.rel (%p105) target = $region16
        $region15: #{tpu_custom_call.1} parent=11 // pred_region
          %109 = vsyncadd [#allocation8], 0
          %s110 = sshll.u32 %s2, 4
          %s111 = int_to_ptr.hbm [resolvable:$true] %s110
          %s112 = sshll.u32 [#allocation7], 4
          %s113 = int_to_ptr.vmem [resolvable:$true] %s112
          %118 = dma.hbm_to_vmem [thread:$0]  %s111, 8192, %s113, [#allocation8], 256, 256, 16
        $region16: #{tpu_custom_call.1} parent=11 // pred_fallthru
          _
      $region12: #{tpu_custom_call.1} parent=5 // pred_fallthru
        _
      %p119 = scmp.lt.s32.totalorder %s17, 2
      // Predicated region
      $region17: #{tpu_custom_call.1} parent=5 // pred_check
        %p120 = pneg %p119
      $region18: #{tpu_custom_call.1} parent=5 // pred_check_branch
        %122 = sbr.rel (%p120) target = $region20
      $region19: #{tpu_custom_call.1} parent=5 // pred_region
        // Predicated region
        $region21: #{tpu_custom_call.1} parent=19 // pred_check
          %p123 = pneg %p37
        $region22: #{tpu_custom_call.1} parent=19 // pred_check_branch
          %125 = sbr.rel (%p123) target = $region24
        $region23: #{tpu_custom_call.1} parent=19 // pred_region
          %s126 = sand.u32 %s27, 1
          %s127 = scalar_lea.sflag [#allocation5], %s126
          %s128 = sand.u32 %s27, 1
          %s129 = smul.addr %s128, 1024
          %s130 = scalar_lea.vmem [#allocation4], %s129
          %s131 = smul.u32 64, %s17
          %133 = vsyncadd %s127, 0
          %s134 = smul.addr %s131, 2
          %s135 = smul.addr %s134, 8
          %s136 = scalar_lea.hbm %s1, %s135
          %s137 = sshll.u32 %s136, 4
          %s138 = int_to_ptr.hbm [resolvable:$true] %s137
          %s139 = sshll.u32 %s130, 4
          %s140 = int_to_ptr.vmem [resolvable:$true] %s139
          %145 = dma.hbm_to_vmem [thread:$0]  %s138, 16384, %s140, %s127, 256, 256, 16
        $region24: #{tpu_custom_call.1} parent=19 // pred_fallthru
          _
      $region20: #{tpu_custom_call.1} parent=5 // pred_fallthru
        _
      %p146 = scmp.le.s32.totalorder 1, %s17
      %p147 = scmp.lt.s32.totalorder %s17, 3
      %p148 = pnand %p146, %p147
      %p149 = pneg %p148
      // Predicated region
      $region25: #{tpu_custom_call.1} parent=5 // pred_check
        _
      $region26: #{tpu_custom_call.1} parent=5 // pred_check_branch
        %151 = sbr.rel (%p148) target = $region28
      $region27: #{tpu_custom_call.1} parent=5 // pred_region
        %s152 = ssub.s32 %s17, 1
        %s153 = sand.u32 %s30, 1
        %s154 = scalar_lea.sflag [#allocation5], %s153
        %s155 = sand.u32 %s30, 1
        %s156 = smul.addr %s155, 1024
        %s157 = scalar_lea.vmem [#allocation4], %s156
        // Predicated region
        $region29: #{tpu_custom_call.1} parent=27 // pred_check
          %p158 = pneg %p43
        $region30: #{tpu_custom_call.1} parent=27 // pred_check_branch
          %160 = sbr.rel (%p158) target = $region32
        $region31: #{tpu_custom_call.1} parent=27 // pred_region
          %162 = dma.done %s154, 16384
        $region32: #{tpu_custom_call.1} parent=27 // pred_fallthru
          _
        // Predicated region
        $region33: #{tpu_custom_call.1} parent=27 // pred_check
          %p163 = pneg %p64
        $region34: #{tpu_custom_call.1} parent=27 // pred_check_branch
          %165 = sbr.rel (%p163) target = $region36
        $region35: #{tpu_custom_call.1} parent=27 // pred_region
          %167 = dma.done [#allocation8], 8192
        $region36: #{tpu_custom_call.1} parent=27 // pred_fallthru
          _
        %s168 = sand.u32 %s30, 1
        %s169 = scalar_lea.sflag [#allocation5], %s168
        %s170 = sand.u32 %s30, 1
        %s171 = smul.addr %s170, 1024
        %s172 = scalar_lea.vmem [#allocation4], %s171
        %p173 = pneg %p43
        %p174 = pneg %p40
        %p175 = pneg %p64
        %p176 = pneg %p61
        %p177 = pneg %p90
        %p178 = pneg %p87
        %s179 = sand.u32 %s77, 1
        %s180 = scalar_lea.sflag [#allocation6], %s179
        %s181 = sand.u32 %s77, 1
        %s182 = smul.addr %s181, 1024
        %s183 = scalar_lea.vmem [#allocation9], %s182
        %s184 = smul.u32 64, %s22
        %s185 = smul.u32 64, %s22
        %v186 = vld [vmem:[%s157] sm:$0xff]
        %v187 = vld [vmem:[%s157 + $0x8] sm:$0xff]
        %v188 = vld [vmem:[%s157 + $0x10] sm:$0xff]
        %v189 = vld [vmem:[%s157 + $0x18] sm:$0xff]
        %v190 = vld [vmem:[%s157 + $0x20] sm:$0xff]
        %v191 = vld [vmem:[%s157 + $0x28] sm:$0xff]
        %v192 = vld [vmem:[%s157 + $0x30] sm:$0xff]
        %v193 = vld [vmem:[%s157 + $0x38] sm:$0xff]
        %v194 = vld [vmem:[%s157 + $0x40] sm:$0xff]
        %v195 = vld [vmem:[%s157 + $0x48] sm:$0xff]
        %v196 = vld [vmem:[%s157 + $0x50] sm:$0xff]
        %v197 = vld [vmem:[%s157 + $0x58] sm:$0xff]
        %v198 = vld [vmem:[%s157 + $0x60] sm:$0xff]
        %v199 = vld [vmem:[%s157 + $0x68] sm:$0xff]
        %v200 = vld [vmem:[%s157 + $0x70] sm:$0xff]
        %v201 = vld [vmem:[%s157 + $0x78] sm:$0xff]
        %v202 = vld [vmem:[%s157 + $0x80] sm:$0xff]
        %v203 = vld [vmem:[%s157 + $0x88] sm:$0xff]
        %v204 = vld [vmem:[%s157 + $0x90] sm:$0xff]
        %v205 = vld [vmem:[%s157 + $0x98] sm:$0xff]
        %v206 = vld [vmem:[%s157 + $0xa0] sm:$0xff]
        %v207 = vld [vmem:[%s157 + $0xa8] sm:$0xff]
        %v208 = vld [vmem:[%s157 + $0xb0] sm:$0xff]
        %v209 = vld [vmem:[%s157 + $0xb8] sm:$0xff]
        %v210 = vld [vmem:[%s157 + $0xc0] sm:$0xff]
        %v211 = vld [vmem:[%s157 + $0xc8] sm:$0xff]
        %v212 = vld [vmem:[%s157 + $0xd0] sm:$0xff]
        %v213 = vld [vmem:[%s157 + $0xd8] sm:$0xff]
        %v214 = vld [vmem:[%s157 + $0xe0] sm:$0xff]
        %v215 = vld [vmem:[%s157 + $0xe8] sm:$0xff]
        %v216 = vld [vmem:[%s157 + $0xf0] sm:$0xff]
        %v217 = vld [vmem:[%s157 + $0xf8] sm:$0xff]
        %v218 = vld [vmem:[%s157 + $0x100] sm:$0xff]
        %v219 = vld [vmem:[%s157 + $0x108] sm:$0xff]
        %v220 = vld [vmem:[%s157 + $0x110] sm:$0xff]
        %v221 = vld [vmem:[%s157 + $0x118] sm:$0xff]
        %v222 = vld [vmem:[%s157 + $0x120] sm:$0xff]
        %v223 = vld [vmem:[%s157 + $0x128] sm:$0xff]
        %v224 = vld [vmem:[%s157 + $0x130] sm:$0xff]
        %v225 = vld [vmem:[%s157 + $0x138] sm:$0xff]
        %v226 = vld [vmem:[%s157 + $0x140] sm:$0xff]
        %v227 = vld [vmem:[%s157 + $0x148] sm:$0xff]
        %v228 = vld [vmem:[%s157 + $0x150] sm:$0xff]
        %v229 = vld [vmem:[%s157 + $0x158] sm:$0xff]
        %v230 = vld [vmem:[%s157 + $0x160] sm:$0xff]
        %v231 = vld [vmem:[%s157 + $0x168] sm:$0xff]
        %v232 = vld [vmem:[%s157 + $0x170] sm:$0xff]
        %v233 = vld [vmem:[%s157 + $0x178] sm:$0xff]
        %v234 = vld [vmem:[%s157 + $0x180] sm:$0xff]
        %v235 = vld [vmem:[%s157 + $0x188] sm:$0xff]
        %v236 = vld [vmem:[%s157 + $0x190] sm:$0xff]
        %v237 = vld [vmem:[%s157 + $0x198] sm:$0xff]
        %v238 = vld [vmem:[%s157 + $0x1a0] sm:$0xff]
        %v239 = vld [vmem:[%s157 + $0x1a8] sm:$0xff]
        %v240 = vld [vmem:[%s157 + $0x1b0] sm:$0xff]
        %v241 = vld [vmem:[%s157 + $0x1b8] sm:$0xff]
        %v242 = vld [vmem:[%s157 + $0x1c0] sm:$0xff]
        %v243 = vld [vmem:[%s157 + $0x1c8] sm:$0xff]
        %v244 = vld [vmem:[%s157 + $0x1d0] sm:$0xff]
        %v245 = vld [vmem:[%s157 + $0x1d8] sm:$0xff]
        %v246 = vld [vmem:[%s157 + $0x1e0] sm:$0xff]
        %v247 = vld [vmem:[%s157 + $0x1e8] sm:$0xff]
        %v248 = vld [vmem:[%s157 + $0x1f0] sm:$0xff]
        %v249 = vld [vmem:[%s157 + $0x1f8] sm:$0xff]
        %v250 = vld [vmem:[%s157 + $0x200] sm:$0xff]
        %v251 = vld [vmem:[%s157 + $0x208] sm:$0xff]
        %v252 = vld [vmem:[%s157 + $0x210] sm:$0xff]
        %v253 = vld [vmem:[%s157 + $0x218] sm:$0xff]
        %v254 = vld [vmem:[%s157 + $0x220] sm:$0xff]
        %v255 = vld [vmem:[%s157 + $0x228] sm:$0xff]
        %v256 = vld [vmem:[%s157 + $0x230] sm:$0xff]
        %v257 = vld [vmem:[%s157 + $0x238] sm:$0xff]
        %v258 = vld [vmem:[%s157 + $0x240] sm:$0xff]
        %v259 = vld [vmem:[%s157 + $0x248] sm:$0xff]
        %v260 = vld [vmem:[%s157 + $0x250] sm:$0xff]
        %v261 = vld [vmem:[%s157 + $0x258] sm:$0xff]
        %v262 = vld [vmem:[%s157 + $0x260] sm:$0xff]
        %v263 = vld [vmem:[%s157 + $0x268] sm:$0xff]
        %v264 = vld [vmem:[%s157 + $0x270] sm:$0xff]
        %v265 = vld [vmem:[%s157 + $0x278] sm:$0xff]
        %v266 = vld [vmem:[%s157 + $0x280] sm:$0xff]
        %v267 = vld [vmem:[%s157 + $0x288] sm:$0xff]
        %v268 = vld [vmem:[%s157 + $0x290] sm:$0xff]
        %v269 = vld [vmem:[%s157 + $0x298] sm:$0xff]
        %v270 = vld [vmem:[%s157 + $0x2a0] sm:$0xff]
        %v271 = vld [vmem:[%s157 + $0x2a8] sm:$0xff]
        %v272 = vld [vmem:[%s157 + $0x2b0] sm:$0xff]
        %v273 = vld [vmem:[%s157 + $0x2b8] sm:$0xff]
        %v274 = vld [vmem:[%s157 + $0x2c0] sm:$0xff]
        %v275 = vld [vmem:[%s157 + $0x2c8] sm:$0xff]
        %v276 = vld [vmem:[%s157 + $0x2d0] sm:$0xff]
        %v277 = vld [vmem:[%s157 + $0x2d8] sm:$0xff]
        %v278 = vld [vmem:[%s157 + $0x2e0] sm:$0xff]
        %v279 = vld [vmem:[%s157 + $0x2e8] sm:$0xff]
        %v280 = vld [vmem:[%s157 + $0x2f0] sm:$0xff]
        %v281 = vld [vmem:[%s157 + $0x2f8] sm:$0xff]
        %v282 = vld [vmem:[%s157 + $0x300] sm:$0xff]
        %v283 = vld [vmem:[%s157 + $0x308] sm:$0xff]
        %v284 = vld [vmem:[%s157 + $0x310] sm:$0xff]
        %v285 = vld [vmem:[%s157 + $0x318] sm:$0xff]
        %v286 = vld [vmem:[%s157 + $0x320] sm:$0xff]
        %v287 = vld [vmem:[%s157 + $0x328] sm:$0xff]
        %v288 = vld [vmem:[%s157 + $0x330] sm:$0xff]
        %v289 = vld [vmem:[%s157 + $0x338] sm:$0xff]
        %v290 = vld [vmem:[%s157 + $0x340] sm:$0xff]
        %v291 = vld [vmem:[%s157 + $0x348] sm:$0xff]
        %v292 = vld [vmem:[%s157 + $0x350] sm:$0xff]
        %v293 = vld [vmem:[%s157 + $0x358] sm:$0xff]
        %v294 = vld [vmem:[%s157 + $0x360] sm:$0xff]
        %v295 = vld [vmem:[%s157 + $0x368] sm:$0xff]
        %v296 = vld [vmem:[%s157 + $0x370] sm:$0xff]
        %v297 = vld [vmem:[%s157 + $0x378] sm:$0xff]
        %v298 = vld [vmem:[%s157 + $0x380] sm:$0xff]
        %v299 = vld [vmem:[%s157 + $0x388] sm:$0xff]
        %v300 = vld [vmem:[%s157 + $0x390] sm:$0xff]
        %v301 = vld [vmem:[%s157 + $0x398] sm:$0xff]
        %v302 = vld [vmem:[%s157 + $0x3a0] sm:$0xff]
        %v303 = vld [vmem:[%s157 + $0x3a8] sm:$0xff]
        %v304 = vld [vmem:[%s157 + $0x3b0] sm:$0xff]
        %v305 = vld [vmem:[%s157 + $0x3b8] sm:$0xff]
        %v306 = vld [vmem:[%s157 + $0x3c0] sm:$0xff]
        %v307 = vld [vmem:[%s157 + $0x3c8] sm:$0xff]
        %v308 = vld [vmem:[%s157 + $0x3d0] sm:$0xff]
        %v309 = vld [vmem:[%s157 + $0x3d8] sm:$0xff]
        %v310 = vld [vmem:[%s157 + $0x3e0] sm:$0xff]
        %v311 = vld [vmem:[%s157 + $0x3e8] sm:$0xff]
        %v312 = vld [vmem:[%s157 + $0x3f0] sm:$0xff]
        %v313 = vld [vmem:[%s157 + $0x3f8] sm:$0xff]
        %v314 = vld [vmem:[#allocation7] sm:$0xff]
        %v315 = vld [vmem:[#allocation7 + $0x8] sm:$0xff]
        %v316 = vld [vmem:[#allocation7 + $0x10] sm:$0xff]
        %v317 = vld [vmem:[#allocation7 + $0x18] sm:$0xff]
        %v318 = vld [vmem:[#allocation7 + $0x20] sm:$0xff]
        %v319 = vld [vmem:[#allocation7 + $0x28] sm:$0xff]
        %v320 = vld [vmem:[#allocation7 + $0x30] sm:$0xff]
        %v321 = vld [vmem:[#allocation7 + $0x38] sm:$0xff]
        %v322 = vld [vmem:[#allocation7 + $0x40] sm:$0xff]
        %v323 = vld [vmem:[#allocation7 + $0x48] sm:$0xff]
        %v324 = vld [vmem:[#allocation7 + $0x50] sm:$0xff]
        %v325 = vld [vmem:[#allocation7 + $0x58] sm:$0xff]
        %v326 = vld [vmem:[#allocation7 + $0x60] sm:$0xff]
        %v327 = vld [vmem:[#allocation7 + $0x68] sm:$0xff]
        %v328 = vld [vmem:[#allocation7 + $0x70] sm:$0xff]
        %v329 = vld [vmem:[#allocation7 + $0x78] sm:$0xff]
        %v330 = vld [vmem:[#allocation7 + $0x80] sm:$0xff]
        %v331 = vld [vmem:[#allocation7 + $0x88] sm:$0xff]
        %v332 = vld [vmem:[#allocation7 + $0x90] sm:$0xff]
        %v333 = vld [vmem:[#allocation7 + $0x98] sm:$0xff]
        %v334 = vld [vmem:[#allocation7 + $0xa0] sm:$0xff]
        %v335 = vld [vmem:[#allocation7 + $0xa8] sm:$0xff]
        %v336 = vld [vmem:[#allocation7 + $0xb0] sm:$0xff]
        %v337 = vld [vmem:[#allocation7 + $0xb8] sm:$0xff]
        %v338 = vld [vmem:[#allocation7 + $0xc0] sm:$0xff]
        %v339 = vld [vmem:[#allocation7 + $0xc8] sm:$0xff]
        %v340 = vld [vmem:[#allocation7 + $0xd0] sm:$0xff]
        %v341 = vld [vmem:[#allocation7 + $0xd8] sm:$0xff]
        %v342 = vld [vmem:[#allocation7 + $0xe0] sm:$0xff]
        %v343 = vld [vmem:[#allocation7 + $0xe8] sm:$0xff]
        %v344 = vld [vmem:[#allocation7 + $0xf0] sm:$0xff]
        %v345 = vld [vmem:[#allocation7 + $0xf8] sm:$0xff]
        %v346 = vld [vmem:[#allocation7 + $0x100] sm:$0xff]
        %v347 = vld [vmem:[#allocation7 + $0x108] sm:$0xff]
        %v348 = vld [vmem:[#allocation7 + $0x110] sm:$0xff]
        %v349 = vld [vmem:[#allocation7 + $0x118] sm:$0xff]
        %v350 = vld [vmem:[#allocation7 + $0x120] sm:$0xff]
        %v351 = vld [vmem:[#allocation7 + $0x128] sm:$0xff]
        %v352 = vld [vmem:[#allocation7 + $0x130] sm:$0xff]
        %v353 = vld [vmem:[#allocation7 + $0x138] sm:$0xff]
        %v354 = vld [vmem:[#allocation7 + $0x140] sm:$0xff]
        %v355 = vld [vmem:[#allocation7 + $0x148] sm:$0xff]
        %v356 = vld [vmem:[#allocation7 + $0x150] sm:$0xff]
        %v357 = vld [vmem:[#allocation7 + $0x158] sm:$0xff]
        %v358 = vld [vmem:[#allocation7 + $0x160] sm:$0xff]
        %v359 = vld [vmem:[#allocation7 + $0x168] sm:$0xff]
        %v360 = vld [vmem:[#allocation7 + $0x170] sm:$0xff]
        %v361 = vld [vmem:[#allocation7 + $0x178] sm:$0xff]
        %v362 = vld [vmem:[#allocation7 + $0x180] sm:$0xff]
        %v363 = vld [vmem:[#allocation7 + $0x188] sm:$0xff]
        %v364 = vld [vmem:[#allocation7 + $0x190] sm:$0xff]
        %v365 = vld [vmem:[#allocation7 + $0x198] sm:$0xff]
        %v366 = vld [vmem:[#allocation7 + $0x1a0] sm:$0xff]
        %v367 = vld [vmem:[#allocation7 + $0x1a8] sm:$0xff]
        %v368 = vld [vmem:[#allocation7 + $0x1b0] sm:$0xff]
        %v369 = vld [vmem:[#allocation7 + $0x1b8] sm:$0xff]
        %v370 = vld [vmem:[#allocation7 + $0x1c0] sm:$0xff]
        %v371 = vld [vmem:[#allocation7 + $0x1c8] sm:$0xff]
        %v372 = vld [vmem:[#allocation7 + $0x1d0] sm:$0xff]
        %v373 = vld [vmem:[#allocation7 + $0x1d8] sm:$0xff]
        %v374 = vld [vmem:[#allocation7 + $0x1e0] sm:$0xff]
        %v375 = vld [vmem:[#allocation7 + $0x1e8] sm:$0xff]
        %v376 = vld [vmem:[#allocation7 + $0x1f0] sm:$0xff]
        %v377 = vld [vmem:[#allocation7 + $0x1f8] sm:$0xff]
        %378 = vmatpush.msra.mxu0 %v344
        %379 = vmatpush.msra.mxu0 %v342
        %380 = vmatpush.msra.mxu0 %v340
        %381 = vmatpush.msra.mxu0 %v338
        %382 = vmatpush.msra.mxu0 %v336
        %383 = vmatpush.msra.mxu0 %v334
        %384 = vmatpush.msra.mxu0 %v332
        %385 = vmatpush.msra.mxu0 %v330
        %386 = vmatpush.msra.mxu0 %v328
        %387 = vmatpush.msra.mxu0 %v326
        %388 = vmatpush.msra.mxu0 %v324
        %389 = vmatpush.msra.mxu0 %v322
        %390 = vmatpush.msra.mxu0 %v320
        %391 = vmatpush.msra.mxu0 %v318
        %392 = vmatpush.msra.mxu0 %v316
        %393 = vmatpush.msra.mxu0 %v314
        %394 = vmatmul.f32.gmra.mxu0 %v186
        %v395 = vpop.f32.mrf.mxu0
        %v396 = vadd.f32 0.0, %v395
        %397 = vmatmul.f32.gmra.mxu0 %v188
        %v398 = vpop.f32.mrf.mxu0
        %v399 = vadd.f32 0.0, %v398
        %400 = vmatmul.f32.gmra.mxu0 %v190
        %v401 = vpop.f32.mrf.mxu0
        %v402 = vadd.f32 0.0, %v401
        %403 = vmatmul.f32.gmra.mxu0 %v192
        %v404 = vpop.f32.mrf.mxu0
        %v405 = vadd.f32 0.0, %v404
        %406 = vmatmul.f32.gmra.mxu0 %v194
        %v407 = vpop.f32.mrf.mxu0
        %v408 = vadd.f32 0.0, %v407
        %409 = vmatmul.f32.gmra.mxu0 %v196
        %v410 = vpop.f32.mrf.mxu0
        %v411 = vadd.f32 0.0, %v410
        %412 = vmatmul.f32.gmra.mxu0 %v198
        %v413 = vpop.f32.mrf.mxu0
        %v414 = vadd.f32 0.0, %v413
        %415 = vmatmul.f32.gmra.mxu0 %v200
        %v416 = vpop.f32.mrf.mxu0
        %v417 = vadd.f32 0.0, %v416
        %418 = vmatmul.f32.gmra.mxu0 %v202
        %v419 = vpop.f32.mrf.mxu0
        %v420 = vadd.f32 0.0, %v419
        %421 = vmatmul.f32.gmra.mxu0 %v204
        %v422 = vpop.f32.mrf.mxu0
        %v423 = vadd.f32 0.0, %v422
        %424 = vmatmul.f32.gmra.mxu0 %v206
        %v425 = vpop.f32.mrf.mxu0
        %v426 = vadd.f32 0.0, %v425
        %427 = vmatmul.f32.gmra.mxu0 %v208
        %v428 = vpop.f32.mrf.mxu0
        %v429 = vadd.f32 0.0, %v428
        %430 = vmatmul.f32.gmra.mxu0 %v210
        %v431 = vpop.f32.mrf.mxu0
        %v432 = vadd.f32 0.0, %v431
        %433 = vmatmul.f32.gmra.mxu0 %v212
        %v434 = vpop.f32.mrf.mxu0
        %v435 = vadd.f32 0.0, %v434
        %436 = vmatmul.f32.gmra.mxu0 %v214
        %v437 = vpop.f32.mrf.mxu0
        %v438 = vadd.f32 0.0, %v437
        %439 = vmatmul.f32.gmra.mxu0 %v216
        %v440 = vpop.f32.mrf.mxu0
        %v441 = vadd.f32 0.0, %v440
        %442 = vmatmul.f32.gmra.mxu0 %v218
        %v443 = vpop.f32.mrf.mxu0
        %v444 = vadd.f32 0.0, %v443
        %445 = vmatmul.f32.gmra.mxu0 %v220
        %v446 = vpop.f32.mrf.mxu0
        %v447 = vadd.f32 0.0, %v446
        %448 = vmatmul.f32.gmra.mxu0 %v222
        %v449 = vpop.f32.mrf.mxu0
        %v450 = vadd.f32 0.0, %v449
        %451 = vmatmul.f32.gmra.mxu0 %v224
        %v452 = vpop.f32.mrf.mxu0
        %v453 = vadd.f32 0.0, %v452
        %454 = vmatmul.f32.gmra.mxu0 %v226
        %v455 = vpop.f32.mrf.mxu0
        %v456 = vadd.f32 0.0, %v455
        %457 = vmatmul.f32.gmra.mxu0 %v228
        %v458 = vpop.f32.mrf.mxu0
        %v459 = vadd.f32 0.0, %v458
        %460 = vmatmul.f32.gmra.mxu0 %v230
        %v461 = vpop.f32.mrf.mxu0
        %v462 = vadd.f32 0.0, %v461
        %463 = vmatmul.f32.gmra.mxu0 %v232
        %v464 = vpop.f32.mrf.mxu0
        %v465 = vadd.f32 0.0, %v464
        %466 = vmatmul.f32.gmra.mxu0 %v234
        %v467 = vpop.f32.mrf.mxu0
        %v468 = vadd.f32 0.0, %v467
        %469 = vmatmul.f32.gmra.mxu0 %v236
        %v470 = vpop.f32.mrf.mxu0
        %v471 = vadd.f32 0.0, %v470
        %472 = vmatmul.f32.gmra.mxu0 %v238
        %v473 = vpop.f32.mrf.mxu0
        %v474 = vadd.f32 0.0, %v473
        %475 = vmatmul.f32.gmra.mxu0 %v240
        %v476 = vpop.f32.mrf.mxu0
        %v477 = vadd.f32 0.0, %v476
        %478 = vmatmul.f32.gmra.mxu0 %v242
        %v479 = vpop.f32.mrf.mxu0
        %v480 = vadd.f32 0.0, %v479
        %481 = vmatmul.f32.gmra.mxu0 %v244
        %v482 = vpop.f32.mrf.mxu0
        %v483 = vadd.f32 0.0, %v482
        %484 = vmatmul.f32.gmra.mxu0 %v246
        %v485 = vpop.f32.mrf.mxu0
        %v486 = vadd.f32 0.0, %v485
        %487 = vmatmul.f32.gmra.mxu0 %v248
        %v488 = vpop.f32.mrf.mxu0
        %v489 = vadd.f32 0.0, %v488
        %490 = vmatmul.f32.gmra.mxu0 %v250
        %v491 = vpop.f32.mrf.mxu0
        %v492 = vadd.f32 0.0, %v491
        %493 = vmatmul.f32.gmra.mxu0 %v252
        %v494 = vpop.f32.mrf.mxu0
        %v495 = vadd.f32 0.0, %v494
        %496 = vmatmul.f32.gmra.mxu0 %v254
        %v497 = vpop.f32.mrf.mxu0
        %v498 = vadd.f32 0.0, %v497
        %499 = vmatmul.f32.gmra.mxu0 %v256
        %v500 = vpop.f32.mrf.mxu0
        %v501 = vadd.f32 0.0, %v500
        %502 = vmatmul.f32.gmra.mxu0 %v258
        %v503 = vpop.f32.mrf.mxu0
        %v504 = vadd.f32 0.0, %v503
        %505 = vmatmul.f32.gmra.mxu0 %v260
        %v506 = vpop.f32.mrf.mxu0
        %v507 = vadd.f32 0.0, %v506
        %508 = vmatmul.f32.gmra.mxu0 %v262
        %v509 = vpop.f32.mrf.mxu0
        %v510 = vadd.f32 0.0, %v509
        %511 = vmatmul.f32.gmra.mxu0 %v264
        %v512 = vpop.f32.mrf.mxu0
        %v513 = vadd.f32 0.0, %v512
        %514 = vmatmul.f32.gmra.mxu0 %v266
        %v515 = vpop.f32.mrf.mxu0
        %v516 = vadd.f32 0.0, %v515
        %517 = vmatmul.f32.gmra.mxu0 %v268
        %v518 = vpop.f32.mrf.mxu0
        %v519 = vadd.f32 0.0, %v518
        %520 = vmatmul.f32.gmra.mxu0 %v270
        %v521 = vpop.f32.mrf.mxu0
        %v522 = vadd.f32 0.0, %v521
        %523 = vmatmul.f32.gmra.mxu0 %v272
        %v524 = vpop.f32.mrf.mxu0
        %v525 = vadd.f32 0.0, %v524
        %526 = vmatmul.f32.gmra.mxu0 %v274
        %v527 = vpop.f32.mrf.mxu0
        %v528 = vadd.f32 0.0, %v527
        %529 = vmatmul.f32.gmra.mxu0 %v276
        %v530 = vpop.f32.mrf.mxu0
        %v531 = vadd.f32 0.0, %v530
        %532 = vmatmul.f32.gmra.mxu0 %v278
        %v533 = vpop.f32.mrf.mxu0
        %v534 = vadd.f32 0.0, %v533
        %535 = vmatmul.f32.gmra.mxu0 %v280
        %v536 = vpop.f32.mrf.mxu0
        %v537 = vadd.f32 0.0, %v536
        %538 = vmatmul.f32.gmra.mxu0 %v282
        %v539 = vpop.f32.mrf.mxu0
        %v540 = vadd.f32 0.0, %v539
        %541 = vmatmul.f32.gmra.mxu0 %v284
        %v542 = vpop.f32.mrf.mxu0
        %v543 = vadd.f32 0.0, %v542
        %544 = vmatmul.f32.gmra.mxu0 %v286
        %v545 = vpop.f32.mrf.mxu0
        %v546 = vadd.f32 0.0, %v545
        %547 = vmatmul.f32.gmra.mxu0 %v288
        %v548 = vpop.f32.mrf.mxu0
        %v549 = vadd.f32 0.0, %v548
        %550 = vmatmul.f32.gmra.mxu0 %v290
        %v551 = vpop.f32.mrf.mxu0
        %v552 = vadd.f32 0.0, %v551
        %553 = vmatmul.f32.gmra.mxu0 %v292
        %v554 = vpop.f32.mrf.mxu0
        %v555 = vadd.f32 0.0, %v554
        %556 = vmatmul.f32.gmra.mxu0 %v294
        %v557 = vpop.f32.mrf.mxu0
        %v558 = vadd.f32 0.0, %v557
        %559 = vmatmul.f32.gmra.mxu0 %v296
        %v560 = vpop.f32.mrf.mxu0
        %v561 = vadd.f32 0.0, %v560
        %562 = vmatmul.f32.gmra.mxu0 %v298
        %v563 = vpop.f32.mrf.mxu0
        %v564 = vadd.f32 0.0, %v563
        %565 = vmatmul.f32.gmra.mxu0 %v300
        %v566 = vpop.f32.mrf.mxu0
        %v567 = vadd.f32 0.0, %v566
        %568 = vmatmul.f32.gmra.mxu0 %v302
        %v569 = vpop.f32.mrf.mxu0
        %v570 = vadd.f32 0.0, %v569
        %571 = vmatmul.f32.gmra.mxu0 %v304
        %v572 = vpop.f32.mrf.mxu0
        %v573 = vadd.f32 0.0, %v572
        %574 = vmatmul.f32.gmra.mxu0 %v306
        %v575 = vpop.f32.mrf.mxu0
        %v576 = vadd.f32 0.0, %v575
        %577 = vmatmul.f32.gmra.mxu0 %v308
        %v578 = vpop.f32.mrf.mxu0
        %v579 = vadd.f32 0.0, %v578
        %580 = vmatmul.f32.gmra.mxu0 %v310
        %v581 = vpop.f32.mrf.mxu0
        %v582 = vadd.f32 0.0, %v581
        %583 = vmatmul.f32.gmra.mxu0 %v312
        %v584 = vpop.f32.mrf.mxu0
        %v585 = vadd.f32 0.0, %v584
        %586 = vdwg.mxu0
        %587 = vmatpush.msra.mxu0 %v376
        %588 = vmatpush.msra.mxu0 %v374
        %589 = vmatpush.msra.mxu0 %v372
        %590 = vmatpush.msra.mxu0 %v370
        %591 = vmatpush.msra.mxu0 %v368
        %592 = vmatpush.msra.mxu0 %v366
        %593 = vmatpush.msra.mxu0 %v364
        %594 = vmatpush.msra.mxu0 %v362
        %595 = vmatpush.msra.mxu0 %v360
        %596 = vmatpush.msra.mxu0 %v358
        %597 = vmatpush.msra.mxu0 %v356
        %598 = vmatpush.msra.mxu0 %v354
        %599 = vmatpush.msra.mxu0 %v352
        %600 = vmatpush.msra.mxu0 %v350
        %601 = vmatpush.msra.mxu0 %v348
        %602 = vmatpush.msra.mxu0 %v346
        %603 = vmatmul.f32.gmra.mxu0 %v187
        %v604 = vpop.f32.mrf.mxu0
        %v605 = vadd.f32 %v396, %v604
        %606 = vmatmul.f32.gmra.mxu0 %v189
        %v607 = vpop.f32.mrf.mxu0
        %v608 = vadd.f32 %v399, %v607
        %609 = vmatmul.f32.gmra.mxu0 %v191
        %v610 = vpop.f32.mrf.mxu0
        %v611 = vadd.f32 %v402, %v610
        %612 = vmatmul.f32.gmra.mxu0 %v193
        %v613 = vpop.f32.mrf.mxu0
        %v614 = vadd.f32 %v405, %v613
        %615 = vmatmul.f32.gmra.mxu0 %v195
        %v616 = vpop.f32.mrf.mxu0
        %v617 = vadd.f32 %v408, %v616
        %618 = vmatmul.f32.gmra.mxu0 %v197
        %v619 = vpop.f32.mrf.mxu0
        %v620 = vadd.f32 %v411, %v619
        %621 = vmatmul.f32.gmra.mxu0 %v199
        %v622 = vpop.f32.mrf.mxu0
        %v623 = vadd.f32 %v414, %v622
        %624 = vmatmul.f32.gmra.mxu0 %v201
        %v625 = vpop.f32.mrf.mxu0
        %v626 = vadd.f32 %v417, %v625
        %627 = vmatmul.f32.gmra.mxu0 %v203
        %v628 = vpop.f32.mrf.mxu0
        %v629 = vadd.f32 %v420, %v628
        %630 = vmatmul.f32.gmra.mxu0 %v205
        %v631 = vpop.f32.mrf.mxu0
        %v632 = vadd.f32 %v423, %v631
        %633 = vmatmul.f32.gmra.mxu0 %v207
        %v634 = vpop.f32.mrf.mxu0
        %v635 = vadd.f32 %v426, %v634
        %636 = vmatmul.f32.gmra.mxu0 %v209
        %v637 = vpop.f32.mrf.mxu0
        %v638 = vadd.f32 %v429, %v637
        %639 = vmatmul.f32.gmra.mxu0 %v211
        %v640 = vpop.f32.mrf.mxu0
        %v641 = vadd.f32 %v432, %v640
        %642 = vmatmul.f32.gmra.mxu0 %v213
        %v643 = vpop.f32.mrf.mxu0
        %v644 = vadd.f32 %v435, %v643
        %645 = vmatmul.f32.gmra.mxu0 %v215
        %v646 = vpop.f32.mrf.mxu0
        %v647 = vadd.f32 %v438, %v646
        %648 = vmatmul.f32.gmra.mxu0 %v217
        %v649 = vpop.f32.mrf.mxu0
        %v650 = vadd.f32 %v441, %v649
        %651 = vmatmul.f32.gmra.mxu0 %v219
        %v652 = vpop.f32.mrf.mxu0
        %v653 = vadd.f32 %v444, %v652
        %654 = vmatmul.f32.gmra.mxu0 %v221
        %v655 = vpop.f32.mrf.mxu0
        %v656 = vadd.f32 %v447, %v655
        %657 = vmatmul.f32.gmra.mxu0 %v223
        %v658 = vpop.f32.mrf.mxu0
        %v659 = vadd.f32 %v450, %v658
        %660 = vmatmul.f32.gmra.mxu0 %v225
        %v661 = vpop.f32.mrf.mxu0
        %v662 = vadd.f32 %v453, %v661
        %663 = vmatmul.f32.gmra.mxu0 %v227
        %v664 = vpop.f32.mrf.mxu0
        %v665 = vadd.f32 %v456, %v664
        %666 = vmatmul.f32.gmra.mxu0 %v229
        %v667 = vpop.f32.mrf.mxu0
        %v668 = vadd.f32 %v459, %v667
        %669 = vmatmul.f32.gmra.mxu0 %v231
        %v670 = vpop.f32.mrf.mxu0
        %v671 = vadd.f32 %v462, %v670
        %672 = vmatmul.f32.gmra.mxu0 %v233
        %v673 = vpop.f32.mrf.mxu0
        %v674 = vadd.f32 %v465, %v673
        %675 = vmatmul.f32.gmra.mxu0 %v235
        %v676 = vpop.f32.mrf.mxu0
        %v677 = vadd.f32 %v468, %v676
        %678 = vmatmul.f32.gmra.mxu0 %v237
        %v679 = vpop.f32.mrf.mxu0
        %v680 = vadd.f32 %v471, %v679
        %681 = vmatmul.f32.gmra.mxu0 %v239
        %v682 = vpop.f32.mrf.mxu0
        %v683 = vadd.f32 %v474, %v682
        %684 = vmatmul.f32.gmra.mxu0 %v241
        %v685 = vpop.f32.mrf.mxu0
        %v686 = vadd.f32 %v477, %v685
        %687 = vmatmul.f32.gmra.mxu0 %v243
        %v688 = vpop.f32.mrf.mxu0
        %v689 = vadd.f32 %v480, %v688
        %690 = vmatmul.f32.gmra.mxu0 %v245
        %v691 = vpop.f32.mrf.mxu0
        %v692 = vadd.f32 %v483, %v691
        %693 = vmatmul.f32.gmra.mxu0 %v247
        %v694 = vpop.f32.mrf.mxu0
        %v695 = vadd.f32 %v486, %v694
        %696 = vmatmul.f32.gmra.mxu0 %v249
        %v697 = vpop.f32.mrf.mxu0
        %v698 = vadd.f32 %v489, %v697
        %699 = vmatmul.f32.gmra.mxu0 %v251
        %v700 = vpop.f32.mrf.mxu0
        %v701 = vadd.f32 %v492, %v700
        %702 = vmatmul.f32.gmra.mxu0 %v253
        %v703 = vpop.f32.mrf.mxu0
        %v704 = vadd.f32 %v495, %v703
        %705 = vmatmul.f32.gmra.mxu0 %v255
        %v706 = vpop.f32.mrf.mxu0
        %v707 = vadd.f32 %v498, %v706
        %708 = vmatmul.f32.gmra.mxu0 %v257
        %v709 = vpop.f32.mrf.mxu0
        %v710 = vadd.f32 %v501, %v709
        %711 = vmatmul.f32.gmra.mxu0 %v259
        %v712 = vpop.f32.mrf.mxu0
        %v713 = vadd.f32 %v504, %v712
        %714 = vmatmul.f32.gmra.mxu0 %v261
        %v715 = vpop.f32.mrf.mxu0
        %v716 = vadd.f32 %v507, %v715
        %717 = vmatmul.f32.gmra.mxu0 %v263
        %v718 = vpop.f32.mrf.mxu0
        %v719 = vadd.f32 %v510, %v718
        %720 = vmatmul.f32.gmra.mxu0 %v265
        %v721 = vpop.f32.mrf.mxu0
        %v722 = vadd.f32 %v513, %v721
        %723 = vmatmul.f32.gmra.mxu0 %v267
        %v724 = vpop.f32.mrf.mxu0
        %v725 = vadd.f32 %v516, %v724
        %726 = vmatmul.f32.gmra.mxu0 %v269
        %v727 = vpop.f32.mrf.mxu0
        %v728 = vadd.f32 %v519, %v727
        %729 = vmatmul.f32.gmra.mxu0 %v271
        %v730 = vpop.f32.mrf.mxu0
        %v731 = vadd.f32 %v522, %v730
        %732 = vmatmul.f32.gmra.mxu0 %v273
        %v733 = vpop.f32.mrf.mxu0
        %v734 = vadd.f32 %v525, %v733
        %735 = vmatmul.f32.gmra.mxu0 %v275
        %v736 = vpop.f32.mrf.mxu0
        %v737 = vadd.f32 %v528, %v736
        %738 = vmatmul.f32.gmra.mxu0 %v277
        %v739 = vpop.f32.mrf.mxu0
        %v740 = vadd.f32 %v531, %v739
        %741 = vmatmul.f32.gmra.mxu0 %v279
        %v742 = vpop.f32.mrf.mxu0
        %v743 = vadd.f32 %v534, %v742
        %744 = vmatmul.f32.gmra.mxu0 %v281
        %v745 = vpop.f32.mrf.mxu0
        %v746 = vadd.f32 %v537, %v745
        %747 = vmatmul.f32.gmra.mxu0 %v283
        %v748 = vpop.f32.mrf.mxu0
        %v749 = vadd.f32 %v540, %v748
        %750 = vmatmul.f32.gmra.mxu0 %v285
        %v751 = vpop.f32.mrf.mxu0
        %v752 = vadd.f32 %v543, %v751
        %753 = vmatmul.f32.gmra.mxu0 %v287
        %v754 = vpop.f32.mrf.mxu0
        %v755 = vadd.f32 %v546, %v754
        %756 = vmatmul.f32.gmra.mxu0 %v289
        %v757 = vpop.f32.mrf.mxu0
        %v758 = vadd.f32 %v549, %v757
        %759 = vmatmul.f32.gmra.mxu0 %v291
        %v760 = vpop.f32.mrf.mxu0
        %v761 = vadd.f32 %v552, %v760
        %762 = vmatmul.f32.gmra.mxu0 %v293
        %v763 = vpop.f32.mrf.mxu0
        %v764 = vadd.f32 %v555, %v763
        %765 = vmatmul.f32.gmra.mxu0 %v295
        %v766 = vpop.f32.mrf.mxu0
        %v767 = vadd.f32 %v558, %v766
        %768 = vmatmul.f32.gmra.mxu0 %v297
        %v769 = vpop.f32.mrf.mxu0
        %v770 = vadd.f32 %v561, %v769
        %771 = vmatmul.f32.gmra.mxu0 %v299
        %v772 = vpop.f32.mrf.mxu0
        %v773 = vadd.f32 %v564, %v772
        %774 = vmatmul.f32.gmra.mxu0 %v301
        %v775 = vpop.f32.mrf.mxu0
        %v776 = vadd.f32 %v567, %v775
        %777 = vmatmul.f32.gmra.mxu0 %v303
        %v778 = vpop.f32.mrf.mxu0
        %v779 = vadd.f32 %v570, %v778
        %780 = vmatmul.f32.gmra.mxu0 %v305
        %v781 = vpop.f32.mrf.mxu0
        %v782 = vadd.f32 %v573, %v781
        %783 = vmatmul.f32.gmra.mxu0 %v307
        %v784 = vpop.f32.mrf.mxu0
        %v785 = vadd.f32 %v576, %v784
        %786 = vmatmul.f32.gmra.mxu0 %v309
        %v787 = vpop.f32.mrf.mxu0
        %v788 = vadd.f32 %v579, %v787
        %789 = vmatmul.f32.gmra.mxu0 %v311
        %v790 = vpop.f32.mrf.mxu0
        %v791 = vadd.f32 %v582, %v790
        %792 = vmatmul.f32.gmra.mxu0 %v313
        %v793 = vpop.f32.mrf.mxu0
        %v794 = vadd.f32 %v585, %v793
        %795 = vdwg.mxu0
        %796 = vmatpush.msra.mxu0 %v345
        %797 = vmatpush.msra.mxu0 %v343
        %798 = vmatpush.msra.mxu0 %v341
        %799 = vmatpush.msra.mxu0 %v339
        %800 = vmatpush.msra.mxu0 %v337
        %801 = vmatpush.msra.mxu0 %v335
        %802 = vmatpush.msra.mxu0 %v333
        %803 = vmatpush.msra.mxu0 %v331
        %804 = vmatpush.msra.mxu0 %v329
        %805 = vmatpush.msra.mxu0 %v327
        %806 = vmatpush.msra.mxu0 %v325
        %807 = vmatpush.msra.mxu0 %v323
        %808 = vmatpush.msra.mxu0 %v321
        %809 = vmatpush.msra.mxu0 %v319
        %810 = vmatpush.msra.mxu0 %v317
        %811 = vmatpush.msra.mxu0 %v315
        %812 = vmatmul.f32.gmra.mxu0 %v186
        %v813 = vpop.f32.mrf.mxu0
        %v814 = vadd.f32 0.0, %v813
        %815 = vmatmul.f32.gmra.mxu0 %v188
        %v816 = vpop.f32.mrf.mxu0
        %v817 = vadd.f32 0.0, %v816
        %818 = vmatmul.f32.gmra.mxu0 %v190
        %v819 = vpop.f32.mrf.mxu0
        %v820 = vadd.f32 0.0, %v819
        %821 = vmatmul.f32.gmra.mxu0 %v192
        %v822 = vpop.f32.mrf.mxu0
        %v823 = vadd.f32 0.0, %v822
        %824 = vmatmul.f32.gmra.mxu0 %v194
        %v825 = vpop.f32.mrf.mxu0
        %v826 = vadd.f32 0.0, %v825
        %827 = vmatmul.f32.gmra.mxu0 %v196
        %v828 = vpop.f32.mrf.mxu0
        %v829 = vadd.f32 0.0, %v828
        %830 = vmatmul.f32.gmra.mxu0 %v198
        %v831 = vpop.f32.mrf.mxu0
        %v832 = vadd.f32 0.0, %v831
        %833 = vmatmul.f32.gmra.mxu0 %v200
        %v834 = vpop.f32.mrf.mxu0
        %v835 = vadd.f32 0.0, %v834
        %836 = vmatmul.f32.gmra.mxu0 %v202
        %v837 = vpop.f32.mrf.mxu0
        %v838 = vadd.f32 0.0, %v837
        %839 = vmatmul.f32.gmra.mxu0 %v204
        %v840 = vpop.f32.mrf.mxu0
        %v841 = vadd.f32 0.0, %v840
        %842 = vmatmul.f32.gmra.mxu0 %v206
        %v843 = vpop.f32.mrf.mxu0
        %v844 = vadd.f32 0.0, %v843
        %845 = vmatmul.f32.gmra.mxu0 %v208
        %v846 = vpop.f32.mrf.mxu0
        %v847 = vadd.f32 0.0, %v846
        %848 = vmatmul.f32.gmra.mxu0 %v210
        %v849 = vpop.f32.mrf.mxu0
        %v850 = vadd.f32 0.0, %v849
        %851 = vmatmul.f32.gmra.mxu0 %v212
        %v852 = vpop.f32.mrf.mxu0
        %v853 = vadd.f32 0.0, %v852
        %854 = vmatmul.f32.gmra.mxu0 %v214
        %v855 = vpop.f32.mrf.mxu0
        %v856 = vadd.f32 0.0, %v855
        %857 = vmatmul.f32.gmra.mxu0 %v216
        %v858 = vpop.f32.mrf.mxu0
        %v859 = vadd.f32 0.0, %v858
        %860 = vmatmul.f32.gmra.mxu0 %v218
        %v861 = vpop.f32.mrf.mxu0
        %v862 = vadd.f32 0.0, %v861
        %863 = vmatmul.f32.gmra.mxu0 %v220
        %v864 = vpop.f32.mrf.mxu0
        %v865 = vadd.f32 0.0, %v864
        %866 = vmatmul.f32.gmra.mxu0 %v222
        %v867 = vpop.f32.mrf.mxu0
        %v868 = vadd.f32 0.0, %v867
        %869 = vmatmul.f32.gmra.mxu0 %v224
        %v870 = vpop.f32.mrf.mxu0
        %v871 = vadd.f32 0.0, %v870
        %872 = vmatmul.f32.gmra.mxu0 %v226
        %v873 = vpop.f32.mrf.mxu0
        %v874 = vadd.f32 0.0, %v873
        %875 = vmatmul.f32.gmra.mxu0 %v228
        %v876 = vpop.f32.mrf.mxu0
        %v877 = vadd.f32 0.0, %v876
        %878 = vmatmul.f32.gmra.mxu0 %v230
        %v879 = vpop.f32.mrf.mxu0
        %v880 = vadd.f32 0.0, %v879
        %881 = vmatmul.f32.gmra.mxu0 %v232
        %v882 = vpop.f32.mrf.mxu0
        %v883 = vadd.f32 0.0, %v882
        %884 = vmatmul.f32.gmra.mxu0 %v234
        %v885 = vpop.f32.mrf.mxu0
        %v886 = vadd.f32 0.0, %v885
        %887 = vmatmul.f32.gmra.mxu0 %v236
        %v888 = vpop.f32.mrf.mxu0
        %v889 = vadd.f32 0.0, %v888
        %890 = vmatmul.f32.gmra.mxu0 %v238
        %v891 = vpop.f32.mrf.mxu0
        %v892 = vadd.f32 0.0, %v891
        %893 = vmatmul.f32.gmra.mxu0 %v240
        %v894 = vpop.f32.mrf.mxu0
        %v895 = vadd.f32 0.0, %v894
        %896 = vmatmul.f32.gmra.mxu0 %v242
        %v897 = vpop.f32.mrf.mxu0
        %v898 = vadd.f32 0.0, %v897
        %899 = vmatmul.f32.gmra.mxu0 %v244
        %v900 = vpop.f32.mrf.mxu0
        %v901 = vadd.f32 0.0, %v900
        %902 = vmatmul.f32.gmra.mxu0 %v246
        %v903 = vpop.f32.mrf.mxu0
        %v904 = vadd.f32 0.0, %v903
        %905 = vmatmul.f32.gmra.mxu0 %v248
        %v906 = vpop.f32.mrf.mxu0
        %v907 = vadd.f32 0.0, %v906
        %908 = vmatmul.f32.gmra.mxu0 %v250
        %v909 = vpop.f32.mrf.mxu0
        %v910 = vadd.f32 0.0, %v909
        %911 = vmatmul.f32.gmra.mxu0 %v252
        %v912 = vpop.f32.mrf.mxu0
        %v913 = vadd.f32 0.0, %v912
        %914 = vmatmul.f32.gmra.mxu0 %v254
        %v915 = vpop.f32.mrf.mxu0
        %v916 = vadd.f32 0.0, %v915
        %917 = vmatmul.f32.gmra.mxu0 %v256
        %v918 = vpop.f32.mrf.mxu0
        %v919 = vadd.f32 0.0, %v918
        %920 = vmatmul.f32.gmra.mxu0 %v258
        %v921 = vpop.f32.mrf.mxu0
        %v922 = vadd.f32 0.0, %v921
        %923 = vmatmul.f32.gmra.mxu0 %v260
        %v924 = vpop.f32.mrf.mxu0
        %v925 = vadd.f32 0.0, %v924
        %926 = vmatmul.f32.gmra.mxu0 %v262
        %v927 = vpop.f32.mrf.mxu0
        %v928 = vadd.f32 0.0, %v927
        %929 = vmatmul.f32.gmra.mxu0 %v264
        %v930 = vpop.f32.mrf.mxu0
        %v931 = vadd.f32 0.0, %v930
        %932 = vmatmul.f32.gmra.mxu0 %v266
        %v933 = vpop.f32.mrf.mxu0
        %v934 = vadd.f32 0.0, %v933
        %935 = vmatmul.f32.gmra.mxu0 %v268
        %v936 = vpop.f32.mrf.mxu0
        %v937 = vadd.f32 0.0, %v936
        %938 = vmatmul.f32.gmra.mxu0 %v270
        %v939 = vpop.f32.mrf.mxu0
        %v940 = vadd.f32 0.0, %v939
        %941 = vmatmul.f32.gmra.mxu0 %v272
        %v942 = vpop.f32.mrf.mxu0
        %v943 = vadd.f32 0.0, %v942
        %944 = vmatmul.f32.gmra.mxu0 %v274
        %v945 = vpop.f32.mrf.mxu0
        %v946 = vadd.f32 0.0, %v945
        %947 = vmatmul.f32.gmra.mxu0 %v276
        %v948 = vpop.f32.mrf.mxu0
        %v949 = vadd.f32 0.0, %v948
        %950 = vmatmul.f32.gmra.mxu0 %v278
        %v951 = vpop.f32.mrf.mxu0
        %v952 = vadd.f32 0.0, %v951
        %953 = vmatmul.f32.gmra.mxu0 %v280
        %v954 = vpop.f32.mrf.mxu0
        %v955 = vadd.f32 0.0, %v954
        %956 = vmatmul.f32.gmra.mxu0 %v282
        %v957 = vpop.f32.mrf.mxu0
        %v958 = vadd.f32 0.0, %v957
        %959 = vmatmul.f32.gmra.mxu0 %v284
        %v960 = vpop.f32.mrf.mxu0
        %v961 = vadd.f32 0.0, %v960
        %962 = vmatmul.f32.gmra.mxu0 %v286
        %v963 = vpop.f32.mrf.mxu0
        %v964 = vadd.f32 0.0, %v963
        %965 = vmatmul.f32.gmra.mxu0 %v288
        %v966 = vpop.f32.mrf.mxu0
        %v967 = vadd.f32 0.0, %v966
        %968 = vmatmul.f32.gmra.mxu0 %v290
        %v969 = vpop.f32.mrf.mxu0
        %v970 = vadd.f32 0.0, %v969
        %971 = vmatmul.f32.gmra.mxu0 %v292
        %v972 = vpop.f32.mrf.mxu0
        %v973 = vadd.f32 0.0, %v972
        %974 = vmatmul.f32.gmra.mxu0 %v294
        %v975 = vpop.f32.mrf.mxu0
        %v976 = vadd.f32 0.0, %v975
        %977 = vmatmul.f32.gmra.mxu0 %v296
        %v978 = vpop.f32.mrf.mxu0
        %v979 = vadd.f32 0.0, %v978
        %980 = vmatmul.f32.gmra.mxu0 %v298
        %v981 = vpop.f32.mrf.mxu0
        %v982 = vadd.f32 0.0, %v981
        %983 = vmatmul.f32.gmra.mxu0 %v300
        %v984 = vpop.f32.mrf.mxu0
        %v985 = vadd.f32 0.0, %v984
        %986 = vmatmul.f32.gmra.mxu0 %v302
        %v987 = vpop.f32.mrf.mxu0
        %v988 = vadd.f32 0.0, %v987
        %989 = vmatmul.f32.gmra.mxu0 %v304
        %v990 = vpop.f32.mrf.mxu0
        %v991 = vadd.f32 0.0, %v990
        %992 = vmatmul.f32.gmra.mxu0 %v306
        %v993 = vpop.f32.mrf.mxu0
        %v994 = vadd.f32 0.0, %v993
        %995 = vmatmul.f32.gmra.mxu0 %v308
        %v996 = vpop.f32.mrf.mxu0
        %v997 = vadd.f32 0.0, %v996
        %998 = vmatmul.f32.gmra.mxu0 %v310
        %v999 = vpop.f32.mrf.mxu0
        %v1000 = vadd.f32 0.0, %v999
        %1001 = vmatmul.f32.gmra.mxu0 %v312
        %v1002 = vpop.f32.mrf.mxu0
        %v1003 = vadd.f32 0.0, %v1002
        %1004 = vdwg.mxu0
        %1005 = vmatpush.msra.mxu0 %v377
        %1006 = vmatpush.msra.mxu0 %v375
        %1007 = vmatpush.msra.mxu0 %v373
        %1008 = vmatpush.msra.mxu0 %v371
        %1009 = vmatpush.msra.mxu0 %v369
        %1010 = vmatpush.msra.mxu0 %v367
        %1011 = vmatpush.msra.mxu0 %v365
        %1012 = vmatpush.msra.mxu0 %v363
        %1013 = vmatpush.msra.mxu0 %v361
        %1014 = vmatpush.msra.mxu0 %v359
        %1015 = vmatpush.msra.mxu0 %v357
        %1016 = vmatpush.msra.mxu0 %v355
        %1017 = vmatpush.msra.mxu0 %v353
        %1018 = vmatpush.msra.mxu0 %v351
        %1019 = vmatpush.msra.mxu0 %v349
        %1020 = vmatpush.msra.mxu0 %v347
        %1021 = vmatmul.f32.gmra.mxu0 %v187
        %v1022 = vpop.f32.mrf.mxu0
        %v1023 = vadd.f32 %v814, %v1022
        %1024 = vmatmul.f32.gmra.mxu0 %v189
        %v1025 = vpop.f32.mrf.mxu0
        %v1026 = vadd.f32 %v817, %v1025
        %1027 = vmatmul.f32.gmra.mxu0 %v191
        %v1028 = vpop.f32.mrf.mxu0
        %v1029 = vadd.f32 %v820, %v1028
        %1030 = vmatmul.f32.gmra.mxu0 %v193
        %v1031 = vpop.f32.mrf.mxu0
        %v1032 = vadd.f32 %v823, %v1031
        %1033 = vmatmul.f32.gmra.mxu0 %v195
        %v1034 = vpop.f32.mrf.mxu0
        %v1035 = vadd.f32 %v826, %v1034
        %1036 = vmatmul.f32.gmra.mxu0 %v197
        %v1037 = vpop.f32.mrf.mxu0
        %v1038 = vadd.f32 %v829, %v1037
        %1039 = vmatmul.f32.gmra.mxu0 %v199
        %v1040 = vpop.f32.mrf.mxu0
        %v1041 = vadd.f32 %v832, %v1040
        %1042 = vmatmul.f32.gmra.mxu0 %v201
        %v1043 = vpop.f32.mrf.mxu0
        %v1044 = vadd.f32 %v835, %v1043
        %1045 = vmatmul.f32.gmra.mxu0 %v203
        %v1046 = vpop.f32.mrf.mxu0
        %v1047 = vadd.f32 %v838, %v1046
        %1048 = vmatmul.f32.gmra.mxu0 %v205
        %v1049 = vpop.f32.mrf.mxu0
        %v1050 = vadd.f32 %v841, %v1049
        %1051 = vmatmul.f32.gmra.mxu0 %v207
        %v1052 = vpop.f32.mrf.mxu0
        %v1053 = vadd.f32 %v844, %v1052
        %1054 = vmatmul.f32.gmra.mxu0 %v209
        %v1055 = vpop.f32.mrf.mxu0
        %v1056 = vadd.f32 %v847, %v1055
        %1057 = vmatmul.f32.gmra.mxu0 %v211
        %v1058 = vpop.f32.mrf.mxu0
        %v1059 = vadd.f32 %v850, %v1058
        %1060 = vmatmul.f32.gmra.mxu0 %v213
        %v1061 = vpop.f32.mrf.mxu0
        %v1062 = vadd.f32 %v853, %v1061
        %1063 = vmatmul.f32.gmra.mxu0 %v215
        %v1064 = vpop.f32.mrf.mxu0
        %v1065 = vadd.f32 %v856, %v1064
        %1066 = vmatmul.f32.gmra.mxu0 %v217
        %v1067 = vpop.f32.mrf.mxu0
        %v1068 = vadd.f32 %v859, %v1067
        %1069 = vmatmul.f32.gmra.mxu0 %v219
        %v1070 = vpop.f32.mrf.mxu0
        %v1071 = vadd.f32 %v862, %v1070
        %1072 = vmatmul.f32.gmra.mxu0 %v221
        %v1073 = vpop.f32.mrf.mxu0
        %v1074 = vadd.f32 %v865, %v1073
        %1075 = vmatmul.f32.gmra.mxu0 %v223
        %v1076 = vpop.f32.mrf.mxu0
        %v1077 = vadd.f32 %v868, %v1076
        %1078 = vmatmul.f32.gmra.mxu0 %v225
        %v1079 = vpop.f32.mrf.mxu0
        %v1080 = vadd.f32 %v871, %v1079
        %1081 = vmatmul.f32.gmra.mxu0 %v227
        %v1082 = vpop.f32.mrf.mxu0
        %v1083 = vadd.f32 %v874, %v1082
        %1084 = vmatmul.f32.gmra.mxu0 %v229
        %v1085 = vpop.f32.mrf.mxu0
        %v1086 = vadd.f32 %v877, %v1085
        %1087 = vmatmul.f32.gmra.mxu0 %v231
        %v1088 = vpop.f32.mrf.mxu0
        %v1089 = vadd.f32 %v880, %v1088
        %1090 = vmatmul.f32.gmra.mxu0 %v233
        %v1091 = vpop.f32.mrf.mxu0
        %v1092 = vadd.f32 %v883, %v1091
        %1093 = vmatmul.f32.gmra.mxu0 %v235
        %v1094 = vpop.f32.mrf.mxu0
        %v1095 = vadd.f32 %v886, %v1094
        %1096 = vmatmul.f32.gmra.mxu0 %v237
        %v1097 = vpop.f32.mrf.mxu0
        %v1098 = vadd.f32 %v889, %v1097
        %1099 = vmatmul.f32.gmra.mxu0 %v239
        %v1100 = vpop.f32.mrf.mxu0
        %v1101 = vadd.f32 %v892, %v1100
        %1102 = vmatmul.f32.gmra.mxu0 %v241
        %v1103 = vpop.f32.mrf.mxu0
        %v1104 = vadd.f32 %v895, %v1103
        %1105 = vmatmul.f32.gmra.mxu0 %v243
        %v1106 = vpop.f32.mrf.mxu0
        %v1107 = vadd.f32 %v898, %v1106
        %1108 = vmatmul.f32.gmra.mxu0 %v245
        %v1109 = vpop.f32.mrf.mxu0
        %v1110 = vadd.f32 %v901, %v1109
        %1111 = vmatmul.f32.gmra.mxu0 %v247
        %v1112 = vpop.f32.mrf.mxu0
        %v1113 = vadd.f32 %v904, %v1112
        %1114 = vmatmul.f32.gmra.mxu0 %v249
        %v1115 = vpop.f32.mrf.mxu0
        %v1116 = vadd.f32 %v907, %v1115
        %1117 = vmatmul.f32.gmra.mxu0 %v251
        %v1118 = vpop.f32.mrf.mxu0
        %v1119 = vadd.f32 %v910, %v1118
        %1120 = vmatmul.f32.gmra.mxu0 %v253
        %v1121 = vpop.f32.mrf.mxu0
        %v1122 = vadd.f32 %v913, %v1121
        %1123 = vmatmul.f32.gmra.mxu0 %v255
        %v1124 = vpop.f32.mrf.mxu0
        %v1125 = vadd.f32 %v916, %v1124
        %1126 = vmatmul.f32.gmra.mxu0 %v257
        %v1127 = vpop.f32.mrf.mxu0
        %v1128 = vadd.f32 %v919, %v1127
        %1129 = vmatmul.f32.gmra.mxu0 %v259
        %v1130 = vpop.f32.mrf.mxu0
        %v1131 = vadd.f32 %v922, %v1130
        %1132 = vmatmul.f32.gmra.mxu0 %v261
        %v1133 = vpop.f32.mrf.mxu0
        %v1134 = vadd.f32 %v925, %v1133
        %1135 = vmatmul.f32.gmra.mxu0 %v263
        %v1136 = vpop.f32.mrf.mxu0
        %v1137 = vadd.f32 %v928, %v1136
        %1138 = vmatmul.f32.gmra.mxu0 %v265
        %v1139 = vpop.f32.mrf.mxu0
        %v1140 = vadd.f32 %v931, %v1139
        %1141 = vmatmul.f32.gmra.mxu0 %v267
        %v1142 = vpop.f32.mrf.mxu0
        %v1143 = vadd.f32 %v934, %v1142
        %1144 = vmatmul.f32.gmra.mxu0 %v269
        %v1145 = vpop.f32.mrf.mxu0
        %v1146 = vadd.f32 %v937, %v1145
        %1147 = vmatmul.f32.gmra.mxu0 %v271
        %v1148 = vpop.f32.mrf.mxu0
        %v1149 = vadd.f32 %v940, %v1148
        %1150 = vmatmul.f32.gmra.mxu0 %v273
        %v1151 = vpop.f32.mrf.mxu0
        %v1152 = vadd.f32 %v943, %v1151
        %1153 = vmatmul.f32.gmra.mxu0 %v275
        %v1154 = vpop.f32.mrf.mxu0
        %v1155 = vadd.f32 %v946, %v1154
        %1156 = vmatmul.f32.gmra.mxu0 %v277
        %v1157 = vpop.f32.mrf.mxu0
        %v1158 = vadd.f32 %v949, %v1157
        %1159 = vmatmul.f32.gmra.mxu0 %v279
        %v1160 = vpop.f32.mrf.mxu0
        %v1161 = vadd.f32 %v952, %v1160
        %1162 = vmatmul.f32.gmra.mxu0 %v281
        %v1163 = vpop.f32.mrf.mxu0
        %v1164 = vadd.f32 %v955, %v1163
        %1165 = vmatmul.f32.gmra.mxu0 %v283
        %v1166 = vpop.f32.mrf.mxu0
        %v1167 = vadd.f32 %v958, %v1166
        %1168 = vmatmul.f32.gmra.mxu0 %v285
        %v1169 = vpop.f32.mrf.mxu0
        %v1170 = vadd.f32 %v961, %v1169
        %1171 = vmatmul.f32.gmra.mxu0 %v287
        %v1172 = vpop.f32.mrf.mxu0
        %v1173 = vadd.f32 %v964, %v1172
        %1174 = vmatmul.f32.gmra.mxu0 %v289
        %v1175 = vpop.f32.mrf.mxu0
        %v1176 = vadd.f32 %v967, %v1175
        %1177 = vmatmul.f32.gmra.mxu0 %v291
        %v1178 = vpop.f32.mrf.mxu0
        %v1179 = vadd.f32 %v970, %v1178
        %1180 = vmatmul.f32.gmra.mxu0 %v293
        %v1181 = vpop.f32.mrf.mxu0
        %v1182 = vadd.f32 %v973, %v1181
        %1183 = vmatmul.f32.gmra.mxu0 %v295
        %v1184 = vpop.f32.mrf.mxu0
        %v1185 = vadd.f32 %v976, %v1184
        %1186 = vmatmul.f32.gmra.mxu0 %v297
        %v1187 = vpop.f32.mrf.mxu0
        %v1188 = vadd.f32 %v979, %v1187
        %1189 = vmatmul.f32.gmra.mxu0 %v299
        %v1190 = vpop.f32.mrf.mxu0
        %v1191 = vadd.f32 %v982, %v1190
        %1192 = vmatmul.f32.gmra.mxu0 %v301
        %v1193 = vpop.f32.mrf.mxu0
        %v1194 = vadd.f32 %v985, %v1193
        %1195 = vmatmul.f32.gmra.mxu0 %v303
        %v1196 = vpop.f32.mrf.mxu0
        %v1197 = vadd.f32 %v988, %v1196
        %1198 = vmatmul.f32.gmra.mxu0 %v305
        %v1199 = vpop.f32.mrf.mxu0
        %v1200 = vadd.f32 %v991, %v1199
        %1201 = vmatmul.f32.gmra.mxu0 %v307
        %v1202 = vpop.f32.mrf.mxu0
        %v1203 = vadd.f32 %v994, %v1202
        %1204 = vmatmul.f32.gmra.mxu0 %v309
        %v1205 = vpop.f32.mrf.mxu0
        %v1206 = vadd.f32 %v997, %v1205
        %1207 = vmatmul.f32.gmra.mxu0 %v311
        %v1208 = vpop.f32.mrf.mxu0
        %v1209 = vadd.f32 %v1000, %v1208
        %1210 = vmatmul.f32.gmra.mxu0 %v313
        %v1211 = vpop.f32.mrf.mxu0
        %v1212 = vadd.f32 %v1003, %v1211
        %1213 = vdwg.mxu0
        %v1214 = vmax.f32 %v605, 0.0
        %v1215 = vmax.f32 %v1023, 0.0
        %v1216 = vmax.f32 %v608, 0.0
        %v1217 = vmax.f32 %v1026, 0.0
        %v1218 = vmax.f32 %v611, 0.0
        %v1219 = vmax.f32 %v1029, 0.0
        %v1220 = vmax.f32 %v614, 0.0
        %v1221 = vmax.f32 %v1032, 0.0
        %v1222 = vmax.f32 %v617, 0.0
        %v1223 = vmax.f32 %v1035, 0.0
        %v1224 = vmax.f32 %v620, 0.0
        %v1225 = vmax.f32 %v1038, 0.0
        %v1226 = vmax.f32 %v623, 0.0
        %v1227 = vmax.f32 %v1041, 0.0
        %v1228 = vmax.f32 %v626, 0.0
        %v1229 = vmax.f32 %v1044, 0.0
        %v1230 = vmax.f32 %v629, 0.0
        %v1231 = vmax.f32 %v1047, 0.0
        %v1232 = vmax.f32 %v632, 0.0
        %v1233 = vmax.f32 %v1050, 0.0
        %v1234 = vmax.f32 %v635, 0.0
        %v1235 = vmax.f32 %v1053, 0.0
        %v1236 = vmax.f32 %v638, 0.0
        %v1237 = vmax.f32 %v1056, 0.0
        %v1238 = vmax.f32 %v641, 0.0
        %v1239 = vmax.f32 %v1059, 0.0
        %v1240 = vmax.f32 %v644, 0.0
        %v1241 = vmax.f32 %v1062, 0.0
        %v1242 = vmax.f32 %v647, 0.0
        %v1243 = vmax.f32 %v1065, 0.0
        %v1244 = vmax.f32 %v650, 0.0
        %v1245 = vmax.f32 %v1068, 0.0
        %v1246 = vmax.f32 %v653, 0.0
        %v1247 = vmax.f32 %v1071, 0.0
        %v1248 = vmax.f32 %v656, 0.0
        %v1249 = vmax.f32 %v1074, 0.0
        %v1250 = vmax.f32 %v659, 0.0
        %v1251 = vmax.f32 %v1077, 0.0
        %v1252 = vmax.f32 %v662, 0.0
        %v1253 = vmax.f32 %v1080, 0.0
        %v1254 = vmax.f32 %v665, 0.0
        %v1255 = vmax.f32 %v1083, 0.0
        %v1256 = vmax.f32 %v668, 0.0
        %v1257 = vmax.f32 %v1086, 0.0
        %v1258 = vmax.f32 %v671, 0.0
        %v1259 = vmax.f32 %v1089, 0.0
        %v1260 = vmax.f32 %v674, 0.0
        %v1261 = vmax.f32 %v1092, 0.0
        %v1262 = vmax.f32 %v677, 0.0
        %v1263 = vmax.f32 %v1095, 0.0
        %v1264 = vmax.f32 %v680, 0.0
        %v1265 = vmax.f32 %v1098, 0.0
        %v1266 = vmax.f32 %v683, 0.0
        %v1267 = vmax.f32 %v1101, 0.0
        %v1268 = vmax.f32 %v686, 0.0
        %v1269 = vmax.f32 %v1104, 0.0
        %v1270 = vmax.f32 %v689, 0.0
        %v1271 = vmax.f32 %v1107, 0.0
        %v1272 = vmax.f32 %v692, 0.0
        %v1273 = vmax.f32 %v1110, 0.0
        %v1274 = vmax.f32 %v695, 0.0
        %v1275 = vmax.f32 %v1113, 0.0
        %v1276 = vmax.f32 %v698, 0.0
        %v1277 = vmax.f32 %v1116, 0.0
        %v1278 = vmax.f32 %v701, 0.0
        %v1279 = vmax.f32 %v1119, 0.0
        %v1280 = vmax.f32 %v704, 0.0
        %v1281 = vmax.f32 %v1122, 0.0
        %v1282 = vmax.f32 %v707, 0.0
        %v1283 = vmax.f32 %v1125, 0.0
        %v1284 = vmax.f32 %v710, 0.0
        %v1285 = vmax.f32 %v1128, 0.0
        %v1286 = vmax.f32 %v713, 0.0
        %v1287 = vmax.f32 %v1131, 0.0
        %v1288 = vmax.f32 %v716, 0.0
        %v1289 = vmax.f32 %v1134, 0.0
        %v1290 = vmax.f32 %v719, 0.0
        %v1291 = vmax.f32 %v1137, 0.0
        %v1292 = vmax.f32 %v722, 0.0
        %v1293 = vmax.f32 %v1140, 0.0
        %v1294 = vmax.f32 %v725, 0.0
        %v1295 = vmax.f32 %v1143, 0.0
        %v1296 = vmax.f32 %v728, 0.0
        %v1297 = vmax.f32 %v1146, 0.0
        %v1298 = vmax.f32 %v731, 0.0
        %v1299 = vmax.f32 %v1149, 0.0
        %v1300 = vmax.f32 %v734, 0.0
        %v1301 = vmax.f32 %v1152, 0.0
        %v1302 = vmax.f32 %v737, 0.0
        %v1303 = vmax.f32 %v1155, 0.0
        %v1304 = vmax.f32 %v740, 0.0
        %v1305 = vmax.f32 %v1158, 0.0
        %v1306 = vmax.f32 %v743, 0.0
        %v1307 = vmax.f32 %v1161, 0.0
        %v1308 = vmax.f32 %v746, 0.0
        %v1309 = vmax.f32 %v1164, 0.0
        %v1310 = vmax.f32 %v749, 0.0
        %v1311 = vmax.f32 %v1167, 0.0
        %v1312 = vmax.f32 %v752, 0.0
        %v1313 = vmax.f32 %v1170, 0.0
        %v1314 = vmax.f32 %v755, 0.0
        %v1315 = vmax.f32 %v1173, 0.0
        %v1316 = vmax.f32 %v758, 0.0
        %v1317 = vmax.f32 %v1176, 0.0
        %v1318 = vmax.f32 %v761, 0.0
        %v1319 = vmax.f32 %v1179, 0.0
        %v1320 = vmax.f32 %v764, 0.0
        %v1321 = vmax.f32 %v1182, 0.0
        %v1322 = vmax.f32 %v767, 0.0
        %v1323 = vmax.f32 %v1185, 0.0
        %v1324 = vmax.f32 %v770, 0.0
        %v1325 = vmax.f32 %v1188, 0.0
        %v1326 = vmax.f32 %v773, 0.0
        %v1327 = vmax.f32 %v1191, 0.0
        %v1328 = vmax.f32 %v776, 0.0
        %v1329 = vmax.f32 %v1194, 0.0
        %v1330 = vmax.f32 %v779, 0.0
        %v1331 = vmax.f32 %v1197, 0.0
        %v1332 = vmax.f32 %v782, 0.0
        %v1333 = vmax.f32 %v1200, 0.0
        %v1334 = vmax.f32 %v785, 0.0
        %v1335 = vmax.f32 %v1203, 0.0
        %v1336 = vmax.f32 %v788, 0.0
        %v1337 = vmax.f32 %v1206, 0.0
        %v1338 = vmax.f32 %v791, 0.0
        %v1339 = vmax.f32 %v1209, 0.0
        %v1340 = vmax.f32 %v794, 0.0
        %v1341 = vmax.f32 %v1212, 0.0
        %s1342 = smul.u32 %s22, 512
        %v1343 = vlaneseq
        %v1344 = vshrl.u32 %v1343, 7
        %v1345 = vadd.s32 %v1344, 8
        %v1346 = vadd.s32 %v1344, 16
        %v1347 = vadd.s32 %v1344, 24
        %v1348 = vadd.s32 %v1344, 32
        %v1349 = vadd.s32 %v1344, 40
        %v1350 = vadd.s32 %v1344, 48
        %v1351 = vadd.s32 %v1344, 56
        %v1352 = vadd.s32 %v1344, 64
        %v1353 = vadd.s32 %v1344, 72
        %v1354 = vadd.s32 %v1344, 80
        %v1355 = vadd.s32 %v1344, 88
        %v1356 = vadd.s32 %v1344, 96
        %v1357 = vadd.s32 %v1344, 104
        %v1358 = vadd.s32 %v1344, 112
        %v1359 = vadd.s32 %v1344, 120
        %v1360 = vadd.s32 %v1344, 128
        %v1361 = vadd.s32 %v1344, 136
        %v1362 = vadd.s32 %v1344, 144
        %v1363 = vadd.s32 %v1344, 152
        %v1364 = vadd.s32 %v1344, 160
        %v1365 = vadd.s32 %v1344, 168
        %v1366 = vadd.s32 %v1344, 176
        %v1367 = vadd.s32 %v1344, 184
        %v1368 = vadd.s32 %v1344, 192
        %v1369 = vadd.s32 %v1344, 200
        %v1370 = vadd.s32 %v1344, 208
        %v1371 = vadd.s32 %v1344, 216
        %v1372 = vadd.s32 %v1344, 224
        %v1373 = vadd.s32 %v1344, 232
        %v1374 = vadd.s32 %v1344, 240
        %v1375 = vadd.s32 %v1344, 248
        %v1376 = vadd.s32 %v1344, 256
        %v1377 = vadd.s32 %v1344, 264
        %v1378 = vadd.s32 %v1344, 272
        %v1379 = vadd.s32 %v1344, 280
        %v1380 = vadd.s32 %v1344, 288
        %v1381 = vadd.s32 %v1344, 296
        %v1382 = vadd.s32 %v1344, 304
        %v1383 = vadd.s32 %v1344, 312
        %v1384 = vadd.s32 %v1344, 320
        %v1385 = vadd.s32 %v1344, 328
        %v1386 = vadd.s32 %v1344, 336
        %v1387 = vadd.s32 %v1344, 344
        %v1388 = vadd.s32 %v1344, 352
        %v1389 = vadd.s32 %v1344, 360
        %v1390 = vadd.s32 %v1344, 368
        %v1391 = vadd.s32 %v1344, 376
        %v1392 = vadd.s32 %v1344, 384
        %v1393 = vadd.s32 %v1344, 392
        %v1394 = vadd.s32 %v1344, 400
        %v1395 = vadd.s32 %v1344, 408
        %v1396 = vadd.s32 %v1344, 416
        %v1397 = vadd.s32 %v1344, 424
        %v1398 = vadd.s32 %v1344, 432
        %v1399 = vadd.s32 %v1344, 440
        %v1400 = vadd.s32 %v1344, 448
        %v1401 = vadd.s32 %v1344, 456
        %v1402 = vadd.s32 %v1344, 464
        %v1403 = vadd.s32 %v1344, 472
        %v1404 = vadd.s32 %v1344, 480
        %v1405 = vadd.s32 %v1344, 488
        %v1406 = vadd.s32 %v1344, 496
        %v1407 = vadd.s32 %v1344, 504
        %v1408 = vstv %s1342
        %v1409 = vadd.s32 %v1344, %v1408
        %v1410 = vadd.s32 %v1345, %v1408
        %v1411 = vadd.s32 %v1346, %v1408
        %v1412 = vadd.s32 %v1347, %v1408
        %v1413 = vadd.s32 %v1348, %v1408
        %v1414 = vadd.s32 %v1349, %v1408
        %v1415 = vadd.s32 %v1350, %v1408
        %v1416 = vadd.s32 %v1351, %v1408
        %v1417 = vadd.s32 %v1352, %v1408
        %v1418 = vadd.s32 %v1353, %v1408
        %v1419 = vadd.s32 %v1354, %v1408
        %v1420 = vadd.s32 %v1355, %v1408
        %v1421 = vadd.s32 %v1356, %v1408
        %v1422 = vadd.s32 %v1357, %v1408
        %v1423 = vadd.s32 %v1358, %v1408
        %v1424 = vadd.s32 %v1359, %v1408
        %v1425 = vadd.s32 %v1360, %v1408
        %v1426 = vadd.s32 %v1361, %v1408
        %v1427 = vadd.s32 %v1362, %v1408
        %v1428 = vadd.s32 %v1363, %v1408
        %v1429 = vadd.s32 %v1364, %v1408
        %v1430 = vadd.s32 %v1365, %v1408
        %v1431 = vadd.s32 %v1366, %v1408
        %v1432 = vadd.s32 %v1367, %v1408
        %v1433 = vadd.s32 %v1368, %v1408
        %v1434 = vadd.s32 %v1369, %v1408
        %v1435 = vadd.s32 %v1370, %v1408
        %v1436 = vadd.s32 %v1371, %v1408
        %v1437 = vadd.s32 %v1372, %v1408
        %v1438 = vadd.s32 %v1373, %v1408
        %v1439 = vadd.s32 %v1374, %v1408
        %v1440 = vadd.s32 %v1375, %v1408
        %v1441 = vadd.s32 %v1376, %v1408
        %v1442 = vadd.s32 %v1377, %v1408
        %v1443 = vadd.s32 %v1378, %v1408
        %v1444 = vadd.s32 %v1379, %v1408
        %v1445 = vadd.s32 %v1380, %v1408
        %v1446 = vadd.s32 %v1381, %v1408
        %v1447 = vadd.s32 %v1382, %v1408
        %v1448 = vadd.s32 %v1383, %v1408
        %v1449 = vadd.s32 %v1384, %v1408
        %v1450 = vadd.s32 %v1385, %v1408
        %v1451 = vadd.s32 %v1386, %v1408
        %v1452 = vadd.s32 %v1387, %v1408
        %v1453 = vadd.s32 %v1388, %v1408
        %v1454 = vadd.s32 %v1389, %v1408
        %v1455 = vadd.s32 %v1390, %v1408
        %v1456 = vadd.s32 %v1391, %v1408
        %v1457 = vadd.s32 %v1392, %v1408
        %v1458 = vadd.s32 %v1393, %v1408
        %v1459 = vadd.s32 %v1394, %v1408
        %v1460 = vadd.s32 %v1395, %v1408
        %v1461 = vadd.s32 %v1396, %v1408
        %v1462 = vadd.s32 %v1397, %v1408
        %v1463 = vadd.s32 %v1398, %v1408
        %v1464 = vadd.s32 %v1399, %v1408
        %v1465 = vadd.s32 %v1400, %v1408
        %v1466 = vadd.s32 %v1401, %v1408
        %v1467 = vadd.s32 %v1402, %v1408
        %v1468 = vadd.s32 %v1403, %v1408
        %v1469 = vadd.s32 %v1404, %v1408
        %v1470 = vadd.s32 %v1405, %v1408
        %v1471 = vadd.s32 %v1406, %v1408
        %v1472 = vadd.s32 %v1407, %v1408
        %v1473 = vlaneseq
        %v1474 = vand.u32 %v1473, 127
        %v1475 = vadd.s32 %v1474, 128
        %s1476 = sld [smem:[#allocation3]]
        %v1477 = vmul.u32 %v1409, 2654435761
        %v1478 = vmul.u32 %v1410, 2654435761
        %v1479 = vmul.u32 %v1411, 2654435761
        %v1480 = vmul.u32 %v1412, 2654435761
        %v1481 = vmul.u32 %v1413, 2654435761
        %v1482 = vmul.u32 %v1414, 2654435761
        %v1483 = vmul.u32 %v1415, 2654435761
        %v1484 = vmul.u32 %v1416, 2654435761
        %v1485 = vmul.u32 %v1417, 2654435761
        %v1486 = vmul.u32 %v1418, 2654435761
        %v1487 = vmul.u32 %v1419, 2654435761
        %v1488 = vmul.u32 %v1420, 2654435761
        %v1489 = vmul.u32 %v1421, 2654435761
        %v1490 = vmul.u32 %v1422, 2654435761
        %v1491 = vmul.u32 %v1423, 2654435761
        %v1492 = vmul.u32 %v1424, 2654435761
        %v1493 = vmul.u32 %v1425, 2654435761
        %v1494 = vmul.u32 %v1426, 2654435761
        %v1495 = vmul.u32 %v1427, 2654435761
        %v1496 = vmul.u32 %v1428, 2654435761
        %v1497 = vmul.u32 %v1429, 2654435761
        %v1498 = vmul.u32 %v1430, 2654435761
        %v1499 = vmul.u32 %v1431, 2654435761
        %v1500 = vmul.u32 %v1432, 2654435761
        %v1501 = vmul.u32 %v1433, 2654435761
        %v1502 = vmul.u32 %v1434, 2654435761
        %v1503 = vmul.u32 %v1435, 2654435761
        %v1504 = vmul.u32 %v1436, 2654435761
        %v1505 = vmul.u32 %v1437, 2654435761
        %v1506 = vmul.u32 %v1438, 2654435761
        %v1507 = vmul.u32 %v1439, 2654435761
        %v1508 = vmul.u32 %v1440, 2654435761
        %v1509 = vmul.u32 %v1441, 2654435761
        %v1510 = vmul.u32 %v1442, 2654435761
        %v1511 = vmul.u32 %v1443, 2654435761
        %v1512 = vmul.u32 %v1444, 2654435761
        %v1513 = vmul.u32 %v1445, 2654435761
        %v1514 = vmul.u32 %v1446, 2654435761
        %v1515 = vmul.u32 %v1447, 2654435761
        %v1516 = vmul.u32 %v1448, 2654435761
        %v1517 = vmul.u32 %v1449, 2654435761
        %v1518 = vmul.u32 %v1450, 2654435761
        %v1519 = vmul.u32 %v1451, 2654435761
        %v1520 = vmul.u32 %v1452, 2654435761
        %v1521 = vmul.u32 %v1453, 2654435761
        %v1522 = vmul.u32 %v1454, 2654435761
        %v1523 = vmul.u32 %v1455, 2654435761
        %v1524 = vmul.u32 %v1456, 2654435761
        %v1525 = vmul.u32 %v1457, 2654435761
        %v1526 = vmul.u32 %v1458, 2654435761
        %v1527 = vmul.u32 %v1459, 2654435761
        %v1528 = vmul.u32 %v1460, 2654435761
        %v1529 = vmul.u32 %v1461, 2654435761
        %v1530 = vmul.u32 %v1462, 2654435761
        %v1531 = vmul.u32 %v1463, 2654435761
        %v1532 = vmul.u32 %v1464, 2654435761
        %v1533 = vmul.u32 %v1465, 2654435761
        %v1534 = vmul.u32 %v1466, 2654435761
        %v1535 = vmul.u32 %v1467, 2654435761
        %v1536 = vmul.u32 %v1468, 2654435761
        %v1537 = vmul.u32 %v1469, 2654435761
        %v1538 = vmul.u32 %v1470, 2654435761
        %v1539 = vmul.u32 %v1471, 2654435761
        %v1540 = vmul.u32 %v1472, 2654435761
        %v1541 = vmul.u32 %v1474, 2246822519
        %v1542 = vmul.u32 %v1475, 2246822519
        %v1543 = vadd.s32 %v1477, %v1541
        %v1544 = vadd.s32 %v1477, %v1542
        %v1545 = vadd.s32 %v1478, %v1541
        %v1546 = vadd.s32 %v1478, %v1542
        %v1547 = vadd.s32 %v1479, %v1541
        %v1548 = vadd.s32 %v1479, %v1542
        %v1549 = vadd.s32 %v1480, %v1541
        %v1550 = vadd.s32 %v1480, %v1542
        %v1551 = vadd.s32 %v1481, %v1541
        %v1552 = vadd.s32 %v1481, %v1542
        %v1553 = vadd.s32 %v1482, %v1541
        %v1554 = vadd.s32 %v1482, %v1542
        %v1555 = vadd.s32 %v1483, %v1541
        %v1556 = vadd.s32 %v1483, %v1542
        %v1557 = vadd.s32 %v1484, %v1541
        %v1558 = vadd.s32 %v1484, %v1542
        %v1559 = vadd.s32 %v1485, %v1541
        %v1560 = vadd.s32 %v1485, %v1542
        %v1561 = vadd.s32 %v1486, %v1541
        %v1562 = vadd.s32 %v1486, %v1542
        %v1563 = vadd.s32 %v1487, %v1541
        %v1564 = vadd.s32 %v1487, %v1542
        %v1565 = vadd.s32 %v1488, %v1541
        %v1566 = vadd.s32 %v1488, %v1542
        %v1567 = vadd.s32 %v1489, %v1541
        %v1568 = vadd.s32 %v1489, %v1542
        %v1569 = vadd.s32 %v1490, %v1541
        %v1570 = vadd.s32 %v1490, %v1542
        %v1571 = vadd.s32 %v1491, %v1541
        %v1572 = vadd.s32 %v1491, %v1542
        %v1573 = vadd.s32 %v1492, %v1541
        %v1574 = vadd.s32 %v1492, %v1542
        %v1575 = vadd.s32 %v1493, %v1541
        %v1576 = vadd.s32 %v1493, %v1542
        %v1577 = vadd.s32 %v1494, %v1541
        %v1578 = vadd.s32 %v1494, %v1542
        %v1579 = vadd.s32 %v1495, %v1541
        %v1580 = vadd.s32 %v1495, %v1542
        %v1581 = vadd.s32 %v1496, %v1541
        %v1582 = vadd.s32 %v1496, %v1542
        %v1583 = vadd.s32 %v1497, %v1541
        %v1584 = vadd.s32 %v1497, %v1542
        %v1585 = vadd.s32 %v1498, %v1541
        %v1586 = vadd.s32 %v1498, %v1542
        %v1587 = vadd.s32 %v1499, %v1541
        %v1588 = vadd.s32 %v1499, %v1542
        %v1589 = vadd.s32 %v1500, %v1541
        %v1590 = vadd.s32 %v1500, %v1542
        %v1591 = vadd.s32 %v1501, %v1541
        %v1592 = vadd.s32 %v1501, %v1542
        %v1593 = vadd.s32 %v1502, %v1541
        %v1594 = vadd.s32 %v1502, %v1542
        %v1595 = vadd.s32 %v1503, %v1541
        %v1596 = vadd.s32 %v1503, %v1542
        %v1597 = vadd.s32 %v1504, %v1541
        %v1598 = vadd.s32 %v1504, %v1542
        %v1599 = vadd.s32 %v1505, %v1541
        %v1600 = vadd.s32 %v1505, %v1542
        %v1601 = vadd.s32 %v1506, %v1541
        %v1602 = vadd.s32 %v1506, %v1542
        %v1603 = vadd.s32 %v1507, %v1541
        %v1604 = vadd.s32 %v1507, %v1542
        %v1605 = vadd.s32 %v1508, %v1541
        %v1606 = vadd.s32 %v1508, %v1542
        %v1607 = vadd.s32 %v1509, %v1541
        %v1608 = vadd.s32 %v1509, %v1542
        %v1609 = vadd.s32 %v1510, %v1541
        %v1610 = vadd.s32 %v1510, %v1542
        %v1611 = vadd.s32 %v1511, %v1541
        %v1612 = vadd.s32 %v1511, %v1542
        %v1613 = vadd.s32 %v1512, %v1541
        %v1614 = vadd.s32 %v1512, %v1542
        %v1615 = vadd.s32 %v1513, %v1541
        %v1616 = vadd.s32 %v1513, %v1542
        %v1617 = vadd.s32 %v1514, %v1541
        %v1618 = vadd.s32 %v1514, %v1542
        %v1619 = vadd.s32 %v1515, %v1541
        %v1620 = vadd.s32 %v1515, %v1542
        %v1621 = vadd.s32 %v1516, %v1541
        %v1622 = vadd.s32 %v1516, %v1542
        %v1623 = vadd.s32 %v1517, %v1541
        %v1624 = vadd.s32 %v1517, %v1542
        %v1625 = vadd.s32 %v1518, %v1541
        %v1626 = vadd.s32 %v1518, %v1542
        %v1627 = vadd.s32 %v1519, %v1541
        %v1628 = vadd.s32 %v1519, %v1542
        %v1629 = vadd.s32 %v1520, %v1541
        %v1630 = vadd.s32 %v1520, %v1542
        %v1631 = vadd.s32 %v1521, %v1541
        %v1632 = vadd.s32 %v1521, %v1542
        %v1633 = vadd.s32 %v1522, %v1541
        %v1634 = vadd.s32 %v1522, %v1542
        %v1635 = vadd.s32 %v1523, %v1541
        %v1636 = vadd.s32 %v1523, %v1542
        %v1637 = vadd.s32 %v1524, %v1541
        %v1638 = vadd.s32 %v1524, %v1542
        %v1639 = vadd.s32 %v1525, %v1541
        %v1640 = vadd.s32 %v1525, %v1542
        %v1641 = vadd.s32 %v1526, %v1541
        %v1642 = vadd.s32 %v1526, %v1542
        %v1643 = vadd.s32 %v1527, %v1541
        %v1644 = vadd.s32 %v1527, %v1542
        %v1645 = vadd.s32 %v1528, %v1541
        %v1646 = vadd.s32 %v1528, %v1542
        %v1647 = vadd.s32 %v1529, %v1541
        %v1648 = vadd.s32 %v1529, %v1542
        %v1649 = vadd.s32 %v1530, %v1541
        %v1650 = vadd.s32 %v1530, %v1542
        %v1651 = vadd.s32 %v1531, %v1541
        %v1652 = vadd.s32 %v1531, %v1542
        %v1653 = vadd.s32 %v1532, %v1541
        %v1654 = vadd.s32 %v1532, %v1542
        %v1655 = vadd.s32 %v1533, %v1541
        %v1656 = vadd.s32 %v1533, %v1542
        %v1657 = vadd.s32 %v1534, %v1541
        %v1658 = vadd.s32 %v1534, %v1542
        %v1659 = vadd.s32 %v1535, %v1541
        %v1660 = vadd.s32 %v1535, %v1542
        %v1661 = vadd.s32 %v1536, %v1541
        %v1662 = vadd.s32 %v1536, %v1542
        %v1663 = vadd.s32 %v1537, %v1541
        %v1664 = vadd.s32 %v1537, %v1542
        %v1665 = vadd.s32 %v1538, %v1541
        %v1666 = vadd.s32 %v1538, %v1542
        %v1667 = vadd.s32 %v1539, %v1541
        %v1668 = vadd.s32 %v1539, %v1542
        %v1669 = vadd.s32 %v1540, %v1541
        %v1670 = vadd.s32 %v1540, %v1542
        %v1671 = vstv %s1476
        %v1672 = vadd.s32 %v1543, %v1671
        %v1673 = vadd.s32 %v1544, %v1671
        %v1674 = vadd.s32 %v1545, %v1671
        %v1675 = vadd.s32 %v1546, %v1671
        %v1676 = vadd.s32 %v1547, %v1671
        %v1677 = vadd.s32 %v1548, %v1671
        %v1678 = vadd.s32 %v1549, %v1671
        %v1679 = vadd.s32 %v1550, %v1671
        %v1680 = vadd.s32 %v1551, %v1671
        %v1681 = vadd.s32 %v1552, %v1671
        %v1682 = vadd.s32 %v1553, %v1671
        %v1683 = vadd.s32 %v1554, %v1671
        %v1684 = vadd.s32 %v1555, %v1671
        %v1685 = vadd.s32 %v1556, %v1671
        %v1686 = vadd.s32 %v1557, %v1671
        %v1687 = vadd.s32 %v1558, %v1671
        %v1688 = vadd.s32 %v1559, %v1671
        %v1689 = vadd.s32 %v1560, %v1671
        %v1690 = vadd.s32 %v1561, %v1671
        %v1691 = vadd.s32 %v1562, %v1671
        %v1692 = vadd.s32 %v1563, %v1671
        %v1693 = vadd.s32 %v1564, %v1671
        %v1694 = vadd.s32 %v1565, %v1671
        %v1695 = vadd.s32 %v1566, %v1671
        %v1696 = vadd.s32 %v1567, %v1671
        %v1697 = vadd.s32 %v1568, %v1671
        %v1698 = vadd.s32 %v1569, %v1671
        %v1699 = vadd.s32 %v1570, %v1671
        %v1700 = vadd.s32 %v1571, %v1671
        %v1701 = vadd.s32 %v1572, %v1671
        %v1702 = vadd.s32 %v1573, %v1671
        %v1703 = vadd.s32 %v1574, %v1671
        %v1704 = vadd.s32 %v1575, %v1671
        %v1705 = vadd.s32 %v1576, %v1671
        %v1706 = vadd.s32 %v1577, %v1671
        %v1707 = vadd.s32 %v1578, %v1671
        %v1708 = vadd.s32 %v1579, %v1671
        %v1709 = vadd.s32 %v1580, %v1671
        %v1710 = vadd.s32 %v1581, %v1671
        %v1711 = vadd.s32 %v1582, %v1671
        %v1712 = vadd.s32 %v1583, %v1671
        %v1713 = vadd.s32 %v1584, %v1671
        %v1714 = vadd.s32 %v1585, %v1671
        %v1715 = vadd.s32 %v1586, %v1671
        %v1716 = vadd.s32 %v1587, %v1671
        %v1717 = vadd.s32 %v1588, %v1671
        %v1718 = vadd.s32 %v1589, %v1671
        %v1719 = vadd.s32 %v1590, %v1671
        %v1720 = vadd.s32 %v1591, %v1671
        %v1721 = vadd.s32 %v1592, %v1671
        %v1722 = vadd.s32 %v1593, %v1671
        %v1723 = vadd.s32 %v1594, %v1671
        %v1724 = vadd.s32 %v1595, %v1671
        %v1725 = vadd.s32 %v1596, %v1671
        %v1726 = vadd.s32 %v1597, %v1671
        %v1727 = vadd.s32 %v1598, %v1671
        %v1728 = vadd.s32 %v1599, %v1671
        %v1729 = vadd.s32 %v1600, %v1671
        %v1730 = vadd.s32 %v1601, %v1671
        %v1731 = vadd.s32 %v1602, %v1671
        %v1732 = vadd.s32 %v1603, %v1671
        %v1733 = vadd.s32 %v1604, %v1671
        %v1734 = vadd.s32 %v1605, %v1671
        %v1735 = vadd.s32 %v1606, %v1671
        %v1736 = vadd.s32 %v1607, %v1671
        %v1737 = vadd.s32 %v1608, %v1671
        %v1738 = vadd.s32 %v1609, %v1671
        %v1739 = vadd.s32 %v1610, %v1671
        %v1740 = vadd.s32 %v1611, %v1671
        %v1741 = vadd.s32 %v1612, %v1671
        %v1742 = vadd.s32 %v1613, %v1671
        %v1743 = vadd.s32 %v1614, %v1671
        %v1744 = vadd.s32 %v1615, %v1671
        %v1745 = vadd.s32 %v1616, %v1671
        %v1746 = vadd.s32 %v1617, %v1671
        %v1747 = vadd.s32 %v1618, %v1671
        %v1748 = vadd.s32 %v1619, %v1671
        %v1749 = vadd.s32 %v1620, %v1671
        %v1750 = vadd.s32 %v1621, %v1671
        %v1751 = vadd.s32 %v1622, %v1671
        %v1752 = vadd.s32 %v1623, %v1671
        %v1753 = vadd.s32 %v1624, %v1671
        %v1754 = vadd.s32 %v1625, %v1671
        %v1755 = vadd.s32 %v1626, %v1671
        %v1756 = vadd.s32 %v1627, %v1671
        %v1757 = vadd.s32 %v1628, %v1671
        %v1758 = vadd.s32 %v1629, %v1671
        %v1759 = vadd.s32 %v1630, %v1671
        %v1760 = vadd.s32 %v1631, %v1671
        %v1761 = vadd.s32 %v1632, %v1671
        %v1762 = vadd.s32 %v1633, %v1671
        %v1763 = vadd.s32 %v1634, %v1671
        %v1764 = vadd.s32 %v1635, %v1671
        %v1765 = vadd.s32 %v1636, %v1671
        %v1766 = vadd.s32 %v1637, %v1671
        %v1767 = vadd.s32 %v1638, %v1671
        %v1768 = vadd.s32 %v1639, %v1671
        %v1769 = vadd.s32 %v1640, %v1671
        %v1770 = vadd.s32 %v1641, %v1671
        %v1771 = vadd.s32 %v1642, %v1671
        %v1772 = vadd.s32 %v1643, %v1671
        %v1773 = vadd.s32 %v1644, %v1671
        %v1774 = vadd.s32 %v1645, %v1671
        %v1775 = vadd.s32 %v1646, %v1671
        %v1776 = vadd.s32 %v1647, %v1671
        %v1777 = vadd.s32 %v1648, %v1671
        %v1778 = vadd.s32 %v1649, %v1671
        %v1779 = vadd.s32 %v1650, %v1671
        %v1780 = vadd.s32 %v1651, %v1671
        %v1781 = vadd.s32 %v1652, %v1671
        %v1782 = vadd.s32 %v1653, %v1671
        %v1783 = vadd.s32 %v1654, %v1671
        %v1784 = vadd.s32 %v1655, %v1671
        %v1785 = vadd.s32 %v1656, %v1671
        %v1786 = vadd.s32 %v1657, %v1671
        %v1787 = vadd.s32 %v1658, %v1671
        %v1788 = vadd.s32 %v1659, %v1671
        %v1789 = vadd.s32 %v1660, %v1671
        %v1790 = vadd.s32 %v1661, %v1671
        %v1791 = vadd.s32 %v1662, %v1671
        %v1792 = vadd.s32 %v1663, %v1671
        %v1793 = vadd.s32 %v1664, %v1671
        %v1794 = vadd.s32 %v1665, %v1671
        %v1795 = vadd.s32 %v1666, %v1671
        %v1796 = vadd.s32 %v1667, %v1671
        %v1797 = vadd.s32 %v1668, %v1671
        %v1798 = vadd.s32 %v1669, %v1671
        %v1799 = vadd.s32 %v1670, %v1671
        %v1800 = vshrl.u32 %v1672, 16
        %v1801 = vshrl.u32 %v1673, 16
        %v1802 = vshrl.u32 %v1674, 16
        %v1803 = vshrl.u32 %v1675, 16
        %v1804 = vshrl.u32 %v1676, 16
        %v1805 = vshrl.u32 %v1677, 16
        %v1806 = vshrl.u32 %v1678, 16
        %v1807 = vshrl.u32 %v1679, 16
        %v1808 = vshrl.u32 %v1680, 16
        %v1809 = vshrl.u32 %v1681, 16
        %v1810 = vshrl.u32 %v1682, 16
        %v1811 = vshrl.u32 %v1683, 16
        %v1812 = vshrl.u32 %v1684, 16
        %v1813 = vshrl.u32 %v1685, 16
        %v1814 = vshrl.u32 %v1686, 16
        %v1815 = vshrl.u32 %v1687, 16
        %v1816 = vshrl.u32 %v1688, 16
        %v1817 = vshrl.u32 %v1689, 16
        %v1818 = vshrl.u32 %v1690, 16
        %v1819 = vshrl.u32 %v1691, 16
        %v1820 = vshrl.u32 %v1692, 16
        %v1821 = vshrl.u32 %v1693, 16
        %v1822 = vshrl.u32 %v1694, 16
        %v1823 = vshrl.u32 %v1695, 16
        %v1824 = vshrl.u32 %v1696, 16
        %v1825 = vshrl.u32 %v1697, 16
        %v1826 = vshrl.u32 %v1698, 16
        %v1827 = vshrl.u32 %v1699, 16
        %v1828 = vshrl.u32 %v1700, 16
        %v1829 = vshrl.u32 %v1701, 16
        %v1830 = vshrl.u32 %v1702, 16
        %v1831 = vshrl.u32 %v1703, 16
        %v1832 = vshrl.u32 %v1704, 16
        %v1833 = vshrl.u32 %v1705, 16
        %v1834 = vshrl.u32 %v1706, 16
        %v1835 = vshrl.u32 %v1707, 16
        %v1836 = vshrl.u32 %v1708, 16
        %v1837 = vshrl.u32 %v1709, 16
        %v1838 = vshrl.u32 %v1710, 16
        %v1839 = vshrl.u32 %v1711, 16
        %v1840 = vshrl.u32 %v1712, 16
        %v1841 = vshrl.u32 %v1713, 16
        %v1842 = vshrl.u32 %v1714, 16
        %v1843 = vshrl.u32 %v1715, 16
        %v1844 = vshrl.u32 %v1716, 16
        %v1845 = vshrl.u32 %v1717, 16
        %v1846 = vshrl.u32 %v1718, 16
        %v1847 = vshrl.u32 %v1719, 16
        %v1848 = vshrl.u32 %v1720, 16
        %v1849 = vshrl.u32 %v1721, 16
        %v1850 = vshrl.u32 %v1722, 16
        %v1851 = vshrl.u32 %v1723, 16
        %v1852 = vshrl.u32 %v1724, 16
        %v1853 = vshrl.u32 %v1725, 16
        %v1854 = vshrl.u32 %v1726, 16
        %v1855 = vshrl.u32 %v1727, 16
        %v1856 = vshrl.u32 %v1728, 16
        %v1857 = vshrl.u32 %v1729, 16
        %v1858 = vshrl.u32 %v1730, 16
        %v1859 = vshrl.u32 %v1731, 16
        %v1860 = vshrl.u32 %v1732, 16
        %v1861 = vshrl.u32 %v1733, 16
        %v1862 = vshrl.u32 %v1734, 16
        %v1863 = vshrl.u32 %v1735, 16
        %v1864 = vshrl.u32 %v1736, 16
        %v1865 = vshrl.u32 %v1737, 16
        %v1866 = vshrl.u32 %v1738, 16
        %v1867 = vshrl.u32 %v1739, 16
        %v1868 = vshrl.u32 %v1740, 16
        %v1869 = vshrl.u32 %v1741, 16
        %v1870 = vshrl.u32 %v1742, 16
        %v1871 = vshrl.u32 %v1743, 16
        %v1872 = vshrl.u32 %v1744, 16
        %v1873 = vshrl.u32 %v1745, 16
        %v1874 = vshrl.u32 %v1746, 16
        %v1875 = vshrl.u32 %v1747, 16
        %v1876 = vshrl.u32 %v1748, 16
        %v1877 = vshrl.u32 %v1749, 16
        %v1878 = vshrl.u32 %v1750, 16
        %v1879 = vshrl.u32 %v1751, 16
        %v1880 = vshrl.u32 %v1752, 16
        %v1881 = vshrl.u32 %v1753, 16
        %v1882 = vshrl.u32 %v1754, 16
        %v1883 = vshrl.u32 %v1755, 16
        %v1884 = vshrl.u32 %v1756, 16
        %v1885 = vshrl.u32 %v1757, 16
        %v1886 = vshrl.u32 %v1758, 16
        %v1887 = vshrl.u32 %v1759, 16
        %v1888 = vshrl.u32 %v1760, 16
        %v1889 = vshrl.u32 %v1761, 16
        %v1890 = vshrl.u32 %v1762, 16
        %v1891 = vshrl.u32 %v1763, 16
        %v1892 = vshrl.u32 %v1764, 16
        %v1893 = vshrl.u32 %v1765, 16
        %v1894 = vshrl.u32 %v1766, 16
        %v1895 = vshrl.u32 %v1767, 16
        %v1896 = vshrl.u32 %v1768, 16
        %v1897 = vshrl.u32 %v1769, 16
        %v1898 = vshrl.u32 %v1770, 16
        %v1899 = vshrl.u32 %v1771, 16
        %v1900 = vshrl.u32 %v1772, 16
        %v1901 = vshrl.u32 %v1773, 16
        %v1902 = vshrl.u32 %v1774, 16
        %v1903 = vshrl.u32 %v1775, 16
        %v1904 = vshrl.u32 %v1776, 16
        %v1905 = vshrl.u32 %v1777, 16
        %v1906 = vshrl.u32 %v1778, 16
        %v1907 = vshrl.u32 %v1779, 16
        %v1908 = vshrl.u32 %v1780, 16
        %v1909 = vshrl.u32 %v1781, 16
        %v1910 = vshrl.u32 %v1782, 16
        %v1911 = vshrl.u32 %v1783, 16
        %v1912 = vshrl.u32 %v1784, 16
        %v1913 = vshrl.u32 %v1785, 16
        %v1914 = vshrl.u32 %v1786, 16
        %v1915 = vshrl.u32 %v1787, 16
        %v1916 = vshrl.u32 %v1788, 16
        %v1917 = vshrl.u32 %v1789, 16
        %v1918 = vshrl.u32 %v1790, 16
        %v1919 = vshrl.u32 %v1791, 16
        %v1920 = vshrl.u32 %v1792, 16
        %v1921 = vshrl.u32 %v1793, 16
        %v1922 = vshrl.u32 %v1794, 16
        %v1923 = vshrl.u32 %v1795, 16
        %v1924 = vshrl.u32 %v1796, 16
        %v1925 = vshrl.u32 %v1797, 16
        %v1926 = vshrl.u32 %v1798, 16
        %v1927 = vshrl.u32 %v1799, 16
        %v1928 = vxor.u32 %v1672, %v1800
        %v1929 = vxor.u32 %v1673, %v1801
        %v1930 = vxor.u32 %v1674, %v1802
        %v1931 = vxor.u32 %v1675, %v1803
        %v1932 = vxor.u32 %v1676, %v1804
        %v1933 = vxor.u32 %v1677, %v1805
        %v1934 = vxor.u32 %v1678, %v1806
        %v1935 = vxor.u32 %v1679, %v1807
        %v1936 = vxor.u32 %v1680, %v1808
        %v1937 = vxor.u32 %v1681, %v1809
        %v1938 = vxor.u32 %v1682, %v1810
        %v1939 = vxor.u32 %v1683, %v1811
        %v1940 = vxor.u32 %v1684, %v1812
        %v1941 = vxor.u32 %v1685, %v1813
        %v1942 = vxor.u32 %v1686, %v1814
        %v1943 = vxor.u32 %v1687, %v1815
        %v1944 = vxor.u32 %v1688, %v1816
        %v1945 = vxor.u32 %v1689, %v1817
        %v1946 = vxor.u32 %v1690, %v1818
        %v1947 = vxor.u32 %v1691, %v1819
        %v1948 = vxor.u32 %v1692, %v1820
        %v1949 = vxor.u32 %v1693, %v1821
        %v1950 = vxor.u32 %v1694, %v1822
        %v1951 = vxor.u32 %v1695, %v1823
        %v1952 = vxor.u32 %v1696, %v1824
        %v1953 = vxor.u32 %v1697, %v1825
        %v1954 = vxor.u32 %v1698, %v1826
        %v1955 = vxor.u32 %v1699, %v1827
        %v1956 = vxor.u32 %v1700, %v1828
        %v1957 = vxor.u32 %v1701, %v1829
        %v1958 = vxor.u32 %v1702, %v1830
        %v1959 = vxor.u32 %v1703, %v1831
        %v1960 = vxor.u32 %v1704, %v1832
        %v1961 = vxor.u32 %v1705, %v1833
        %v1962 = vxor.u32 %v1706, %v1834
        %v1963 = vxor.u32 %v1707, %v1835
        %v1964 = vxor.u32 %v1708, %v1836
        %v1965 = vxor.u32 %v1709, %v1837
        %v1966 = vxor.u32 %v1710, %v1838
        %v1967 = vxor.u32 %v1711, %v1839
        %v1968 = vxor.u32 %v1712, %v1840
        %v1969 = vxor.u32 %v1713, %v1841
        %v1970 = vxor.u32 %v1714, %v1842
        %v1971 = vxor.u32 %v1715, %v1843
        %v1972 = vxor.u32 %v1716, %v1844
        %v1973 = vxor.u32 %v1717, %v1845
        %v1974 = vxor.u32 %v1718, %v1846
        %v1975 = vxor.u32 %v1719, %v1847
        %v1976 = vxor.u32 %v1720, %v1848
        %v1977 = vxor.u32 %v1721, %v1849
        %v1978 = vxor.u32 %v1722, %v1850
        %v1979 = vxor.u32 %v1723, %v1851
        %v1980 = vxor.u32 %v1724, %v1852
        %v1981 = vxor.u32 %v1725, %v1853
        %v1982 = vxor.u32 %v1726, %v1854
        %v1983 = vxor.u32 %v1727, %v1855
        %v1984 = vxor.u32 %v1728, %v1856
        %v1985 = vxor.u32 %v1729, %v1857
        %v1986 = vxor.u32 %v1730, %v1858
        %v1987 = vxor.u32 %v1731, %v1859
        %v1988 = vxor.u32 %v1732, %v1860
        %v1989 = vxor.u32 %v1733, %v1861
        %v1990 = vxor.u32 %v1734, %v1862
        %v1991 = vxor.u32 %v1735, %v1863
        %v1992 = vxor.u32 %v1736, %v1864
        %v1993 = vxor.u32 %v1737, %v1865
        %v1994 = vxor.u32 %v1738, %v1866
        %v1995 = vxor.u32 %v1739, %v1867
        %v1996 = vxor.u32 %v1740, %v1868
        %v1997 = vxor.u32 %v1741, %v1869
        %v1998 = vxor.u32 %v1742, %v1870
        %v1999 = vxor.u32 %v1743, %v1871
        %v2000 = vxor.u32 %v1744, %v1872
        %v2001 = vxor.u32 %v1745, %v1873
        %v2002 = vxor.u32 %v1746, %v1874
        %v2003 = vxor.u32 %v1747, %v1875
        %v2004 = vxor.u32 %v1748, %v1876
        %v2005 = vxor.u32 %v1749, %v1877
        %v2006 = vxor.u32 %v1750, %v1878
        %v2007 = vxor.u32 %v1751, %v1879
        %v2008 = vxor.u32 %v1752, %v1880
        %v2009 = vxor.u32 %v1753, %v1881
        %v2010 = vxor.u32 %v1754, %v1882
        %v2011 = vxor.u32 %v1755, %v1883
        %v2012 = vxor.u32 %v1756, %v1884
        %v2013 = vxor.u32 %v1757, %v1885
        %v2014 = vxor.u32 %v1758, %v1886
        %v2015 = vxor.u32 %v1759, %v1887
        %v2016 = vxor.u32 %v1760, %v1888
        %v2017 = vxor.u32 %v1761, %v1889
        %v2018 = vxor.u32 %v1762, %v1890
        %v2019 = vxor.u32 %v1763, %v1891
        %v2020 = vxor.u32 %v1764, %v1892
        %v2021 = vxor.u32 %v1765, %v1893
        %v2022 = vxor.u32 %v1766, %v1894
        %v2023 = vxor.u32 %v1767, %v1895
        %v2024 = vxor.u32 %v1768, %v1896
        %v2025 = vxor.u32 %v1769, %v1897
        %v2026 = vxor.u32 %v1770, %v1898
        %v2027 = vxor.u32 %v1771, %v1899
        %v2028 = vxor.u32 %v1772, %v1900
        %v2029 = vxor.u32 %v1773, %v1901
        %v2030 = vxor.u32 %v1774, %v1902
        %v2031 = vxor.u32 %v1775, %v1903
        %v2032 = vxor.u32 %v1776, %v1904
        %v2033 = vxor.u32 %v1777, %v1905
        %v2034 = vxor.u32 %v1778, %v1906
        %v2035 = vxor.u32 %v1779, %v1907
        %v2036 = vxor.u32 %v1780, %v1908
        %v2037 = vxor.u32 %v1781, %v1909
        %v2038 = vxor.u32 %v1782, %v1910
        %v2039 = vxor.u32 %v1783, %v1911
        %v2040 = vxor.u32 %v1784, %v1912
        %v2041 = vxor.u32 %v1785, %v1913
        %v2042 = vxor.u32 %v1786, %v1914
        %v2043 = vxor.u32 %v1787, %v1915
        %v2044 = vxor.u32 %v1788, %v1916
        %v2045 = vxor.u32 %v1789, %v1917
        %v2046 = vxor.u32 %v1790, %v1918
        %v2047 = vxor.u32 %v1791, %v1919
        %v2048 = vxor.u32 %v1792, %v1920
        %v2049 = vxor.u32 %v1793, %v1921
        %v2050 = vxor.u32 %v1794, %v1922
        %v2051 = vxor.u32 %v1795, %v1923
        %v2052 = vxor.u32 %v1796, %v1924
        %v2053 = vxor.u32 %v1797, %v1925
        %v2054 = vxor.u32 %v1798, %v1926
        %v2055 = vxor.u32 %v1799, %v1927
        %v2056 = vmul.u32 %v1928, 2246822507
        %v2057 = vmul.u32 %v1929, 2246822507
        %v2058 = vmul.u32 %v1930, 2246822507
        %v2059 = vmul.u32 %v1931, 2246822507
        %v2060 = vmul.u32 %v1932, 2246822507
        %v2061 = vmul.u32 %v1933, 2246822507
        %v2062 = vmul.u32 %v1934, 2246822507
        %v2063 = vmul.u32 %v1935, 2246822507
        %v2064 = vmul.u32 %v1936, 2246822507
        %v2065 = vmul.u32 %v1937, 2246822507
        %v2066 = vmul.u32 %v1938, 2246822507
        %v2067 = vmul.u32 %v1939, 2246822507
        %v2068 = vmul.u32 %v1940, 2246822507
        %v2069 = vmul.u32 %v1941, 2246822507
        %v2070 = vmul.u32 %v1942, 2246822507
        %v2071 = vmul.u32 %v1943, 2246822507
        %v2072 = vmul.u32 %v1944, 2246822507
        %v2073 = vmul.u32 %v1945, 2246822507
        %v2074 = vmul.u32 %v1946, 2246822507
        %v2075 = vmul.u32 %v1947, 2246822507
        %v2076 = vmul.u32 %v1948, 2246822507
        %v2077 = vmul.u32 %v1949, 2246822507
        %v2078 = vmul.u32 %v1950, 2246822507
        %v2079 = vmul.u32 %v1951, 2246822507
        %v2080 = vmul.u32 %v1952, 2246822507
        %v2081 = vmul.u32 %v1953, 2246822507
        %v2082 = vmul.u32 %v1954, 2246822507
        %v2083 = vmul.u32 %v1955, 2246822507
        %v2084 = vmul.u32 %v1956, 2246822507
        %v2085 = vmul.u32 %v1957, 2246822507
        %v2086 = vmul.u32 %v1958, 2246822507
        %v2087 = vmul.u32 %v1959, 2246822507
        %v2088 = vmul.u32 %v1960, 2246822507
        %v2089 = vmul.u32 %v1961, 2246822507
        %v2090 = vmul.u32 %v1962, 2246822507
        %v2091 = vmul.u32 %v1963, 2246822507
        %v2092 = vmul.u32 %v1964, 2246822507
        %v2093 = vmul.u32 %v1965, 2246822507
        %v2094 = vmul.u32 %v1966, 2246822507
        %v2095 = vmul.u32 %v1967, 2246822507
        %v2096 = vmul.u32 %v1968, 2246822507
        %v2097 = vmul.u32 %v1969, 2246822507
        %v2098 = vmul.u32 %v1970, 2246822507
        %v2099 = vmul.u32 %v1971, 2246822507
        %v2100 = vmul.u32 %v1972, 2246822507
        %v2101 = vmul.u32 %v1973, 2246822507
        %v2102 = vmul.u32 %v1974, 2246822507
        %v2103 = vmul.u32 %v1975, 2246822507
        %v2104 = vmul.u32 %v1976, 2246822507
        %v2105 = vmul.u32 %v1977, 2246822507
        %v2106 = vmul.u32 %v1978, 2246822507
        %v2107 = vmul.u32 %v1979, 2246822507
        %v2108 = vmul.u32 %v1980, 2246822507
        %v2109 = vmul.u32 %v1981, 2246822507
        %v2110 = vmul.u32 %v1982, 2246822507
        %v2111 = vmul.u32 %v1983, 2246822507
        %v2112 = vmul.u32 %v1984, 2246822507
        %v2113 = vmul.u32 %v1985, 2246822507
        %v2114 = vmul.u32 %v1986, 2246822507
        %v2115 = vmul.u32 %v1987, 2246822507
        %v2116 = vmul.u32 %v1988, 2246822507
        %v2117 = vmul.u32 %v1989, 2246822507
        %v2118 = vmul.u32 %v1990, 2246822507
        %v2119 = vmul.u32 %v1991, 2246822507
        %v2120 = vmul.u32 %v1992, 2246822507
        %v2121 = vmul.u32 %v1993, 2246822507
        %v2122 = vmul.u32 %v1994, 2246822507
        %v2123 = vmul.u32 %v1995, 2246822507
        %v2124 = vmul.u32 %v1996, 2246822507
        %v2125 = vmul.u32 %v1997, 2246822507
        %v2126 = vmul.u32 %v1998, 2246822507
        %v2127 = vmul.u32 %v1999, 2246822507
        %v2128 = vmul.u32 %v2000, 2246822507
        %v2129 = vmul.u32 %v2001, 2246822507
        %v2130 = vmul.u32 %v2002, 2246822507
        %v2131 = vmul.u32 %v2003, 2246822507
        %v2132 = vmul.u32 %v2004, 2246822507
        %v2133 = vmul.u32 %v2005, 2246822507
        %v2134 = vmul.u32 %v2006, 2246822507
        %v2135 = vmul.u32 %v2007, 2246822507
        %v2136 = vmul.u32 %v2008, 2246822507
        %v2137 = vmul.u32 %v2009, 2246822507
        %v2138 = vmul.u32 %v2010, 2246822507
        %v2139 = vmul.u32 %v2011, 2246822507
        %v2140 = vmul.u32 %v2012, 2246822507
        %v2141 = vmul.u32 %v2013, 2246822507
        %v2142 = vmul.u32 %v2014, 2246822507
        %v2143 = vmul.u32 %v2015, 2246822507
        %v2144 = vmul.u32 %v2016, 2246822507
        %v2145 = vmul.u32 %v2017, 2246822507
        %v2146 = vmul.u32 %v2018, 2246822507
        %v2147 = vmul.u32 %v2019, 2246822507
        %v2148 = vmul.u32 %v2020, 2246822507
        %v2149 = vmul.u32 %v2021, 2246822507
        %v2150 = vmul.u32 %v2022, 2246822507
        %v2151 = vmul.u32 %v2023, 2246822507
        %v2152 = vmul.u32 %v2024, 2246822507
        %v2153 = vmul.u32 %v2025, 2246822507
        %v2154 = vmul.u32 %v2026, 2246822507
        %v2155 = vmul.u32 %v2027, 2246822507
        %v2156 = vmul.u32 %v2028, 2246822507
        %v2157 = vmul.u32 %v2029, 2246822507
        %v2158 = vmul.u32 %v2030, 2246822507
        %v2159 = vmul.u32 %v2031, 2246822507
        %v2160 = vmul.u32 %v2032, 2246822507
        %v2161 = vmul.u32 %v2033, 2246822507
        %v2162 = vmul.u32 %v2034, 2246822507
        %v2163 = vmul.u32 %v2035, 2246822507
        %v2164 = vmul.u32 %v2036, 2246822507
        %v2165 = vmul.u32 %v2037, 2246822507
        %v2166 = vmul.u32 %v2038, 2246822507
        %v2167 = vmul.u32 %v2039, 2246822507
        %v2168 = vmul.u32 %v2040, 2246822507
        %v2169 = vmul.u32 %v2041, 2246822507
        %v2170 = vmul.u32 %v2042, 2246822507
        %v2171 = vmul.u32 %v2043, 2246822507
        %v2172 = vmul.u32 %v2044, 2246822507
        %v2173 = vmul.u32 %v2045, 2246822507
        %v2174 = vmul.u32 %v2046, 2246822507
        %v2175 = vmul.u32 %v2047, 2246822507
        %v2176 = vmul.u32 %v2048, 2246822507
        %v2177 = vmul.u32 %v2049, 2246822507
        %v2178 = vmul.u32 %v2050, 2246822507
        %v2179 = vmul.u32 %v2051, 2246822507
        %v2180 = vmul.u32 %v2052, 2246822507
        %v2181 = vmul.u32 %v2053, 2246822507
        %v2182 = vmul.u32 %v2054, 2246822507
        %v2183 = vmul.u32 %v2055, 2246822507
        %v2184 = vshrl.u32 %v2056, 13
        %v2185 = vshrl.u32 %v2057, 13
        %v2186 = vshrl.u32 %v2058, 13
        %v2187 = vshrl.u32 %v2059, 13
        %v2188 = vshrl.u32 %v2060, 13
        %v2189 = vshrl.u32 %v2061, 13
        %v2190 = vshrl.u32 %v2062, 13
        %v2191 = vshrl.u32 %v2063, 13
        %v2192 = vshrl.u32 %v2064, 13
        %v2193 = vshrl.u32 %v2065, 13
        %v2194 = vshrl.u32 %v2066, 13
        %v2195 = vshrl.u32 %v2067, 13
        %v2196 = vshrl.u32 %v2068, 13
        %v2197 = vshrl.u32 %v2069, 13
        %v2198 = vshrl.u32 %v2070, 13
        %v2199 = vshrl.u32 %v2071, 13
        %v2200 = vshrl.u32 %v2072, 13
        %v2201 = vshrl.u32 %v2073, 13
        %v2202 = vshrl.u32 %v2074, 13
        %v2203 = vshrl.u32 %v2075, 13
        %v2204 = vshrl.u32 %v2076, 13
        %v2205 = vshrl.u32 %v2077, 13
        %v2206 = vshrl.u32 %v2078, 13
        %v2207 = vshrl.u32 %v2079, 13
        %v2208 = vshrl.u32 %v2080, 13
        %v2209 = vshrl.u32 %v2081, 13
        %v2210 = vshrl.u32 %v2082, 13
        %v2211 = vshrl.u32 %v2083, 13
        %v2212 = vshrl.u32 %v2084, 13
        %v2213 = vshrl.u32 %v2085, 13
        %v2214 = vshrl.u32 %v2086, 13
        %v2215 = vshrl.u32 %v2087, 13
        %v2216 = vshrl.u32 %v2088, 13
        %v2217 = vshrl.u32 %v2089, 13
        %v2218 = vshrl.u32 %v2090, 13
        %v2219 = vshrl.u32 %v2091, 13
        %v2220 = vshrl.u32 %v2092, 13
        %v2221 = vshrl.u32 %v2093, 13
        %v2222 = vshrl.u32 %v2094, 13
        %v2223 = vshrl.u32 %v2095, 13
        %v2224 = vshrl.u32 %v2096, 13
        %v2225 = vshrl.u32 %v2097, 13
        %v2226 = vshrl.u32 %v2098, 13
        %v2227 = vshrl.u32 %v2099, 13
        %v2228 = vshrl.u32 %v2100, 13
        %v2229 = vshrl.u32 %v2101, 13
        %v2230 = vshrl.u32 %v2102, 13
        %v2231 = vshrl.u32 %v2103, 13
        %v2232 = vshrl.u32 %v2104, 13
        %v2233 = vshrl.u32 %v2105, 13
        %v2234 = vshrl.u32 %v2106, 13
        %v2235 = vshrl.u32 %v2107, 13
        %v2236 = vshrl.u32 %v2108, 13
        %v2237 = vshrl.u32 %v2109, 13
        %v2238 = vshrl.u32 %v2110, 13
        %v2239 = vshrl.u32 %v2111, 13
        %v2240 = vshrl.u32 %v2112, 13
        %v2241 = vshrl.u32 %v2113, 13
        %v2242 = vshrl.u32 %v2114, 13
        %v2243 = vshrl.u32 %v2115, 13
        %v2244 = vshrl.u32 %v2116, 13
        %v2245 = vshrl.u32 %v2117, 13
        %v2246 = vshrl.u32 %v2118, 13
        %v2247 = vshrl.u32 %v2119, 13
        %v2248 = vshrl.u32 %v2120, 13
        %v2249 = vshrl.u32 %v2121, 13
        %v2250 = vshrl.u32 %v2122, 13
        %v2251 = vshrl.u32 %v2123, 13
        %v2252 = vshrl.u32 %v2124, 13
        %v2253 = vshrl.u32 %v2125, 13
        %v2254 = vshrl.u32 %v2126, 13
        %v2255 = vshrl.u32 %v2127, 13
        %v2256 = vshrl.u32 %v2128, 13
        %v2257 = vshrl.u32 %v2129, 13
        %v2258 = vshrl.u32 %v2130, 13
        %v2259 = vshrl.u32 %v2131, 13
        %v2260 = vshrl.u32 %v2132, 13
        %v2261 = vshrl.u32 %v2133, 13
        %v2262 = vshrl.u32 %v2134, 13
        %v2263 = vshrl.u32 %v2135, 13
        %v2264 = vshrl.u32 %v2136, 13
        %v2265 = vshrl.u32 %v2137, 13
        %v2266 = vshrl.u32 %v2138, 13
        %v2267 = vshrl.u32 %v2139, 13
        %v2268 = vshrl.u32 %v2140, 13
        %v2269 = vshrl.u32 %v2141, 13
        %v2270 = vshrl.u32 %v2142, 13
        %v2271 = vshrl.u32 %v2143, 13
        %v2272 = vshrl.u32 %v2144, 13
        %v2273 = vshrl.u32 %v2145, 13
        %v2274 = vshrl.u32 %v2146, 13
        %v2275 = vshrl.u32 %v2147, 13
        %v2276 = vshrl.u32 %v2148, 13
        %v2277 = vshrl.u32 %v2149, 13
        %v2278 = vshrl.u32 %v2150, 13
        %v2279 = vshrl.u32 %v2151, 13
        %v2280 = vshrl.u32 %v2152, 13
        %v2281 = vshrl.u32 %v2153, 13
        %v2282 = vshrl.u32 %v2154, 13
        %v2283 = vshrl.u32 %v2155, 13
        %v2284 = vshrl.u32 %v2156, 13
        %v2285 = vshrl.u32 %v2157, 13
        %v2286 = vshrl.u32 %v2158, 13
        %v2287 = vshrl.u32 %v2159, 13
        %v2288 = vshrl.u32 %v2160, 13
        %v2289 = vshrl.u32 %v2161, 13
        %v2290 = vshrl.u32 %v2162, 13
        %v2291 = vshrl.u32 %v2163, 13
        %v2292 = vshrl.u32 %v2164, 13
        %v2293 = vshrl.u32 %v2165, 13
        %v2294 = vshrl.u32 %v2166, 13
        %v2295 = vshrl.u32 %v2167, 13
        %v2296 = vshrl.u32 %v2168, 13
        %v2297 = vshrl.u32 %v2169, 13
        %v2298 = vshrl.u32 %v2170, 13
        %v2299 = vshrl.u32 %v2171, 13
        %v2300 = vshrl.u32 %v2172, 13
        %v2301 = vshrl.u32 %v2173, 13
        %v2302 = vshrl.u32 %v2174, 13
        %v2303 = vshrl.u32 %v2175, 13
        %v2304 = vshrl.u32 %v2176, 13
        %v2305 = vshrl.u32 %v2177, 13
        %v2306 = vshrl.u32 %v2178, 13
        %v2307 = vshrl.u32 %v2179, 13
        %v2308 = vshrl.u32 %v2180, 13
        %v2309 = vshrl.u32 %v2181, 13
        %v2310 = vshrl.u32 %v2182, 13
        %v2311 = vshrl.u32 %v2183, 13
        %v2312 = vxor.u32 %v2056, %v2184
        %v2313 = vxor.u32 %v2057, %v2185
        %v2314 = vxor.u32 %v2058, %v2186
        %v2315 = vxor.u32 %v2059, %v2187
        %v2316 = vxor.u32 %v2060, %v2188
        %v2317 = vxor.u32 %v2061, %v2189
        %v2318 = vxor.u32 %v2062, %v2190
        %v2319 = vxor.u32 %v2063, %v2191
        %v2320 = vxor.u32 %v2064, %v2192
        %v2321 = vxor.u32 %v2065, %v2193
        %v2322 = vxor.u32 %v2066, %v2194
        %v2323 = vxor.u32 %v2067, %v2195
        %v2324 = vxor.u32 %v2068, %v2196
        %v2325 = vxor.u32 %v2069, %v2197
        %v2326 = vxor.u32 %v2070, %v2198
        %v2327 = vxor.u32 %v2071, %v2199
        %v2328 = vxor.u32 %v2072, %v2200
        %v2329 = vxor.u32 %v2073, %v2201
        %v2330 = vxor.u32 %v2074, %v2202
        %v2331 = vxor.u32 %v2075, %v2203
        %v2332 = vxor.u32 %v2076, %v2204
        %v2333 = vxor.u32 %v2077, %v2205
        %v2334 = vxor.u32 %v2078, %v2206
        %v2335 = vxor.u32 %v2079, %v2207
        %v2336 = vxor.u32 %v2080, %v2208
        %v2337 = vxor.u32 %v2081, %v2209
        %v2338 = vxor.u32 %v2082, %v2210
        %v2339 = vxor.u32 %v2083, %v2211
        %v2340 = vxor.u32 %v2084, %v2212
        %v2341 = vxor.u32 %v2085, %v2213
        %v2342 = vxor.u32 %v2086, %v2214
        %v2343 = vxor.u32 %v2087, %v2215
        %v2344 = vxor.u32 %v2088, %v2216
        %v2345 = vxor.u32 %v2089, %v2217
        %v2346 = vxor.u32 %v2090, %v2218
        %v2347 = vxor.u32 %v2091, %v2219
        %v2348 = vxor.u32 %v2092, %v2220
        %v2349 = vxor.u32 %v2093, %v2221
        %v2350 = vxor.u32 %v2094, %v2222
        %v2351 = vxor.u32 %v2095, %v2223
        %v2352 = vxor.u32 %v2096, %v2224
        %v2353 = vxor.u32 %v2097, %v2225
        %v2354 = vxor.u32 %v2098, %v2226
        %v2355 = vxor.u32 %v2099, %v2227
        %v2356 = vxor.u32 %v2100, %v2228
        %v2357 = vxor.u32 %v2101, %v2229
        %v2358 = vxor.u32 %v2102, %v2230
        %v2359 = vxor.u32 %v2103, %v2231
        %v2360 = vxor.u32 %v2104, %v2232
        %v2361 = vxor.u32 %v2105, %v2233
        %v2362 = vxor.u32 %v2106, %v2234
        %v2363 = vxor.u32 %v2107, %v2235
        %v2364 = vxor.u32 %v2108, %v2236
        %v2365 = vxor.u32 %v2109, %v2237
        %v2366 = vxor.u32 %v2110, %v2238
        %v2367 = vxor.u32 %v2111, %v2239
        %v2368 = vxor.u32 %v2112, %v2240
        %v2369 = vxor.u32 %v2113, %v2241
        %v2370 = vxor.u32 %v2114, %v2242
        %v2371 = vxor.u32 %v2115, %v2243
        %v2372 = vxor.u32 %v2116, %v2244
        %v2373 = vxor.u32 %v2117, %v2245
        %v2374 = vxor.u32 %v2118, %v2246
        %v2375 = vxor.u32 %v2119, %v2247
        %v2376 = vxor.u32 %v2120, %v2248
        %v2377 = vxor.u32 %v2121, %v2249
        %v2378 = vxor.u32 %v2122, %v2250
        %v2379 = vxor.u32 %v2123, %v2251
        %v2380 = vxor.u32 %v2124, %v2252
        %v2381 = vxor.u32 %v2125, %v2253
        %v2382 = vxor.u32 %v2126, %v2254
        %v2383 = vxor.u32 %v2127, %v2255
        %v2384 = vxor.u32 %v2128, %v2256
        %v2385 = vxor.u32 %v2129, %v2257
        %v2386 = vxor.u32 %v2130, %v2258
        %v2387 = vxor.u32 %v2131, %v2259
        %v2388 = vxor.u32 %v2132, %v2260
        %v2389 = vxor.u32 %v2133, %v2261
        %v2390 = vxor.u32 %v2134, %v2262
        %v2391 = vxor.u32 %v2135, %v2263
        %v2392 = vxor.u32 %v2136, %v2264
        %v2393 = vxor.u32 %v2137, %v2265
        %v2394 = vxor.u32 %v2138, %v2266
        %v2395 = vxor.u32 %v2139, %v2267
        %v2396 = vxor.u32 %v2140, %v2268
        %v2397 = vxor.u32 %v2141, %v2269
        %v2398 = vxor.u32 %v2142, %v2270
        %v2399 = vxor.u32 %v2143, %v2271
        %v2400 = vxor.u32 %v2144, %v2272
        %v2401 = vxor.u32 %v2145, %v2273
        %v2402 = vxor.u32 %v2146, %v2274
        %v2403 = vxor.u32 %v2147, %v2275
        %v2404 = vxor.u32 %v2148, %v2276
        %v2405 = vxor.u32 %v2149, %v2277
        %v2406 = vxor.u32 %v2150, %v2278
        %v2407 = vxor.u32 %v2151, %v2279
        %v2408 = vxor.u32 %v2152, %v2280
        %v2409 = vxor.u32 %v2153, %v2281
        %v2410 = vxor.u32 %v2154, %v2282
        %v2411 = vxor.u32 %v2155, %v2283
        %v2412 = vxor.u32 %v2156, %v2284
        %v2413 = vxor.u32 %v2157, %v2285
        %v2414 = vxor.u32 %v2158, %v2286
        %v2415 = vxor.u32 %v2159, %v2287
        %v2416 = vxor.u32 %v2160, %v2288
        %v2417 = vxor.u32 %v2161, %v2289
        %v2418 = vxor.u32 %v2162, %v2290
        %v2419 = vxor.u32 %v2163, %v2291
        %v2420 = vxor.u32 %v2164, %v2292
        %v2421 = vxor.u32 %v2165, %v2293
        %v2422 = vxor.u32 %v2166, %v2294
        %v2423 = vxor.u32 %v2167, %v2295
        %v2424 = vxor.u32 %v2168, %v2296
        %v2425 = vxor.u32 %v2169, %v2297
        %v2426 = vxor.u32 %v2170, %v2298
        %v2427 = vxor.u32 %v2171, %v2299
        %v2428 = vxor.u32 %v2172, %v2300
        %v2429 = vxor.u32 %v2173, %v2301
        %v2430 = vxor.u32 %v2174, %v2302
        %v2431 = vxor.u32 %v2175, %v2303
        %v2432 = vxor.u32 %v2176, %v2304
        %v2433 = vxor.u32 %v2177, %v2305
        %v2434 = vxor.u32 %v2178, %v2306
        %v2435 = vxor.u32 %v2179, %v2307
        %v2436 = vxor.u32 %v2180, %v2308
        %v2437 = vxor.u32 %v2181, %v2309
        %v2438 = vxor.u32 %v2182, %v2310
        %v2439 = vxor.u32 %v2183, %v2311
        %v2440 = vmul.u32 %v2312, 3266489909
        %v2441 = vmul.u32 %v2313, 3266489909
        %v2442 = vmul.u32 %v2314, 3266489909
        %v2443 = vmul.u32 %v2315, 3266489909
        %v2444 = vmul.u32 %v2316, 3266489909
        %v2445 = vmul.u32 %v2317, 3266489909
        %v2446 = vmul.u32 %v2318, 3266489909
        %v2447 = vmul.u32 %v2319, 3266489909
        %v2448 = vmul.u32 %v2320, 3266489909
        %v2449 = vmul.u32 %v2321, 3266489909
        %v2450 = vmul.u32 %v2322, 3266489909
        %v2451 = vmul.u32 %v2323, 3266489909
        %v2452 = vmul.u32 %v2324, 3266489909
        %v2453 = vmul.u32 %v2325, 3266489909
        %v2454 = vmul.u32 %v2326, 3266489909
        %v2455 = vmul.u32 %v2327, 3266489909
        %v2456 = vmul.u32 %v2328, 3266489909
        %v2457 = vmul.u32 %v2329, 3266489909
        %v2458 = vmul.u32 %v2330, 3266489909
        %v2459 = vmul.u32 %v2331, 3266489909
        %v2460 = vmul.u32 %v2332, 3266489909
        %v2461 = vmul.u32 %v2333, 3266489909
        %v2462 = vmul.u32 %v2334, 3266489909
        %v2463 = vmul.u32 %v2335, 3266489909
        %v2464 = vmul.u32 %v2336, 3266489909
        %v2465 = vmul.u32 %v2337, 3266489909
        %v2466 = vmul.u32 %v2338, 3266489909
        %v2467 = vmul.u32 %v2339, 3266489909
        %v2468 = vmul.u32 %v2340, 3266489909
        %v2469 = vmul.u32 %v2341, 3266489909
        %v2470 = vmul.u32 %v2342, 3266489909
        %v2471 = vmul.u32 %v2343, 3266489909
        %v2472 = vmul.u32 %v2344, 3266489909
        %v2473 = vmul.u32 %v2345, 3266489909
        %v2474 = vmul.u32 %v2346, 3266489909
        %v2475 = vmul.u32 %v2347, 3266489909
        %v2476 = vmul.u32 %v2348, 3266489909
        %v2477 = vmul.u32 %v2349, 3266489909
        %v2478 = vmul.u32 %v2350, 3266489909
        %v2479 = vmul.u32 %v2351, 3266489909
        %v2480 = vmul.u32 %v2352, 3266489909
        %v2481 = vmul.u32 %v2353, 3266489909
        %v2482 = vmul.u32 %v2354, 3266489909
        %v2483 = vmul.u32 %v2355, 3266489909
        %v2484 = vmul.u32 %v2356, 3266489909
        %v2485 = vmul.u32 %v2357, 3266489909
        %v2486 = vmul.u32 %v2358, 3266489909
        %v2487 = vmul.u32 %v2359, 3266489909
        %v2488 = vmul.u32 %v2360, 3266489909
        %v2489 = vmul.u32 %v2361, 3266489909
        %v2490 = vmul.u32 %v2362, 3266489909
        %v2491 = vmul.u32 %v2363, 3266489909
        %v2492 = vmul.u32 %v2364, 3266489909
        %v2493 = vmul.u32 %v2365, 3266489909
        %v2494 = vmul.u32 %v2366, 3266489909
        %v2495 = vmul.u32 %v2367, 3266489909
        %v2496 = vmul.u32 %v2368, 3266489909
        %v2497 = vmul.u32 %v2369, 3266489909
        %v2498 = vmul.u32 %v2370, 3266489909
        %v2499 = vmul.u32 %v2371, 3266489909
        %v2500 = vmul.u32 %v2372, 3266489909
        %v2501 = vmul.u32 %v2373, 3266489909
        %v2502 = vmul.u32 %v2374, 3266489909
        %v2503 = vmul.u32 %v2375, 3266489909
        %v2504 = vmul.u32 %v2376, 3266489909
        %v2505 = vmul.u32 %v2377, 3266489909
        %v2506 = vmul.u32 %v2378, 3266489909
        %v2507 = vmul.u32 %v2379, 3266489909
        %v2508 = vmul.u32 %v2380, 3266489909
        %v2509 = vmul.u32 %v2381, 3266489909
        %v2510 = vmul.u32 %v2382, 3266489909
        %v2511 = vmul.u32 %v2383, 3266489909
        %v2512 = vmul.u32 %v2384, 3266489909
        %v2513 = vmul.u32 %v2385, 3266489909
        %v2514 = vmul.u32 %v2386, 3266489909
        %v2515 = vmul.u32 %v2387, 3266489909
        %v2516 = vmul.u32 %v2388, 3266489909
        %v2517 = vmul.u32 %v2389, 3266489909
        %v2518 = vmul.u32 %v2390, 3266489909
        %v2519 = vmul.u32 %v2391, 3266489909
        %v2520 = vmul.u32 %v2392, 3266489909
        %v2521 = vmul.u32 %v2393, 3266489909
        %v2522 = vmul.u32 %v2394, 3266489909
        %v2523 = vmul.u32 %v2395, 3266489909
        %v2524 = vmul.u32 %v2396, 3266489909
        %v2525 = vmul.u32 %v2397, 3266489909
        %v2526 = vmul.u32 %v2398, 3266489909
        %v2527 = vmul.u32 %v2399, 3266489909
        %v2528 = vmul.u32 %v2400, 3266489909
        %v2529 = vmul.u32 %v2401, 3266489909
        %v2530 = vmul.u32 %v2402, 3266489909
        %v2531 = vmul.u32 %v2403, 3266489909
        %v2532 = vmul.u32 %v2404, 3266489909
        %v2533 = vmul.u32 %v2405, 3266489909
        %v2534 = vmul.u32 %v2406, 3266489909
        %v2535 = vmul.u32 %v2407, 3266489909
        %v2536 = vmul.u32 %v2408, 3266489909
        %v2537 = vmul.u32 %v2409, 3266489909
        %v2538 = vmul.u32 %v2410, 3266489909
        %v2539 = vmul.u32 %v2411, 3266489909
        %v2540 = vmul.u32 %v2412, 3266489909
        %v2541 = vmul.u32 %v2413, 3266489909
        %v2542 = vmul.u32 %v2414, 3266489909
        %v2543 = vmul.u32 %v2415, 3266489909
        %v2544 = vmul.u32 %v2416, 3266489909
        %v2545 = vmul.u32 %v2417, 3266489909
        %v2546 = vmul.u32 %v2418, 3266489909
        %v2547 = vmul.u32 %v2419, 3266489909
        %v2548 = vmul.u32 %v2420, 3266489909
        %v2549 = vmul.u32 %v2421, 3266489909
        %v2550 = vmul.u32 %v2422, 3266489909
        %v2551 = vmul.u32 %v2423, 3266489909
        %v2552 = vmul.u32 %v2424, 3266489909
        %v2553 = vmul.u32 %v2425, 3266489909
        %v2554 = vmul.u32 %v2426, 3266489909
        %v2555 = vmul.u32 %v2427, 3266489909
        %v2556 = vmul.u32 %v2428, 3266489909
        %v2557 = vmul.u32 %v2429, 3266489909
        %v2558 = vmul.u32 %v2430, 3266489909
        %v2559 = vmul.u32 %v2431, 3266489909
        %v2560 = vmul.u32 %v2432, 3266489909
        %v2561 = vmul.u32 %v2433, 3266489909
        %v2562 = vmul.u32 %v2434, 3266489909
        %v2563 = vmul.u32 %v2435, 3266489909
        %v2564 = vmul.u32 %v2436, 3266489909
        %v2565 = vmul.u32 %v2437, 3266489909
        %v2566 = vmul.u32 %v2438, 3266489909
        %v2567 = vmul.u32 %v2439, 3266489909
        %v2568 = vshrl.u32 %v2440, 16
        %v2569 = vshrl.u32 %v2441, 16
        %v2570 = vshrl.u32 %v2442, 16
        %v2571 = vshrl.u32 %v2443, 16
        %v2572 = vshrl.u32 %v2444, 16
        %v2573 = vshrl.u32 %v2445, 16
        %v2574 = vshrl.u32 %v2446, 16
        %v2575 = vshrl.u32 %v2447, 16
        %v2576 = vshrl.u32 %v2448, 16
        %v2577 = vshrl.u32 %v2449, 16
        %v2578 = vshrl.u32 %v2450, 16
        %v2579 = vshrl.u32 %v2451, 16
        %v2580 = vshrl.u32 %v2452, 16
        %v2581 = vshrl.u32 %v2453, 16
        %v2582 = vshrl.u32 %v2454, 16
        %v2583 = vshrl.u32 %v2455, 16
        %v2584 = vshrl.u32 %v2456, 16
        %v2585 = vshrl.u32 %v2457, 16
        %v2586 = vshrl.u32 %v2458, 16
        %v2587 = vshrl.u32 %v2459, 16
        %v2588 = vshrl.u32 %v2460, 16
        %v2589 = vshrl.u32 %v2461, 16
        %v2590 = vshrl.u32 %v2462, 16
        %v2591 = vshrl.u32 %v2463, 16
        %v2592 = vshrl.u32 %v2464, 16
        %v2593 = vshrl.u32 %v2465, 16
        %v2594 = vshrl.u32 %v2466, 16
        %v2595 = vshrl.u32 %v2467, 16
        %v2596 = vshrl.u32 %v2468, 16
        %v2597 = vshrl.u32 %v2469, 16
        %v2598 = vshrl.u32 %v2470, 16
        %v2599 = vshrl.u32 %v2471, 16
        %v2600 = vshrl.u32 %v2472, 16
        %v2601 = vshrl.u32 %v2473, 16
        %v2602 = vshrl.u32 %v2474, 16
        %v2603 = vshrl.u32 %v2475, 16
        %v2604 = vshrl.u32 %v2476, 16
        %v2605 = vshrl.u32 %v2477, 16
        %v2606 = vshrl.u32 %v2478, 16
        %v2607 = vshrl.u32 %v2479, 16
        %v2608 = vshrl.u32 %v2480, 16
        %v2609 = vshrl.u32 %v2481, 16
        %v2610 = vshrl.u32 %v2482, 16
        %v2611 = vshrl.u32 %v2483, 16
        %v2612 = vshrl.u32 %v2484, 16
        %v2613 = vshrl.u32 %v2485, 16
        %v2614 = vshrl.u32 %v2486, 16
        %v2615 = vshrl.u32 %v2487, 16
        %v2616 = vshrl.u32 %v2488, 16
        %v2617 = vshrl.u32 %v2489, 16
        %v2618 = vshrl.u32 %v2490, 16
        %v2619 = vshrl.u32 %v2491, 16
        %v2620 = vshrl.u32 %v2492, 16
        %v2621 = vshrl.u32 %v2493, 16
        %v2622 = vshrl.u32 %v2494, 16
        %v2623 = vshrl.u32 %v2495, 16
        %v2624 = vshrl.u32 %v2496, 16
        %v2625 = vshrl.u32 %v2497, 16
        %v2626 = vshrl.u32 %v2498, 16
        %v2627 = vshrl.u32 %v2499, 16
        %v2628 = vshrl.u32 %v2500, 16
        %v2629 = vshrl.u32 %v2501, 16
        %v2630 = vshrl.u32 %v2502, 16
        %v2631 = vshrl.u32 %v2503, 16
        %v2632 = vshrl.u32 %v2504, 16
        %v2633 = vshrl.u32 %v2505, 16
        %v2634 = vshrl.u32 %v2506, 16
        %v2635 = vshrl.u32 %v2507, 16
        %v2636 = vshrl.u32 %v2508, 16
        %v2637 = vshrl.u32 %v2509, 16
        %v2638 = vshrl.u32 %v2510, 16
        %v2639 = vshrl.u32 %v2511, 16
        %v2640 = vshrl.u32 %v2512, 16
        %v2641 = vshrl.u32 %v2513, 16
        %v2642 = vshrl.u32 %v2514, 16
        %v2643 = vshrl.u32 %v2515, 16
        %v2644 = vshrl.u32 %v2516, 16
        %v2645 = vshrl.u32 %v2517, 16
        %v2646 = vshrl.u32 %v2518, 16
        %v2647 = vshrl.u32 %v2519, 16
        %v2648 = vshrl.u32 %v2520, 16
        %v2649 = vshrl.u32 %v2521, 16
        %v2650 = vshrl.u32 %v2522, 16
        %v2651 = vshrl.u32 %v2523, 16
        %v2652 = vshrl.u32 %v2524, 16
        %v2653 = vshrl.u32 %v2525, 16
        %v2654 = vshrl.u32 %v2526, 16
        %v2655 = vshrl.u32 %v2527, 16
        %v2656 = vshrl.u32 %v2528, 16
        %v2657 = vshrl.u32 %v2529, 16
        %v2658 = vshrl.u32 %v2530, 16
        %v2659 = vshrl.u32 %v2531, 16
        %v2660 = vshrl.u32 %v2532, 16
        %v2661 = vshrl.u32 %v2533, 16
        %v2662 = vshrl.u32 %v2534, 16
        %v2663 = vshrl.u32 %v2535, 16
        %v2664 = vshrl.u32 %v2536, 16
        %v2665 = vshrl.u32 %v2537, 16
        %v2666 = vshrl.u32 %v2538, 16
        %v2667 = vshrl.u32 %v2539, 16
        %v2668 = vshrl.u32 %v2540, 16
        %v2669 = vshrl.u32 %v2541, 16
        %v2670 = vshrl.u32 %v2542, 16
        %v2671 = vshrl.u32 %v2543, 16
        %v2672 = vshrl.u32 %v2544, 16
        %v2673 = vshrl.u32 %v2545, 16
        %v2674 = vshrl.u32 %v2546, 16
        %v2675 = vshrl.u32 %v2547, 16
        %v2676 = vshrl.u32 %v2548, 16
        %v2677 = vshrl.u32 %v2549, 16
        %v2678 = vshrl.u32 %v2550, 16
        %v2679 = vshrl.u32 %v2551, 16
        %v2680 = vshrl.u32 %v2552, 16
        %v2681 = vshrl.u32 %v2553, 16
        %v2682 = vshrl.u32 %v2554, 16
        %v2683 = vshrl.u32 %v2555, 16
        %v2684 = vshrl.u32 %v2556, 16
        %v2685 = vshrl.u32 %v2557, 16
        %v2686 = vshrl.u32 %v2558, 16
        %v2687 = vshrl.u32 %v2559, 16
        %v2688 = vshrl.u32 %v2560, 16
        %v2689 = vshrl.u32 %v2561, 16
        %v2690 = vshrl.u32 %v2562, 16
        %v2691 = vshrl.u32 %v2563, 16
        %v2692 = vshrl.u32 %v2564, 16
        %v2693 = vshrl.u32 %v2565, 16
        %v2694 = vshrl.u32 %v2566, 16
        %v2695 = vshrl.u32 %v2567, 16
        %v2696 = vxor.u32 %v2440, %v2568
        %v2697 = vxor.u32 %v2441, %v2569
        %v2698 = vxor.u32 %v2442, %v2570
        %v2699 = vxor.u32 %v2443, %v2571
        %v2700 = vxor.u32 %v2444, %v2572
        %v2701 = vxor.u32 %v2445, %v2573
        %v2702 = vxor.u32 %v2446, %v2574
        %v2703 = vxor.u32 %v2447, %v2575
        %v2704 = vxor.u32 %v2448, %v2576
        %v2705 = vxor.u32 %v2449, %v2577
        %v2706 = vxor.u32 %v2450, %v2578
        %v2707 = vxor.u32 %v2451, %v2579
        %v2708 = vxor.u32 %v2452, %v2580
        %v2709 = vxor.u32 %v2453, %v2581
        %v2710 = vxor.u32 %v2454, %v2582
        %v2711 = vxor.u32 %v2455, %v2583
        %v2712 = vxor.u32 %v2456, %v2584
        %v2713 = vxor.u32 %v2457, %v2585
        %v2714 = vxor.u32 %v2458, %v2586
        %v2715 = vxor.u32 %v2459, %v2587
        %v2716 = vxor.u32 %v2460, %v2588
        %v2717 = vxor.u32 %v2461, %v2589
        %v2718 = vxor.u32 %v2462, %v2590
        %v2719 = vxor.u32 %v2463, %v2591
        %v2720 = vxor.u32 %v2464, %v2592
        %v2721 = vxor.u32 %v2465, %v2593
        %v2722 = vxor.u32 %v2466, %v2594
        %v2723 = vxor.u32 %v2467, %v2595
        %v2724 = vxor.u32 %v2468, %v2596
        %v2725 = vxor.u32 %v2469, %v2597
        %v2726 = vxor.u32 %v2470, %v2598
        %v2727 = vxor.u32 %v2471, %v2599
        %v2728 = vxor.u32 %v2472, %v2600
        %v2729 = vxor.u32 %v2473, %v2601
        %v2730 = vxor.u32 %v2474, %v2602
        %v2731 = vxor.u32 %v2475, %v2603
        %v2732 = vxor.u32 %v2476, %v2604
        %v2733 = vxor.u32 %v2477, %v2605
        %v2734 = vxor.u32 %v2478, %v2606
        %v2735 = vxor.u32 %v2479, %v2607
        %v2736 = vxor.u32 %v2480, %v2608
        %v2737 = vxor.u32 %v2481, %v2609
        %v2738 = vxor.u32 %v2482, %v2610
        %v2739 = vxor.u32 %v2483, %v2611
        %v2740 = vxor.u32 %v2484, %v2612
        %v2741 = vxor.u32 %v2485, %v2613
        %v2742 = vxor.u32 %v2486, %v2614
        %v2743 = vxor.u32 %v2487, %v2615
        %v2744 = vxor.u32 %v2488, %v2616
        %v2745 = vxor.u32 %v2489, %v2617
        %v2746 = vxor.u32 %v2490, %v2618
        %v2747 = vxor.u32 %v2491, %v2619
        %v2748 = vxor.u32 %v2492, %v2620
        %v2749 = vxor.u32 %v2493, %v2621
        %v2750 = vxor.u32 %v2494, %v2622
        %v2751 = vxor.u32 %v2495, %v2623
        %v2752 = vxor.u32 %v2496, %v2624
        %v2753 = vxor.u32 %v2497, %v2625
        %v2754 = vxor.u32 %v2498, %v2626
        %v2755 = vxor.u32 %v2499, %v2627
        %v2756 = vxor.u32 %v2500, %v2628
        %v2757 = vxor.u32 %v2501, %v2629
        %v2758 = vxor.u32 %v2502, %v2630
        %v2759 = vxor.u32 %v2503, %v2631
        %v2760 = vxor.u32 %v2504, %v2632
        %v2761 = vxor.u32 %v2505, %v2633
        %v2762 = vxor.u32 %v2506, %v2634
        %v2763 = vxor.u32 %v2507, %v2635
        %v2764 = vxor.u32 %v2508, %v2636
        %v2765 = vxor.u32 %v2509, %v2637
        %v2766 = vxor.u32 %v2510, %v2638
        %v2767 = vxor.u32 %v2511, %v2639
        %v2768 = vxor.u32 %v2512, %v2640
        %v2769 = vxor.u32 %v2513, %v2641
        %v2770 = vxor.u32 %v2514, %v2642
        %v2771 = vxor.u32 %v2515, %v2643
        %v2772 = vxor.u32 %v2516, %v2644
        %v2773 = vxor.u32 %v2517, %v2645
        %v2774 = vxor.u32 %v2518, %v2646
        %v2775 = vxor.u32 %v2519, %v2647
        %v2776 = vxor.u32 %v2520, %v2648
        %v2777 = vxor.u32 %v2521, %v2649
        %v2778 = vxor.u32 %v2522, %v2650
        %v2779 = vxor.u32 %v2523, %v2651
        %v2780 = vxor.u32 %v2524, %v2652
        %v2781 = vxor.u32 %v2525, %v2653
        %v2782 = vxor.u32 %v2526, %v2654
        %v2783 = vxor.u32 %v2527, %v2655
        %v2784 = vxor.u32 %v2528, %v2656
        %v2785 = vxor.u32 %v2529, %v2657
        %v2786 = vxor.u32 %v2530, %v2658
        %v2787 = vxor.u32 %v2531, %v2659
        %v2788 = vxor.u32 %v2532, %v2660
        %v2789 = vxor.u32 %v2533, %v2661
        %v2790 = vxor.u32 %v2534, %v2662
        %v2791 = vxor.u32 %v2535, %v2663
        %v2792 = vxor.u32 %v2536, %v2664
        %v2793 = vxor.u32 %v2537, %v2665
        %v2794 = vxor.u32 %v2538, %v2666
        %v2795 = vxor.u32 %v2539, %v2667
        %v2796 = vxor.u32 %v2540, %v2668
        %v2797 = vxor.u32 %v2541, %v2669
        %v2798 = vxor.u32 %v2542, %v2670
        %v2799 = vxor.u32 %v2543, %v2671
        %v2800 = vxor.u32 %v2544, %v2672
        %v2801 = vxor.u32 %v2545, %v2673
        %v2802 = vxor.u32 %v2546, %v2674
        %v2803 = vxor.u32 %v2547, %v2675
        %v2804 = vxor.u32 %v2548, %v2676
        %v2805 = vxor.u32 %v2549, %v2677
        %v2806 = vxor.u32 %v2550, %v2678
        %v2807 = vxor.u32 %v2551, %v2679
        %v2808 = vxor.u32 %v2552, %v2680
        %v2809 = vxor.u32 %v2553, %v2681
        %v2810 = vxor.u32 %v2554, %v2682
        %v2811 = vxor.u32 %v2555, %v2683
        %v2812 = vxor.u32 %v2556, %v2684
        %v2813 = vxor.u32 %v2557, %v2685
        %v2814 = vxor.u32 %v2558, %v2686
        %v2815 = vxor.u32 %v2559, %v2687
        %v2816 = vxor.u32 %v2560, %v2688
        %v2817 = vxor.u32 %v2561, %v2689
        %v2818 = vxor.u32 %v2562, %v2690
        %v2819 = vxor.u32 %v2563, %v2691
        %v2820 = vxor.u32 %v2564, %v2692
        %v2821 = vxor.u32 %v2565, %v2693
        %v2822 = vxor.u32 %v2566, %v2694
        %v2823 = vxor.u32 %v2567, %v2695
        %v2824 = vadd.s32 %v2696, 2147483648
        %vm2826 = vcmp.lt.s32.totalorder %v2824, 0
        %v2827 = vadd.s32 %v2697, 2147483648
        %vm2829 = vcmp.lt.s32.totalorder %v2827, 0
        %v2830 = vadd.s32 %v2698, 2147483648
        %vm2832 = vcmp.lt.s32.totalorder %v2830, 0
        %v2833 = vadd.s32 %v2699, 2147483648
        %vm2835 = vcmp.lt.s32.totalorder %v2833, 0
        %v2836 = vadd.s32 %v2700, 2147483648
        %vm2838 = vcmp.lt.s32.totalorder %v2836, 0
        %v2839 = vadd.s32 %v2701, 2147483648
        %vm2841 = vcmp.lt.s32.totalorder %v2839, 0
        %v2842 = vadd.s32 %v2702, 2147483648
        %vm2844 = vcmp.lt.s32.totalorder %v2842, 0
        %v2845 = vadd.s32 %v2703, 2147483648
        %vm2847 = vcmp.lt.s32.totalorder %v2845, 0
        %v2848 = vadd.s32 %v2704, 2147483648
        %vm2850 = vcmp.lt.s32.totalorder %v2848, 0
        %v2851 = vadd.s32 %v2705, 2147483648
        %vm2853 = vcmp.lt.s32.totalorder %v2851, 0
        %v2854 = vadd.s32 %v2706, 2147483648
        %vm2856 = vcmp.lt.s32.totalorder %v2854, 0
        %v2857 = vadd.s32 %v2707, 2147483648
        %vm2859 = vcmp.lt.s32.totalorder %v2857, 0
        %v2860 = vadd.s32 %v2708, 2147483648
        %vm2862 = vcmp.lt.s32.totalorder %v2860, 0
        %v2863 = vadd.s32 %v2709, 2147483648
        %vm2865 = vcmp.lt.s32.totalorder %v2863, 0
        %v2866 = vadd.s32 %v2710, 2147483648
        %vm2868 = vcmp.lt.s32.totalorder %v2866, 0
        %v2869 = vadd.s32 %v2711, 2147483648
        %vm2871 = vcmp.lt.s32.totalorder %v2869, 0
        %v2872 = vadd.s32 %v2712, 2147483648
        %vm2874 = vcmp.lt.s32.totalorder %v2872, 0
        %v2875 = vadd.s32 %v2713, 2147483648
        %vm2877 = vcmp.lt.s32.totalorder %v2875, 0
        %v2878 = vadd.s32 %v2714, 2147483648
        %vm2880 = vcmp.lt.s32.totalorder %v2878, 0
        %v2881 = vadd.s32 %v2715, 2147483648
        %vm2883 = vcmp.lt.s32.totalorder %v2881, 0
        %v2884 = vadd.s32 %v2716, 2147483648
        %vm2886 = vcmp.lt.s32.totalorder %v2884, 0
        %v2887 = vadd.s32 %v2717, 2147483648
        %vm2889 = vcmp.lt.s32.totalorder %v2887, 0
        %v2890 = vadd.s32 %v2718, 2147483648
        %vm2892 = vcmp.lt.s32.totalorder %v2890, 0
        %v2893 = vadd.s32 %v2719, 2147483648
        %vm2895 = vcmp.lt.s32.totalorder %v2893, 0
        %v2896 = vadd.s32 %v2720, 2147483648
        %vm2898 = vcmp.lt.s32.totalorder %v2896, 0
        %v2899 = vadd.s32 %v2721, 2147483648
        %vm2901 = vcmp.lt.s32.totalorder %v2899, 0
        %v2902 = vadd.s32 %v2722, 2147483648
        %vm2904 = vcmp.lt.s32.totalorder %v2902, 0
        %v2905 = vadd.s32 %v2723, 2147483648
        %vm2907 = vcmp.lt.s32.totalorder %v2905, 0
        %v2908 = vadd.s32 %v2724, 2147483648
        %vm2910 = vcmp.lt.s32.totalorder %v2908, 0
        %v2911 = vadd.s32 %v2725, 2147483648
        %vm2913 = vcmp.lt.s32.totalorder %v2911, 0
        %v2914 = vadd.s32 %v2726, 2147483648
        %vm2916 = vcmp.lt.s32.totalorder %v2914, 0
        %v2917 = vadd.s32 %v2727, 2147483648
        %vm2919 = vcmp.lt.s32.totalorder %v2917, 0
        %v2920 = vadd.s32 %v2728, 2147483648
        %vm2922 = vcmp.lt.s32.totalorder %v2920, 0
        %v2923 = vadd.s32 %v2729, 2147483648
        %vm2925 = vcmp.lt.s32.totalorder %v2923, 0
        %v2926 = vadd.s32 %v2730, 2147483648
        %vm2928 = vcmp.lt.s32.totalorder %v2926, 0
        %v2929 = vadd.s32 %v2731, 2147483648
        %vm2931 = vcmp.lt.s32.totalorder %v2929, 0
        %v2932 = vadd.s32 %v2732, 2147483648
        %vm2934 = vcmp.lt.s32.totalorder %v2932, 0
        %v2935 = vadd.s32 %v2733, 2147483648
        %vm2937 = vcmp.lt.s32.totalorder %v2935, 0
        %v2938 = vadd.s32 %v2734, 2147483648
        %vm2940 = vcmp.lt.s32.totalorder %v2938, 0
        %v2941 = vadd.s32 %v2735, 2147483648
        %vm2943 = vcmp.lt.s32.totalorder %v2941, 0
        %v2944 = vadd.s32 %v2736, 2147483648
        %vm2946 = vcmp.lt.s32.totalorder %v2944, 0
        %v2947 = vadd.s32 %v2737, 2147483648
        %vm2949 = vcmp.lt.s32.totalorder %v2947, 0
        %v2950 = vadd.s32 %v2738, 2147483648
        %vm2952 = vcmp.lt.s32.totalorder %v2950, 0
        %v2953 = vadd.s32 %v2739, 2147483648
        %vm2955 = vcmp.lt.s32.totalorder %v2953, 0
        %v2956 = vadd.s32 %v2740, 2147483648
        %vm2958 = vcmp.lt.s32.totalorder %v2956, 0
        %v2959 = vadd.s32 %v2741, 2147483648
        %vm2961 = vcmp.lt.s32.totalorder %v2959, 0
        %v2962 = vadd.s32 %v2742, 2147483648
        %vm2964 = vcmp.lt.s32.totalorder %v2962, 0
        %v2965 = vadd.s32 %v2743, 2147483648
        %vm2967 = vcmp.lt.s32.totalorder %v2965, 0
        %v2968 = vadd.s32 %v2744, 2147483648
        %vm2970 = vcmp.lt.s32.totalorder %v2968, 0
        %v2971 = vadd.s32 %v2745, 2147483648
        %vm2973 = vcmp.lt.s32.totalorder %v2971, 0
        %v2974 = vadd.s32 %v2746, 2147483648
        %vm2976 = vcmp.lt.s32.totalorder %v2974, 0
        %v2977 = vadd.s32 %v2747, 2147483648
        %vm2979 = vcmp.lt.s32.totalorder %v2977, 0
        %v2980 = vadd.s32 %v2748, 2147483648
        %vm2982 = vcmp.lt.s32.totalorder %v2980, 0
        %v2983 = vadd.s32 %v2749, 2147483648
        %vm2985 = vcmp.lt.s32.totalorder %v2983, 0
        %v2986 = vadd.s32 %v2750, 2147483648
        %vm2988 = vcmp.lt.s32.totalorder %v2986, 0
        %v2989 = vadd.s32 %v2751, 2147483648
        %vm2991 = vcmp.lt.s32.totalorder %v2989, 0
        %v2992 = vadd.s32 %v2752, 2147483648
        %vm2994 = vcmp.lt.s32.totalorder %v2992, 0
        %v2995 = vadd.s32 %v2753, 2147483648
        %vm2997 = vcmp.lt.s32.totalorder %v2995, 0
        %v2998 = vadd.s32 %v2754, 2147483648
        %vm3000 = vcmp.lt.s32.totalorder %v2998, 0
        %v3001 = vadd.s32 %v2755, 2147483648
        %vm3003 = vcmp.lt.s32.totalorder %v3001, 0
        %v3004 = vadd.s32 %v2756, 2147483648
        %vm3006 = vcmp.lt.s32.totalorder %v3004, 0
        %v3007 = vadd.s32 %v2757, 2147483648
        %vm3009 = vcmp.lt.s32.totalorder %v3007, 0
        %v3010 = vadd.s32 %v2758, 2147483648
        %vm3012 = vcmp.lt.s32.totalorder %v3010, 0
        %v3013 = vadd.s32 %v2759, 2147483648
        %vm3015 = vcmp.lt.s32.totalorder %v3013, 0
        %v3016 = vadd.s32 %v2760, 2147483648
        %vm3018 = vcmp.lt.s32.totalorder %v3016, 0
        %v3019 = vadd.s32 %v2761, 2147483648
        %vm3021 = vcmp.lt.s32.totalorder %v3019, 0
        %v3022 = vadd.s32 %v2762, 2147483648
        %vm3024 = vcmp.lt.s32.totalorder %v3022, 0
        %v3025 = vadd.s32 %v2763, 2147483648
        %vm3027 = vcmp.lt.s32.totalorder %v3025, 0
        %v3028 = vadd.s32 %v2764, 2147483648
        %vm3030 = vcmp.lt.s32.totalorder %v3028, 0
        %v3031 = vadd.s32 %v2765, 2147483648
        %vm3033 = vcmp.lt.s32.totalorder %v3031, 0
        %v3034 = vadd.s32 %v2766, 2147483648
        %vm3036 = vcmp.lt.s32.totalorder %v3034, 0
        %v3037 = vadd.s32 %v2767, 2147483648
        %vm3039 = vcmp.lt.s32.totalorder %v3037, 0
        %v3040 = vadd.s32 %v2768, 2147483648
        %vm3042 = vcmp.lt.s32.totalorder %v3040, 0
        %v3043 = vadd.s32 %v2769, 2147483648
        %vm3045 = vcmp.lt.s32.totalorder %v3043, 0
        %v3046 = vadd.s32 %v2770, 2147483648
        %vm3048 = vcmp.lt.s32.totalorder %v3046, 0
        %v3049 = vadd.s32 %v2771, 2147483648
        %vm3051 = vcmp.lt.s32.totalorder %v3049, 0
        %v3052 = vadd.s32 %v2772, 2147483648
        %vm3054 = vcmp.lt.s32.totalorder %v3052, 0
        %v3055 = vadd.s32 %v2773, 2147483648
        %vm3057 = vcmp.lt.s32.totalorder %v3055, 0
        %v3058 = vadd.s32 %v2774, 2147483648
        %vm3060 = vcmp.lt.s32.totalorder %v3058, 0
        %v3061 = vadd.s32 %v2775, 2147483648
        %vm3063 = vcmp.lt.s32.totalorder %v3061, 0
        %v3064 = vadd.s32 %v2776, 2147483648
        %vm3066 = vcmp.lt.s32.totalorder %v3064, 0
        %v3067 = vadd.s32 %v2777, 2147483648
        %vm3069 = vcmp.lt.s32.totalorder %v3067, 0
        %v3070 = vadd.s32 %v2778, 2147483648
        %vm3072 = vcmp.lt.s32.totalorder %v3070, 0
        %v3073 = vadd.s32 %v2779, 2147483648
        %vm3075 = vcmp.lt.s32.totalorder %v3073, 0
        %v3076 = vadd.s32 %v2780, 2147483648
        %vm3078 = vcmp.lt.s32.totalorder %v3076, 0
        %v3079 = vadd.s32 %v2781, 2147483648
        %vm3081 = vcmp.lt.s32.totalorder %v3079, 0
        %v3082 = vadd.s32 %v2782, 2147483648
        %vm3084 = vcmp.lt.s32.totalorder %v3082, 0
        %v3085 = vadd.s32 %v2783, 2147483648
        %vm3087 = vcmp.lt.s32.totalorder %v3085, 0
        %v3088 = vadd.s32 %v2784, 2147483648
        %vm3090 = vcmp.lt.s32.totalorder %v3088, 0
        %v3091 = vadd.s32 %v2785, 2147483648
        %vm3093 = vcmp.lt.s32.totalorder %v3091, 0
        %v3094 = vadd.s32 %v2786, 2147483648
        %vm3096 = vcmp.lt.s32.totalorder %v3094, 0
        %v3097 = vadd.s32 %v2787, 2147483648
        %vm3099 = vcmp.lt.s32.totalorder %v3097, 0
        %v3100 = vadd.s32 %v2788, 2147483648
        %vm3102 = vcmp.lt.s32.totalorder %v3100, 0
        %v3103 = vadd.s32 %v2789, 2147483648
        %vm3105 = vcmp.lt.s32.totalorder %v3103, 0
        %v3106 = vadd.s32 %v2790, 2147483648
        %vm3108 = vcmp.lt.s32.totalorder %v3106, 0
        %v3109 = vadd.s32 %v2791, 2147483648
        %vm3111 = vcmp.lt.s32.totalorder %v3109, 0
        %v3112 = vadd.s32 %v2792, 2147483648
        %vm3114 = vcmp.lt.s32.totalorder %v3112, 0
        %v3115 = vadd.s32 %v2793, 2147483648
        %vm3117 = vcmp.lt.s32.totalorder %v3115, 0
        %v3118 = vadd.s32 %v2794, 2147483648
        %vm3120 = vcmp.lt.s32.totalorder %v3118, 0
        %v3121 = vadd.s32 %v2795, 2147483648
        %vm3123 = vcmp.lt.s32.totalorder %v3121, 0
        %v3124 = vadd.s32 %v2796, 2147483648
        %vm3126 = vcmp.lt.s32.totalorder %v3124, 0
        %v3127 = vadd.s32 %v2797, 2147483648
        %vm3129 = vcmp.lt.s32.totalorder %v3127, 0
        %v3130 = vadd.s32 %v2798, 2147483648
        %vm3132 = vcmp.lt.s32.totalorder %v3130, 0
        %v3133 = vadd.s32 %v2799, 2147483648
        %vm3135 = vcmp.lt.s32.totalorder %v3133, 0
        %v3136 = vadd.s32 %v2800, 2147483648
        %vm3138 = vcmp.lt.s32.totalorder %v3136, 0
        %v3139 = vadd.s32 %v2801, 2147483648
        %vm3141 = vcmp.lt.s32.totalorder %v3139, 0
        %v3142 = vadd.s32 %v2802, 2147483648
        %vm3144 = vcmp.lt.s32.totalorder %v3142, 0
        %v3145 = vadd.s32 %v2803, 2147483648
        %vm3147 = vcmp.lt.s32.totalorder %v3145, 0
        %v3148 = vadd.s32 %v2804, 2147483648
        %vm3150 = vcmp.lt.s32.totalorder %v3148, 0
        %v3151 = vadd.s32 %v2805, 2147483648
        %vm3153 = vcmp.lt.s32.totalorder %v3151, 0
        %v3154 = vadd.s32 %v2806, 2147483648
        %vm3156 = vcmp.lt.s32.totalorder %v3154, 0
        %v3157 = vadd.s32 %v2807, 2147483648
        %vm3159 = vcmp.lt.s32.totalorder %v3157, 0
        %v3160 = vadd.s32 %v2808, 2147483648
        %vm3162 = vcmp.lt.s32.totalorder %v3160, 0
        %v3163 = vadd.s32 %v2809, 2147483648
        %vm3165 = vcmp.lt.s32.totalorder %v3163, 0
        %v3166 = vadd.s32 %v2810, 2147483648
        %vm3168 = vcmp.lt.s32.totalorder %v3166, 0
        %v3169 = vadd.s32 %v2811, 2147483648
        %vm3171 = vcmp.lt.s32.totalorder %v3169, 0
        %v3172 = vadd.s32 %v2812, 2147483648
        %vm3174 = vcmp.lt.s32.totalorder %v3172, 0
        %v3175 = vadd.s32 %v2813, 2147483648
        %vm3177 = vcmp.lt.s32.totalorder %v3175, 0
        %v3178 = vadd.s32 %v2814, 2147483648
        %vm3180 = vcmp.lt.s32.totalorder %v3178, 0
        %v3181 = vadd.s32 %v2815, 2147483648
        %vm3183 = vcmp.lt.s32.totalorder %v3181, 0
        %v3184 = vadd.s32 %v2816, 2147483648
        %vm3186 = vcmp.lt.s32.totalorder %v3184, 0
        %v3187 = vadd.s32 %v2817, 2147483648
        %vm3189 = vcmp.lt.s32.totalorder %v3187, 0
        %v3190 = vadd.s32 %v2818, 2147483648
        %vm3192 = vcmp.lt.s32.totalorder %v3190, 0
        %v3193 = vadd.s32 %v2819, 2147483648
        %vm3195 = vcmp.lt.s32.totalorder %v3193, 0
        %v3196 = vadd.s32 %v2820, 2147483648
        %vm3198 = vcmp.lt.s32.totalorder %v3196, 0
        %v3199 = vadd.s32 %v2821, 2147483648
        %vm3201 = vcmp.lt.s32.totalorder %v3199, 0
        %v3202 = vadd.s32 %v2822, 2147483648
        %vm3204 = vcmp.lt.s32.totalorder %v3202, 0
        %v3205 = vadd.s32 %v2823, 2147483648
        %vm3207 = vcmp.lt.s32.totalorder %v3205, 0
        %v3208 = vmul.f32 %v1214, 2.0
        %v3209 = vmul.f32 %v1215, 2.0
        %v3210 = vmul.f32 %v1216, 2.0
        %v3211 = vmul.f32 %v1217, 2.0
        %v3212 = vmul.f32 %v1218, 2.0
        %v3213 = vmul.f32 %v1219, 2.0
        %v3214 = vmul.f32 %v1220, 2.0
        %v3215 = vmul.f32 %v1221, 2.0
        %v3216 = vmul.f32 %v1222, 2.0
        %v3217 = vmul.f32 %v1223, 2.0
        %v3218 = vmul.f32 %v1224, 2.0
        %v3219 = vmul.f32 %v1225, 2.0
        %v3220 = vmul.f32 %v1226, 2.0
        %v3221 = vmul.f32 %v1227, 2.0
        %v3222 = vmul.f32 %v1228, 2.0
        %v3223 = vmul.f32 %v1229, 2.0
        %v3224 = vmul.f32 %v1230, 2.0
        %v3225 = vmul.f32 %v1231, 2.0
        %v3226 = vmul.f32 %v1232, 2.0
        %v3227 = vmul.f32 %v1233, 2.0
        %v3228 = vmul.f32 %v1234, 2.0
        %v3229 = vmul.f32 %v1235, 2.0
        %v3230 = vmul.f32 %v1236, 2.0
        %v3231 = vmul.f32 %v1237, 2.0
        %v3232 = vmul.f32 %v1238, 2.0
        %v3233 = vmul.f32 %v1239, 2.0
        %v3234 = vmul.f32 %v1240, 2.0
        %v3235 = vmul.f32 %v1241, 2.0
        %v3236 = vmul.f32 %v1242, 2.0
        %v3237 = vmul.f32 %v1243, 2.0
        %v3238 = vmul.f32 %v1244, 2.0
        %v3239 = vmul.f32 %v1245, 2.0
        %v3240 = vmul.f32 %v1246, 2.0
        %v3241 = vmul.f32 %v1247, 2.0
        %v3242 = vmul.f32 %v1248, 2.0
        %v3243 = vmul.f32 %v1249, 2.0
        %v3244 = vmul.f32 %v1250, 2.0
        %v3245 = vmul.f32 %v1251, 2.0
        %v3246 = vmul.f32 %v1252, 2.0
        %v3247 = vmul.f32 %v1253, 2.0
        %v3248 = vmul.f32 %v1254, 2.0
        %v3249 = vmul.f32 %v1255, 2.0
        %v3250 = vmul.f32 %v1256, 2.0
        %v3251 = vmul.f32 %v1257, 2.0
        %v3252 = vmul.f32 %v1258, 2.0
        %v3253 = vmul.f32 %v1259, 2.0
        %v3254 = vmul.f32 %v1260, 2.0
        %v3255 = vmul.f32 %v1261, 2.0
        %v3256 = vmul.f32 %v1262, 2.0
        %v3257 = vmul.f32 %v1263, 2.0
        %v3258 = vmul.f32 %v1264, 2.0
        %v3259 = vmul.f32 %v1265, 2.0
        %v3260 = vmul.f32 %v1266, 2.0
        %v3261 = vmul.f32 %v1267, 2.0
        %v3262 = vmul.f32 %v1268, 2.0
        %v3263 = vmul.f32 %v1269, 2.0
        %v3264 = vmul.f32 %v1270, 2.0
        %v3265 = vmul.f32 %v1271, 2.0
        %v3266 = vmul.f32 %v1272, 2.0
        %v3267 = vmul.f32 %v1273, 2.0
        %v3268 = vmul.f32 %v1274, 2.0
        %v3269 = vmul.f32 %v1275, 2.0
        %v3270 = vmul.f32 %v1276, 2.0
        %v3271 = vmul.f32 %v1277, 2.0
        %v3272 = vmul.f32 %v1278, 2.0
        %v3273 = vmul.f32 %v1279, 2.0
        %v3274 = vmul.f32 %v1280, 2.0
        %v3275 = vmul.f32 %v1281, 2.0
        %v3276 = vmul.f32 %v1282, 2.0
        %v3277 = vmul.f32 %v1283, 2.0
        %v3278 = vmul.f32 %v1284, 2.0
        %v3279 = vmul.f32 %v1285, 2.0
        %v3280 = vmul.f32 %v1286, 2.0
        %v3281 = vmul.f32 %v1287, 2.0
        %v3282 = vmul.f32 %v1288, 2.0
        %v3283 = vmul.f32 %v1289, 2.0
        %v3284 = vmul.f32 %v1290, 2.0
        %v3285 = vmul.f32 %v1291, 2.0
        %v3286 = vmul.f32 %v1292, 2.0
        %v3287 = vmul.f32 %v1293, 2.0
        %v3288 = vmul.f32 %v1294, 2.0
        %v3289 = vmul.f32 %v1295, 2.0
        %v3290 = vmul.f32 %v1296, 2.0
        %v3291 = vmul.f32 %v1297, 2.0
        %v3292 = vmul.f32 %v1298, 2.0
        %v3293 = vmul.f32 %v1299, 2.0
        %v3294 = vmul.f32 %v1300, 2.0
        %v3295 = vmul.f32 %v1301, 2.0
        %v3296 = vmul.f32 %v1302, 2.0
        %v3297 = vmul.f32 %v1303, 2.0
        %v3298 = vmul.f32 %v1304, 2.0
        %v3299 = vmul.f32 %v1305, 2.0
        %v3300 = vmul.f32 %v1306, 2.0
        %v3301 = vmul.f32 %v1307, 2.0
        %v3302 = vmul.f32 %v1308, 2.0
        %v3303 = vmul.f32 %v1309, 2.0
        %v3304 = vmul.f32 %v1310, 2.0
        %v3305 = vmul.f32 %v1311, 2.0
        %v3306 = vmul.f32 %v1312, 2.0
        %v3307 = vmul.f32 %v1313, 2.0
        %v3308 = vmul.f32 %v1314, 2.0
        %v3309 = vmul.f32 %v1315, 2.0
        %v3310 = vmul.f32 %v1316, 2.0
        %v3311 = vmul.f32 %v1317, 2.0
        %v3312 = vmul.f32 %v1318, 2.0
        %v3313 = vmul.f32 %v1319, 2.0
        %v3314 = vmul.f32 %v1320, 2.0
        %v3315 = vmul.f32 %v1321, 2.0
        %v3316 = vmul.f32 %v1322, 2.0
        %v3317 = vmul.f32 %v1323, 2.0
        %v3318 = vmul.f32 %v1324, 2.0
        %v3319 = vmul.f32 %v1325, 2.0
        %v3320 = vmul.f32 %v1326, 2.0
        %v3321 = vmul.f32 %v1327, 2.0
        %v3322 = vmul.f32 %v1328, 2.0
        %v3323 = vmul.f32 %v1329, 2.0
        %v3324 = vmul.f32 %v1330, 2.0
        %v3325 = vmul.f32 %v1331, 2.0
        %v3326 = vmul.f32 %v1332, 2.0
        %v3327 = vmul.f32 %v1333, 2.0
        %v3328 = vmul.f32 %v1334, 2.0
        %v3329 = vmul.f32 %v1335, 2.0
        %v3330 = vmul.f32 %v1336, 2.0
        %v3331 = vmul.f32 %v1337, 2.0
        %v3332 = vmul.f32 %v1338, 2.0
        %v3333 = vmul.f32 %v1339, 2.0
        %v3334 = vmul.f32 %v1340, 2.0
        %v3335 = vmul.f32 %v1341, 2.0
        %v3336 = vsel %vm2826, %v3208, 0.0
        %v3337 = vsel %vm2829, %v3209, 0.0
        %v3338 = vsel %vm2832, %v3210, 0.0
        %v3339 = vsel %vm2835, %v3211, 0.0
        %v3340 = vsel %vm2838, %v3212, 0.0
        %v3341 = vsel %vm2841, %v3213, 0.0
        %v3342 = vsel %vm2844, %v3214, 0.0
        %v3343 = vsel %vm2847, %v3215, 0.0
        %v3344 = vsel %vm2850, %v3216, 0.0
        %v3345 = vsel %vm2853, %v3217, 0.0
        %v3346 = vsel %vm2856, %v3218, 0.0
        %v3347 = vsel %vm2859, %v3219, 0.0
        %v3348 = vsel %vm2862, %v3220, 0.0
        %v3349 = vsel %vm2865, %v3221, 0.0
        %v3350 = vsel %vm2868, %v3222, 0.0
        %v3351 = vsel %vm2871, %v3223, 0.0
        %v3352 = vsel %vm2874, %v3224, 0.0
        %v3353 = vsel %vm2877, %v3225, 0.0
        %v3354 = vsel %vm2880, %v3226, 0.0
        %v3355 = vsel %vm2883, %v3227, 0.0
        %v3356 = vsel %vm2886, %v3228, 0.0
        %v3357 = vsel %vm2889, %v3229, 0.0
        %v3358 = vsel %vm2892, %v3230, 0.0
        %v3359 = vsel %vm2895, %v3231, 0.0
        %v3360 = vsel %vm2898, %v3232, 0.0
        %v3361 = vsel %vm2901, %v3233, 0.0
        %v3362 = vsel %vm2904, %v3234, 0.0
        %v3363 = vsel %vm2907, %v3235, 0.0
        %v3364 = vsel %vm2910, %v3236, 0.0
        %v3365 = vsel %vm2913, %v3237, 0.0
        %v3366 = vsel %vm2916, %v3238, 0.0
        %v3367 = vsel %vm2919, %v3239, 0.0
        %v3368 = vsel %vm2922, %v3240, 0.0
        %v3369 = vsel %vm2925, %v3241, 0.0
        %v3370 = vsel %vm2928, %v3242, 0.0
        %v3371 = vsel %vm2931, %v3243, 0.0
        %v3372 = vsel %vm2934, %v3244, 0.0
        %v3373 = vsel %vm2937, %v3245, 0.0
        %v3374 = vsel %vm2940, %v3246, 0.0
        %v3375 = vsel %vm2943, %v3247, 0.0
        %v3376 = vsel %vm2946, %v3248, 0.0
        %v3377 = vsel %vm2949, %v3249, 0.0
        %v3378 = vsel %vm2952, %v3250, 0.0
        %v3379 = vsel %vm2955, %v3251, 0.0
        %v3380 = vsel %vm2958, %v3252, 0.0
        %v3381 = vsel %vm2961, %v3253, 0.0
        %v3382 = vsel %vm2964, %v3254, 0.0
        %v3383 = vsel %vm2967, %v3255, 0.0
        %v3384 = vsel %vm2970, %v3256, 0.0
        %v3385 = vsel %vm2973, %v3257, 0.0
        %v3386 = vsel %vm2976, %v3258, 0.0
        %v3387 = vsel %vm2979, %v3259, 0.0
        %v3388 = vsel %vm2982, %v3260, 0.0
        %v3389 = vsel %vm2985, %v3261, 0.0
        %v3390 = vsel %vm2988, %v3262, 0.0
        %v3391 = vsel %vm2991, %v3263, 0.0
        %v3392 = vsel %vm2994, %v3264, 0.0
        %v3393 = vsel %vm2997, %v3265, 0.0
        %v3394 = vsel %vm3000, %v3266, 0.0
        %v3395 = vsel %vm3003, %v3267, 0.0
        %v3396 = vsel %vm3006, %v3268, 0.0
        %v3397 = vsel %vm3009, %v3269, 0.0
        %v3398 = vsel %vm3012, %v3270, 0.0
        %v3399 = vsel %vm3015, %v3271, 0.0
        %v3400 = vsel %vm3018, %v3272, 0.0
        %v3401 = vsel %vm3021, %v3273, 0.0
        %v3402 = vsel %vm3024, %v3274, 0.0
        %v3403 = vsel %vm3027, %v3275, 0.0
        %v3404 = vsel %vm3030, %v3276, 0.0
        %v3405 = vsel %vm3033, %v3277, 0.0
        %v3406 = vsel %vm3036, %v3278, 0.0
        %v3407 = vsel %vm3039, %v3279, 0.0
        %v3408 = vsel %vm3042, %v3280, 0.0
        %v3409 = vsel %vm3045, %v3281, 0.0
        %v3410 = vsel %vm3048, %v3282, 0.0
        %v3411 = vsel %vm3051, %v3283, 0.0
        %v3412 = vsel %vm3054, %v3284, 0.0
        %v3413 = vsel %vm3057, %v3285, 0.0
        %v3414 = vsel %vm3060, %v3286, 0.0
        %v3415 = vsel %vm3063, %v3287, 0.0
        %v3416 = vsel %vm3066, %v3288, 0.0
        %v3417 = vsel %vm3069, %v3289, 0.0
        %v3418 = vsel %vm3072, %v3290, 0.0
        %v3419 = vsel %vm3075, %v3291, 0.0
        %v3420 = vsel %vm3078, %v3292, 0.0
        %v3421 = vsel %vm3081, %v3293, 0.0
        %v3422 = vsel %vm3084, %v3294, 0.0
        %v3423 = vsel %vm3087, %v3295, 0.0
        %v3424 = vsel %vm3090, %v3296, 0.0
        %v3425 = vsel %vm3093, %v3297, 0.0
        %v3426 = vsel %vm3096, %v3298, 0.0
        %v3427 = vsel %vm3099, %v3299, 0.0
        %v3428 = vsel %vm3102, %v3300, 0.0
        %v3429 = vsel %vm3105, %v3301, 0.0
        %v3430 = vsel %vm3108, %v3302, 0.0
        %v3431 = vsel %vm3111, %v3303, 0.0
        %v3432 = vsel %vm3114, %v3304, 0.0
        %v3433 = vsel %vm3117, %v3305, 0.0
        %v3434 = vsel %vm3120, %v3306, 0.0
        %v3435 = vsel %vm3123, %v3307, 0.0
        %v3436 = vsel %vm3126, %v3308, 0.0
        %v3437 = vsel %vm3129, %v3309, 0.0
        %v3438 = vsel %vm3132, %v3310, 0.0
        %v3439 = vsel %vm3135, %v3311, 0.0
        %v3440 = vsel %vm3138, %v3312, 0.0
        %v3441 = vsel %vm3141, %v3313, 0.0
        %v3442 = vsel %vm3144, %v3314, 0.0
        %v3443 = vsel %vm3147, %v3315, 0.0
        %v3444 = vsel %vm3150, %v3316, 0.0
        %v3445 = vsel %vm3153, %v3317, 0.0
        %v3446 = vsel %vm3156, %v3318, 0.0
        %v3447 = vsel %vm3159, %v3319, 0.0
        %v3448 = vsel %vm3162, %v3320, 0.0
        %v3449 = vsel %vm3165, %v3321, 0.0
        %v3450 = vsel %vm3168, %v3322, 0.0
        %v3451 = vsel %vm3171, %v3323, 0.0
        %v3452 = vsel %vm3174, %v3324, 0.0
        %v3453 = vsel %vm3177, %v3325, 0.0
        %v3454 = vsel %vm3180, %v3326, 0.0
        %v3455 = vsel %vm3183, %v3327, 0.0
        %v3456 = vsel %vm3186, %v3328, 0.0
        %v3457 = vsel %vm3189, %v3329, 0.0
        %v3458 = vsel %vm3192, %v3330, 0.0
        %v3459 = vsel %vm3195, %v3331, 0.0
        %v3460 = vsel %vm3198, %v3332, 0.0
        %v3461 = vsel %vm3201, %v3333, 0.0
        %v3462 = vsel %vm3204, %v3334, 0.0
        %v3463 = vsel %vm3207, %v3335, 0.0
        %3464 = vst [vmem:[%s183] sm:$0xff] %v3336
        %3465 = vst [vmem:[%s183 + $0x8] sm:$0xff] %v3337
        %3466 = vst [vmem:[%s183 + $0x10] sm:$0xff] %v3338
        %3467 = vst [vmem:[%s183 + $0x18] sm:$0xff] %v3339
        %3468 = vst [vmem:[%s183 + $0x20] sm:$0xff] %v3340
        %3469 = vst [vmem:[%s183 + $0x28] sm:$0xff] %v3341
        %3470 = vst [vmem:[%s183 + $0x30] sm:$0xff] %v3342
        %3471 = vst [vmem:[%s183 + $0x38] sm:$0xff] %v3343
        %3472 = vst [vmem:[%s183 + $0x40] sm:$0xff] %v3344
        %3473 = vst [vmem:[%s183 + $0x48] sm:$0xff] %v3345
        %3474 = vst [vmem:[%s183 + $0x50] sm:$0xff] %v3346
        %3475 = vst [vmem:[%s183 + $0x58] sm:$0xff] %v3347
        %3476 = vst [vmem:[%s183 + $0x60] sm:$0xff] %v3348
        %3477 = vst [vmem:[%s183 + $0x68] sm:$0xff] %v3349
        %3478 = vst [vmem:[%s183 + $0x70] sm:$0xff] %v3350
        %3479 = vst [vmem:[%s183 + $0x78] sm:$0xff] %v3351
        %3480 = vst [vmem:[%s183 + $0x80] sm:$0xff] %v3352
        %3481 = vst [vmem:[%s183 + $0x88] sm:$0xff] %v3353
        %3482 = vst [vmem:[%s183 + $0x90] sm:$0xff] %v3354
        %3483 = vst [vmem:[%s183 + $0x98] sm:$0xff] %v3355
        %3484 = vst [vmem:[%s183 + $0xa0] sm:$0xff] %v3356
        %3485 = vst [vmem:[%s183 + $0xa8] sm:$0xff] %v3357
        %3486 = vst [vmem:[%s183 + $0xb0] sm:$0xff] %v3358
        %3487 = vst [vmem:[%s183 + $0xb8] sm:$0xff] %v3359
        %3488 = vst [vmem:[%s183 + $0xc0] sm:$0xff] %v3360
        %3489 = vst [vmem:[%s183 + $0xc8] sm:$0xff] %v3361
        %3490 = vst [vmem:[%s183 + $0xd0] sm:$0xff] %v3362
        %3491 = vst [vmem:[%s183 + $0xd8] sm:$0xff] %v3363
        %3492 = vst [vmem:[%s183 + $0xe0] sm:$0xff] %v3364
        %3493 = vst [vmem:[%s183 + $0xe8] sm:$0xff] %v3365
        %3494 = vst [vmem:[%s183 + $0xf0] sm:$0xff] %v3366
        %3495 = vst [vmem:[%s183 + $0xf8] sm:$0xff] %v3367
        %3496 = vst [vmem:[%s183 + $0x100] sm:$0xff] %v3368
        %3497 = vst [vmem:[%s183 + $0x108] sm:$0xff] %v3369
        %3498 = vst [vmem:[%s183 + $0x110] sm:$0xff] %v3370
        %3499 = vst [vmem:[%s183 + $0x118] sm:$0xff] %v3371
        %3500 = vst [vmem:[%s183 + $0x120] sm:$0xff] %v3372
        %3501 = vst [vmem:[%s183 + $0x128] sm:$0xff] %v3373
        %3502 = vst [vmem:[%s183 + $0x130] sm:$0xff] %v3374
        %3503 = vst [vmem:[%s183 + $0x138] sm:$0xff] %v3375
        %3504 = vst [vmem:[%s183 + $0x140] sm:$0xff] %v3376
        %3505 = vst [vmem:[%s183 + $0x148] sm:$0xff] %v3377
        %3506 = vst [vmem:[%s183 + $0x150] sm:$0xff] %v3378
        %3507 = vst [vmem:[%s183 + $0x158] sm:$0xff] %v3379
        %3508 = vst [vmem:[%s183 + $0x160] sm:$0xff] %v3380
        %3509 = vst [vmem:[%s183 + $0x168] sm:$0xff] %v3381
        %3510 = vst [vmem:[%s183 + $0x170] sm:$0xff] %v3382
        %3511 = vst [vmem:[%s183 + $0x178] sm:$0xff] %v3383
        %3512 = vst [vmem:[%s183 + $0x180] sm:$0xff] %v3384
        %3513 = vst [vmem:[%s183 + $0x188] sm:$0xff] %v3385
        %3514 = vst [vmem:[%s183 + $0x190] sm:$0xff] %v3386
        %3515 = vst [vmem:[%s183 + $0x198] sm:$0xff] %v3387
        %3516 = vst [vmem:[%s183 + $0x1a0] sm:$0xff] %v3388
        %3517 = vst [vmem:[%s183 + $0x1a8] sm:$0xff] %v3389
        %3518 = vst [vmem:[%s183 + $0x1b0] sm:$0xff] %v3390
        %3519 = vst [vmem:[%s183 + $0x1b8] sm:$0xff] %v3391
        %3520 = vst [vmem:[%s183 + $0x1c0] sm:$0xff] %v3392
        %3521 = vst [vmem:[%s183 + $0x1c8] sm:$0xff] %v3393
        %3522 = vst [vmem:[%s183 + $0x1d0] sm:$0xff] %v3394
        %3523 = vst [vmem:[%s183 + $0x1d8] sm:$0xff] %v3395
        %3524 = vst [vmem:[%s183 + $0x1e0] sm:$0xff] %v3396
        %3525 = vst [vmem:[%s183 + $0x1e8] sm:$0xff] %v3397
        %3526 = vst [vmem:[%s183 + $0x1f0] sm:$0xff] %v3398
        %3527 = vst [vmem:[%s183 + $0x1f8] sm:$0xff] %v3399
        %3528 = vst [vmem:[%s183 + $0x200] sm:$0xff] %v3400
        %3529 = vst [vmem:[%s183 + $0x208] sm:$0xff] %v3401
        %3530 = vst [vmem:[%s183 + $0x210] sm:$0xff] %v3402
        %3531 = vst [vmem:[%s183 + $0x218] sm:$0xff] %v3403
        %3532 = vst [vmem:[%s183 + $0x220] sm:$0xff] %v3404
        %3533 = vst [vmem:[%s183 + $0x228] sm:$0xff] %v3405
        %3534 = vst [vmem:[%s183 + $0x230] sm:$0xff] %v3406
        %3535 = vst [vmem:[%s183 + $0x238] sm:$0xff] %v3407
        %3536 = vst [vmem:[%s183 + $0x240] sm:$0xff] %v3408
        %3537 = vst [vmem:[%s183 + $0x248] sm:$0xff] %v3409
        %3538 = vst [vmem:[%s183 + $0x250] sm:$0xff] %v3410
        %3539 = vst [vmem:[%s183 + $0x258] sm:$0xff] %v3411
        %3540 = vst [vmem:[%s183 + $0x260] sm:$0xff] %v3412
        %3541 = vst [vmem:[%s183 + $0x268] sm:$0xff] %v3413
        %3542 = vst [vmem:[%s183 + $0x270] sm:$0xff] %v3414
        %3543 = vst [vmem:[%s183 + $0x278] sm:$0xff] %v3415
        %3544 = vst [vmem:[%s183 + $0x280] sm:$0xff] %v3416
        %3545 = vst [vmem:[%s183 + $0x288] sm:$0xff] %v3417
        %3546 = vst [vmem:[%s183 + $0x290] sm:$0xff] %v3418
        %3547 = vst [vmem:[%s183 + $0x298] sm:$0xff] %v3419
        %3548 = vst [vmem:[%s183 + $0x2a0] sm:$0xff] %v3420
        %3549 = vst [vmem:[%s183 + $0x2a8] sm:$0xff] %v3421
        %3550 = vst [vmem:[%s183 + $0x2b0] sm:$0xff] %v3422
        %3551 = vst [vmem:[%s183 + $0x2b8] sm:$0xff] %v3423
        %3552 = vst [vmem:[%s183 + $0x2c0] sm:$0xff] %v3424
        %3553 = vst [vmem:[%s183 + $0x2c8] sm:$0xff] %v3425
        %3554 = vst [vmem:[%s183 + $0x2d0] sm:$0xff] %v3426
        %3555 = vst [vmem:[%s183 + $0x2d8] sm:$0xff] %v3427
        %3556 = vst [vmem:[%s183 + $0x2e0] sm:$0xff] %v3428
        %3557 = vst [vmem:[%s183 + $0x2e8] sm:$0xff] %v3429
        %3558 = vst [vmem:[%s183 + $0x2f0] sm:$0xff] %v3430
        %3559 = vst [vmem:[%s183 + $0x2f8] sm:$0xff] %v3431
        %3560 = vst [vmem:[%s183 + $0x300] sm:$0xff] %v3432
        %3561 = vst [vmem:[%s183 + $0x308] sm:$0xff] %v3433
        %3562 = vst [vmem:[%s183 + $0x310] sm:$0xff] %v3434
        %3563 = vst [vmem:[%s183 + $0x318] sm:$0xff] %v3435
        %3564 = vst [vmem:[%s183 + $0x320] sm:$0xff] %v3436
        %3565 = vst [vmem:[%s183 + $0x328] sm:$0xff] %v3437
        %3566 = vst [vmem:[%s183 + $0x330] sm:$0xff] %v3438
        %3567 = vst [vmem:[%s183 + $0x338] sm:$0xff] %v3439
        %3568 = vst [vmem:[%s183 + $0x340] sm:$0xff] %v3440
        %3569 = vst [vmem:[%s183 + $0x348] sm:$0xff] %v3441
        %3570 = vst [vmem:[%s183 + $0x350] sm:$0xff] %v3442
        %3571 = vst [vmem:[%s183 + $0x358] sm:$0xff] %v3443
        %3572 = vst [vmem:[%s183 + $0x360] sm:$0xff] %v3444
        %3573 = vst [vmem:[%s183 + $0x368] sm:$0xff] %v3445
        %3574 = vst [vmem:[%s183 + $0x370] sm:$0xff] %v3446
        %3575 = vst [vmem:[%s183 + $0x378] sm:$0xff] %v3447
        %3576 = vst [vmem:[%s183 + $0x380] sm:$0xff] %v3448
        %3577 = vst [vmem:[%s183 + $0x388] sm:$0xff] %v3449
        %3578 = vst [vmem:[%s183 + $0x390] sm:$0xff] %v3450
        %3579 = vst [vmem:[%s183 + $0x398] sm:$0xff] %v3451
        %3580 = vst [vmem:[%s183 + $0x3a0] sm:$0xff] %v3452
        %3581 = vst [vmem:[%s183 + $0x3a8] sm:$0xff] %v3453
        %3582 = vst [vmem:[%s183 + $0x3b0] sm:$0xff] %v3454
        %3583 = vst [vmem:[%s183 + $0x3b8] sm:$0xff] %v3455
        %3584 = vst [vmem:[%s183 + $0x3c0] sm:$0xff] %v3456
        %3585 = vst [vmem:[%s183 + $0x3c8] sm:$0xff] %v3457
        %3586 = vst [vmem:[%s183 + $0x3d0] sm:$0xff] %v3458
        %3587 = vst [vmem:[%s183 + $0x3d8] sm:$0xff] %v3459
        %3588 = vst [vmem:[%s183 + $0x3e0] sm:$0xff] %v3460
        %3589 = vst [vmem:[%s183 + $0x3e8] sm:$0xff] %v3461
        %3590 = vst [vmem:[%s183 + $0x3f0] sm:$0xff] %v3462
        %3591 = vst [vmem:[%s183 + $0x3f8] sm:$0xff] %v3463
        %s3592 = sand.u32 %s77, 1
        %s3593 = scalar_lea.sflag [#allocation6], %s3592
        %s3594 = sand.u32 %s77, 1
        %s3595 = smul.addr %s3594, 1024
        %s3596 = scalar_lea.vmem [#allocation9], %s3595
        // Predicated region
        $region37: #{tpu_custom_call.1} parent=27 // pred_check
          %p3597 = pneg %p87
        $region38: #{tpu_custom_call.1} parent=27 // pred_check_branch
          %3599 = sbr.rel (%p3597) target = $region40
        $region39: #{tpu_custom_call.1} parent=27 // pred_region
          %s3600 = smul.u32 64, %s22
          %3602 = vsyncadd %s3593, 0
          %s3603 = smul.addr %s3600, 2
          %s3604 = smul.addr %s3603, 8
          %s3605 = scalar_lea.hbm %s3, %s3604
          %s3606 = sshll.u32 %s3596, 4
          %s3607 = int_to_ptr.vmem [resolvable:$true] %s3606
          %s3608 = sshll.u32 %s3605, 4
          %s3609 = int_to_ptr.hbm [resolvable:$true] %s3608
          %3614 = dma.vmem_to_hbm [thread:$0]  %s3607, 16384, %s3609, %s3593, 256, 256, 16
        $region40: #{tpu_custom_call.1} parent=27 // pred_fallthru
          _
      $region28: #{tpu_custom_call.1} parent=5 // pred_fallthru
        _
      %p3615 = scmp.le.s32.totalorder 2, %s17
      // Predicated region
      $region41: #{tpu_custom_call.1} parent=5 // pred_check
        %p3616 = pneg %p3615
      $region42: #{tpu_custom_call.1} parent=5 // pred_check_branch
        %3618 = sbr.rel (%p3616) target = $region44
      $region43: #{tpu_custom_call.1} parent=5 // pred_region
        %s3619 = ssub.s32 %s17, 2
        // Predicated region
        $region45: #{tpu_custom_call.1} parent=43 // pred_check
          %p3620 = pneg %p93
        $region46: #{tpu_custom_call.1} parent=43 // pred_check_branch
          %3622 = sbr.rel (%p3620) target = $region48
        $region47: #{tpu_custom_call.1} parent=43 // pred_region
          %s3623 = sand.u32 %s78, 1
          %s3624 = scalar_lea.sflag [#allocation6], %s3623
          %s3625 = sand.u32 %s78, 1
          %s3626 = smul.addr %s3625, 1024
          %s3627 = scalar_lea.vmem [#allocation9], %s3626
          %3629 = dma.done %s3624, 16384
        $region48: #{tpu_custom_call.1} parent=43 // pred_fallthru
          _
      $region44: #{tpu_custom_call.1} parent=5 // pred_fallthru
        _
    $region6: #{tpu_custom_call.1} parent=1 // loop_footer
      %s21 = sadd.s32 1, %s17
    $region7: #{tpu_custom_call.1} parent=1 // loop_footer_branch
      %16 = sbr.rel target = $region3
    $region8: #{tpu_custom_call.1} parent=1 // loop_exit
      _
    %3630 = vsyncpa [#allocation5], 1
    %s3631 = scalar_lea.sflag [#allocation5], 1
    %3632 = vsyncpa %s3631, 1
    %3633 = vsyncpa [#allocation8], 1
    %3634 = vsyncpa [#allocation6], 1
    %s3635 = scalar_lea.sflag [#allocation6], 1
    %3636 = vsyncpa %s3635, 1

</llo_original>
